<compile_context>
chip_gen: v6e
topology: v6e:2x2x1
jax: 0.10.0
libtpu: 0.0.40
codegen_flags: <defaults>
</compile_context>

<pallas_src>
import jax
import jax.numpy as jnp
from jax.experimental import pallas as pl
from jax.experimental.pallas import tpu as pltpu

N_DOCS = 39                     # fixed by the module's reshape(..., 39)
N_PAIRS = N_DOCS * N_DOCS       # 1521
DEFAULT_TB = 2048               # batch-tile rows; ~28 MiB double-buffered VMEM
VMEM_LIMIT_BYTES = 40 << 20     # explicit scoped-VMEM limit (safe on v5e/v6e/v7x)


def _round_up(x: int, m: int) -> int:
    return ((x + m - 1) // m) * m


def _s_ij_kernel(r_ref, d_ref, o_ref):
    """o[b, i*N + j] = r[b, i] - r[b, j] via one f32 MXU matmul against ±1 matrix D."""
    o_ref[...] = jnp.dot(
        r_ref[...], d_ref[...],
        preferred_element_type=jnp.float32,
        precision=jax.lax.Precision.HIGHEST,   # exact f32 path (D is ±1/0)
    )


def _make_pair_diff_matrix() -> jax.Array:
    """D of shape (39, 1521) with D[k, i*39+j] = (k==i) - (k==j)."""
    eye = jnp.eye(N_DOCS, dtype=jnp.float32)
    return (eye[:, :, None] - eye[:, None, :]).reshape(N_DOCS, N_PAIRS)


def ranknet_forward(batch_ranking: jax.Array, batch_label: jax.Array,
                    *, tb: int = DEFAULT_TB) -> jax.Array:
    """Pallas implementation of RankNet.forward.

    batch_ranking: any shape whose elements reshape to (-1, 39).
    batch_label:   unused by forward (kept for signature parity).
    Returns s_ij of shape (B, 39, 39), float32.
    """
    del batch_label  # forward() never uses it
    r = jnp.asarray(batch_ranking, jnp.float32).reshape(-1, N_DOCS)
    B = r.shape[0]

    # Small-B: use the full batch as one block (block dim == full array dim is
    # always legal).  When B is large enough, cap the tile so the grid has at
    # least two 8-row-aligned steps (keeps both v7x TensorCores busy).  A
    # non-divisible last block is handled by Pallas (padded reads, OOB writes
    # discarded).
    tb = min(tb, B)
    if B >= 16:
        tb = min(tb, _round_up(pl.cdiv(B, 2), 8))
    grid = (pl.cdiv(B, tb),)

    d = _make_pair_diff_matrix()

    out_flat = pl.pallas_call(
        _s_ij_kernel,
        out_shape=jax.ShapeDtypeStruct((B, N_PAIRS), jnp.float32),
        grid=grid,
        in_specs=[
            pl.BlockSpec((tb, N_DOCS), lambda b: (b, 0)),          # r tile
            pl.BlockSpec((N_DOCS, N_PAIRS), lambda b: (0, 0)),     # D, resident
        ],
        out_specs=pl.BlockSpec((tb, N_PAIRS), lambda b: (b, 0)),
        compiler_params=pltpu.CompilerParams(
            dimension_semantics=("parallel",),
            vmem_limit_bytes=VMEM_LIMIT_BYTES,
        ),
        cost_estimate=pl.CostEstimate(
            flops=2 * B * N_DOCS * N_PAIRS,
            transcendentals=0,
            bytes_accessed=B * N_DOCS * 4 + N_DOCS * N_PAIRS * 4 + B * N_PAIRS * 4,
        ),
    )(r, d)

    # Free metadata reshape: (B, 39*39) -> (B, 39, 39).
    return out_flat.reshape(B, N_DOCS, N_DOCS)


if __name__ == "__main__":
    key = jax.random.PRNGKey(0)
    k1, k2, k3 = jax.random.split(key, 3)

    # Small primary test (matches module usage).
    B = 2
    batch_ranking = jax.random.normal(k1, (B, N_DOCS), dtype=jnp.float32)
    batch_label = jax.random.randint(k2, (B, N_DOCS), 0, 3).astype(jnp.float32)

    s_ij = ranknet_forward(batch_ranking, batch_label)
    s_ij = jax.block_until_ready(s_ij)

    ref = batch_ranking[:, :, None] - batch_ranking[:, None, :]
    assert s_ij.shape == (B, N_DOCS, N_DOCS)
    assert jnp.allclose(s_ij, ref, atol=1e-6), "mismatch vs. reference (B=2)"

    # Second test: exercises batch tiling with a non-divisible last block
    # (B=50, TB=16 -> grid of 4 with a partial final block).
    B2 = 50
    r2 = jax.random.normal(k3, (B2, N_DOCS), dtype=jnp.float32)
    s_ij2 = jax.block_until_ready(
        ranknet_forward(r2, jnp.zeros((B2, N_DOCS), jnp.float32), tb=16))
    ref2 = r2[:, :, None] - r2[:, None, :]
    assert s_ij2.shape == (B2, N_DOCS, N_DOCS)
    assert jnp.allclose(s_ij2, ref2, atol=1e-6), "mismatch vs. reference (B=50)"

    # Third test: default tile path with >= 2 grid steps (B=64 -> tb=32, grid=2).
    B3 = 64
    r3 = jax.random.normal(k2, (B3, N_DOCS), dtype=jnp.float32)
    s_ij3 = jax.block_until_ready(
        ranknet_forward(r3, jnp.zeros((B3, N_DOCS), jnp.float32)))
    ref3 = r3[:, :, None] - r3[:, None, :]
    assert s_ij3.shape == (B3, N_DOCS, N_DOCS)
    assert jnp.allclose(s_ij3, ref3, atol=1e-6), "mismatch vs. reference (B=64)"

    print("KERNEL_OK")
</pallas_src>

<mosaic_0001>
module attributes {stable_mosaic.version = 11 : i64} {
  func.func @_s_ij_kernel(%arg0: i32, %arg1: memref<2x39xf32, #tpu.memory_space<vmem>>, %arg2: memref<39x1521xf32, #tpu.memory_space<vmem>>, %arg3: memref<2x1521xf32, #tpu.memory_space<vmem>>) attributes {dimension_semantics = [#tpu.dimension_semantics<parallel>], iteration_bounds = array<i64: 1>, scalar_prefetch = 0 : i64, scratch_operands = 0 : i64, tpu.core_type = #tpu.core_type<tc>, window_params = [{transform_indices = @transform_0, window_bounds = array<i64: 2, 39>}, {pipeline_mode = #tpu.pipeline_mode<synchronous>, transform_indices = @transform_1, window_bounds = array<i64: 39, 1521>}, {transform_indices = @transform_2, window_bounds = array<i64: 2, 1521>}]} {
    %c0 = arith.constant 0 : index
    %c0_0 = arith.constant 0 : index
    %0 = vector.load %arg1[%c0, %c0_0] : memref<2x39xf32, #tpu.memory_space<vmem>>, vector<2x39xf32>
    %c0_1 = arith.constant 0 : index
    %c0_2 = arith.constant 0 : index
    %1 = vector.load %arg2[%c0_1, %c0_2] : memref<39x1521xf32, #tpu.memory_space<vmem>>, vector<39x1521xf32>
    %cst = arith.constant dense<0.000000e+00> : vector<2x1521xf32>
    %2 = tpu.matmul %0, %1, %cst {dimension_numbers = #tpu.dot_dimension_numbers<[1], [0], [0], [1], [0, 0, 1, 1], [], []>, precision = #tpu.contract_precision<fp32>} : vector<2x39xf32>, vector<39x1521xf32>, vector<2x1521xf32> -> vector<2x1521xf32>
    %c0_3 = arith.constant 0 : index
    %c0_4 = arith.constant 0 : index
    %3 = vector.load %arg3[%c0_3, %c0_4] : memref<2x1521xf32, #tpu.memory_space<vmem>>, vector<2x1521xf32>
    tpu.vector_store %arg3[%c0_3, %c0_4], %2 {strides = array<i32>} : memref<2x1521xf32, #tpu.memory_space<vmem>>, vector<2x1521xf32>,
    return
  }
  func.func @transform_0(%arg0: i32) -> (i32, i32) {
    %c0_i32 = arith.constant 0 : i32
    %c0_i32_0 = arith.constant 0 : i32
    return %arg0, %c0_i32 : i32, i32
  }
  func.func @transform_1(%arg0: i32) -> (i32, i32) {
    %c0_i32 = arith.constant 0 : i32
    %c0_i32_0 = arith.constant 0 : i32
    %c0_i32_1 = arith.constant 0 : i32
    return %c0_i32, %c0_i32_0 : i32, i32
  }
  func.func @transform_2(%arg0: i32) -> (i32, i32) {
    %c0_i32 = arith.constant 0 : i32
    %c0_i32_0 = arith.constant 0 : i32
    return %arg0, %c0_i32 : i32, i32
  }
}

</mosaic_0001>

<llo_original>
// kernel: tpu_custom_call.1
$region0: #{tpu_custom_call.1}
  #allocation0 [shape = 'u32[]', space=smem, size = 0x4, offset = 0x4, fixed_abs, tag = 'smem constant byte address 0x4 - core index']
  #allocation1 [shape = 'u32[144,128]{1,0:T(1,128)}', space=vmem, size = 0x12000, scoped, tag = 'internal scratch']
  %s0 = inlined_call_operand.hbm [shape: f32[2,39], index: 0, kind: input, shape index: {}]
  %s1 = inlined_call_operand.hbm [shape: f32[39,1521], index: 1, kind: input, shape index: {}]
  %s2 = inlined_call_operand.hbm [shape: f32[2,1521], index: 2, kind: output, shape index: {}]
  %s3 = sld [smem:[#allocation0]]
  $region26: #{tpu_custom_call.1} parent=0
    _
  %s5 = ssub.s32 1, %s3
  %s6 = scalar_select 0, %s5, %s3
  $region1: #{tpu_custom_call.1} parent=0
    #allocation2 [shape = 'u8[1024]{0}', space=vmem, size = 0x400, scoped, tag = 'input window, operand 0, single buffered']
    #allocation3 [shape = 's32[1]{0}', space=sflag, size = 0x4, scoped, tag = 'scoped memory for tpu_custom_call.1']
    #allocation4 [shape = 's32[1]{0}', space=sflag, size = 0x4, scoped, tag = 'scoped memory for tpu_custom_call.1']
    #allocation5 [shape = 'u8[245760]{0}', space=vmem, size = 0x3c000, scoped, tag = 'input window, operand 1, single buffered']
    #allocation6 [shape = 's32[1]{0}', space=sflag, size = 0x4, scoped, tag = 'scoped memory for tpu_custom_call.1']
    #allocation7 [shape = 'u8[12288]{0}', space=vmem, size = 0x3000, scoped, tag = 'output window, operand 0, single buffered']
    %7 = vsyncpa [#allocation3], 0
    %8 = vsyncpa [#allocation6], 0
    %9 = vsyncpa [#allocation4], 0
    // Predicated region
    $region2: #{tpu_custom_call.1} parent=1 // pred_check
      _
    $region3: #{tpu_custom_call.1} parent=1 // pred_check_branch
      %11 = sbr.rel (0) target = $region5
    $region4: #{tpu_custom_call.1} parent=1 // pred_region
      %s13 = ssub.s32 32, 32
      %14 = vsyncadd [#allocation3], %s13
      %s16 = sshll.u32 [#allocation2], 4
      %s17 = int_to_ptr.vmem [resolvable:$true] %s16
      %19 = dma.hbm_to_vmem [thread:$0]  %s0, 32, %s17, [#allocation3]
    $region5: #{tpu_custom_call.1} parent=1 // pred_fallthru
      _
    // Predicated region
    $region6: #{tpu_custom_call.1} parent=1 // pred_check
      _
    $region7: #{tpu_custom_call.1} parent=1 // pred_check_branch
      %21 = sbr.rel (0) target = $region9
    $region8: #{tpu_custom_call.1} parent=1 // pred_region
      %s23 = ssub.s32 7680, 7680
      %24 = vsyncadd [#allocation6], %s23
      %s25 = sshll.u32 [#allocation5], 4
      %s26 = int_to_ptr.vmem [resolvable:$true] %s25
      %31 = dma.hbm_to_vmem [thread:$0]  %s1, 7680, %s26, [#allocation6], 1536, 1536, 96
    $region9: #{tpu_custom_call.1} parent=1 // pred_fallthru
      _
    // Predicated region
    $region10: #{tpu_custom_call.1} parent=1 // pred_check
      _
    $region11: #{tpu_custom_call.1} parent=1 // pred_check_branch
      %33 = sbr.rel (0) target = $region13
    $region12: #{tpu_custom_call.1} parent=1 // pred_region
      %34 = dma.done [#allocation3], 32
    $region13: #{tpu_custom_call.1} parent=1 // pred_fallthru
      _
    // Predicated region
    $region14: #{tpu_custom_call.1} parent=1 // pred_check
      _
    $region15: #{tpu_custom_call.1} parent=1 // pred_check_branch
      %36 = sbr.rel (0) target = $region17
    $region16: #{tpu_custom_call.1} parent=1 // pred_region
      %37 = dma.done [#allocation6], 7680
    $region17: #{tpu_custom_call.1} parent=1 // pred_fallthru
      _
    %v38 = vld [vmem:[#allocation2] sm:$0x3]
    %v39 = vld [vmem:[#allocation5] sm:$0xff]
    %v40 = vld [vmem:[#allocation5 + $0x8] sm:$0xff]
    %v41 = vld [vmem:[#allocation5 + $0x10] sm:$0xff]
    %v42 = vld [vmem:[#allocation5 + $0x18] sm:$0xff]
    %v43 = vld [vmem:[#allocation5 + $0x20] sm:$0xff]
    %v44 = vld [vmem:[#allocation5 + $0x28] sm:$0xff]
    %v45 = vld [vmem:[#allocation5 + $0x30] sm:$0xff]
    %v46 = vld [vmem:[#allocation5 + $0x38] sm:$0xff]
    %v47 = vld [vmem:[#allocation5 + $0x40] sm:$0xff]
    %v48 = vld [vmem:[#allocation5 + $0x48] sm:$0xff]
    %v49 = vld [vmem:[#allocation5 + $0x50] sm:$0xff]
    %v50 = vld [vmem:[#allocation5 + $0x58] sm:$0xff]
    %v51 = vld [vmem:[#allocation5 + $0x60] sm:$0xff]
    %v52 = vld [vmem:[#allocation5 + $0x68] sm:$0xff]
    %v53 = vld [vmem:[#allocation5 + $0x70] sm:$0xff]
    %v54 = vld [vmem:[#allocation5 + $0x78] sm:$0xff]
    %v55 = vld [vmem:[#allocation5 + $0x80] sm:$0xff]
    %v56 = vld [vmem:[#allocation5 + $0x88] sm:$0xff]
    %v57 = vld [vmem:[#allocation5 + $0x90] sm:$0xff]
    %v58 = vld [vmem:[#allocation5 + $0x98] sm:$0xff]
    %v59 = vld [vmem:[#allocation5 + $0xa0] sm:$0xff]
    %v60 = vld [vmem:[#allocation5 + $0xa8] sm:$0xff]
    %v61 = vld [vmem:[#allocation5 + $0xb0] sm:$0xff]
    %v62 = vld [vmem:[#allocation5 + $0xb8] sm:$0xff]
    %v63 = vld [vmem:[#allocation5 + $0xc0] sm:$0xff]
    %v64 = vld [vmem:[#allocation5 + $0xc8] sm:$0xff]
    %v65 = vld [vmem:[#allocation5 + $0xd0] sm:$0xff]
    %v66 = vld [vmem:[#allocation5 + $0xd8] sm:$0xff]
    %v67 = vld [vmem:[#allocation5 + $0xe0] sm:$0xff]
    %v68 = vld [vmem:[#allocation5 + $0xe8] sm:$0xff]
    %v69 = vld [vmem:[#allocation5 + $0xf0] sm:$0xff]
    %v70 = vld [vmem:[#allocation5 + $0xf8] sm:$0xff]
    %v71 = vld [vmem:[#allocation5 + $0x100] sm:$0xff]
    %v72 = vld [vmem:[#allocation5 + $0x108] sm:$0xff]
    %v73 = vld [vmem:[#allocation5 + $0x110] sm:$0xff]
    %v74 = vld [vmem:[#allocation5 + $0x118] sm:$0xff]
    %v75 = vld [vmem:[#allocation5 + $0x120] sm:$0xff]
    %v76 = vld [vmem:[#allocation5 + $0x128] sm:$0xff]
    %v77 = vld [vmem:[#allocation5 + $0x130] sm:$0xff]
    %v78 = vld [vmem:[#allocation5 + $0x138] sm:$0xff]
    %v79 = vld [vmem:[#allocation5 + $0x140] sm:$0xff]
    %v80 = vld [vmem:[#allocation5 + $0x148] sm:$0xff]
    %v81 = vld [vmem:[#allocation5 + $0x150] sm:$0xff]
    %v82 = vld [vmem:[#allocation5 + $0x158] sm:$0xff]
    %v83 = vld [vmem:[#allocation5 + $0x160] sm:$0xff]
    %v84 = vld [vmem:[#allocation5 + $0x168] sm:$0xff]
    %v85 = vld [vmem:[#allocation5 + $0x170] sm:$0xff]
    %v86 = vld [vmem:[#allocation5 + $0x178] sm:$0xff]
    %v87 = vld [vmem:[#allocation5 + $0x180] sm:$0x7f]
    %v88 = vld [vmem:[#allocation5 + $0x188] sm:$0x7f]
    %v89 = vld [vmem:[#allocation5 + $0x190] sm:$0x7f]
    %v90 = vld [vmem:[#allocation5 + $0x198] sm:$0x7f]
    %v91 = vld [vmem:[#allocation5 + $0x1a0] sm:$0x7f]
    %v92 = vld [vmem:[#allocation5 + $0x1a8] sm:$0x7f]
    %v93 = vld [vmem:[#allocation5 + $0x1b0] sm:$0x7f]
    %v94 = vld [vmem:[#allocation5 + $0x1b8] sm:$0x7f]
    %v95 = vld [vmem:[#allocation5 + $0x1c0] sm:$0x7f]
    %v96 = vld [vmem:[#allocation5 + $0x1c8] sm:$0x7f]
    %v97 = vld [vmem:[#allocation5 + $0x1d0] sm:$0x7f]
    %v98 = vld [vmem:[#allocation5 + $0x1d8] sm:$0x7f]
    %vm99 = vcmask 318464
    %v101 = vsel %vm99, %v38, 0
    %vm103 = vcmask 1046528
    %v105 = vsel %vm103, %v87, 0
    %v108 = vsel %vm103, %v88, 0
    %v111 = vsel %vm103, %v89, 0
    %v114 = vsel %vm103, %v90, 0
    %v117 = vsel %vm103, %v91, 0
    %v120 = vsel %vm103, %v92, 0
    %v123 = vsel %vm103, %v93, 0
    %v126 = vsel %vm103, %v94, 0
    %v129 = vsel %vm103, %v95, 0
    %v132 = vsel %vm103, %v96, 0
    %v135 = vsel %vm103, %v97, 0
    %v138 = vsel %vm103, %v98, 0
    %140 = vmatprep.subr.mxu0 0.0
    %141 = vmatpush1.msra.mxu0 0.0
    %142 = vmatprep.subr.mxu0 0.0
    %143 = vmatpush1.msra.mxu0 0.0
    %144 = vmatprep.subr.mxu0 0.0
    %145 = vmatpush1.msra.mxu0 0.0
    %146 = vmatprep.subr.mxu0 0.0
    %147 = vmatpush1.msra.mxu0 0.0
    %148 = vmatprep.subr.mxu0 0.0
    %149 = vmatpush1.msra.mxu0 0.0
    %150 = vmatprep.subr.mxu0 0.0
    %151 = vmatpush1.msra.mxu0 0.0
    %152 = vmatprep.subr.mxu0 0.0
    %153 = vmatpush1.msra.mxu0 0.0
    %154 = vmatprep.subr.mxu0 0.0
    %155 = vmatpush1.msra.mxu0 0.0
    %156 = vmatprep.subr.mxu0 0.0
    %157 = vmatpush1.msra.mxu0 0.0
    %158 = vmatprep.subr.mxu0 0.0
    %159 = vmatpush1.msra.mxu0 0.0
    %160 = vmatprep.subr.mxu0 0.0
    %161 = vmatpush1.msra.mxu0 0.0
    %v162 = vand.u32 %v108, 4294901760
    %163 = vmatprep.subr.mxu0 %v162
    %v164 = vand.u32 %v105, 4294901760
    %165 = vmatpush1.msra.mxu0 %v164
    %v166 = vand.u32 %v76, 4294901760
    %167 = vmatprep.subr.mxu0 %v166
    %v168 = vand.u32 %v75, 4294901760
    %169 = vmatpush1.msra.mxu0 %v168
    %v170 = vand.u32 %v64, 4294901760
    %171 = vmatprep.subr.mxu0 %v170
    %v172 = vand.u32 %v63, 4294901760
    %173 = vmatpush1.msra.mxu0 %v172
    %v174 = vand.u32 %v52, 4294901760
    %175 = vmatprep.subr.mxu0 %v174
    %v176 = vand.u32 %v51, 4294901760
    %177 = vmatpush1.msra.mxu0 %v176
    %v178 = vand.u32 %v40, 4294901760
    %179 = vmatprep.subr.mxu0 %v178
    %v180 = vand.u32 %v39, 4294901760
    %181 = vmatpush1.msra.mxu0 %v180
    %182 = vmatprep.subr.mxu0 0.0
    %183 = vmatpush2.msra.mxu0 0.0
    %184 = vmatprep.subr.mxu0 0.0
    %185 = vmatpush2.msra.mxu0 0.0
    %186 = vmatprep.subr.mxu0 0.0
    %187 = vmatpush2.msra.mxu0 0.0
    %188 = vmatprep.subr.mxu0 0.0
    %189 = vmatpush2.msra.mxu0 0.0
    %190 = vmatprep.subr.mxu0 0.0
    %191 = vmatpush2.msra.mxu0 0.0
    %192 = vmatprep.subr.mxu0 0.0
    %193 = vmatpush2.msra.mxu0 0.0
    %194 = vmatprep.subr.mxu0 0.0
    %195 = vmatpush2.msra.mxu0 0.0
    %196 = vmatprep.subr.mxu0 0.0
    %197 = vmatpush2.msra.mxu0 0.0
    %198 = vmatprep.subr.mxu0 0.0
    %199 = vmatpush2.msra.mxu0 0.0
    %200 = vmatprep.subr.mxu0 0.0
    %201 = vmatpush2.msra.mxu0 0.0
    %202 = vmatprep.subr.mxu0 0.0
    %203 = vmatpush2.msra.mxu0 0.0
    %204 = vmatprep.subr.mxu0 0.0
    %205 = vmatpush2.msra.mxu0 0.0
    %206 = vmatprep.subr.mxu0 0.0
    %207 = vmatpush2.msra.mxu0 0.0
    %208 = vmatprep.subr.mxu0 0.0
    %209 = vmatpush2.msra.mxu0 0.0
    %210 = vmatprep.subr.mxu0 0.0
    %211 = vmatpush2.msra.mxu0 0.0
    %212 = vmatprep.subr.mxu0 0.0
    %213 = vmatpush2.msra.mxu0 0.0
    %214 = vmatprep.mubr.f32.mxu0 0.0
    %v215 = vand.u32 %v101, 4294901760
    %v216 = vsub.f32 %v101, %v215
    %v217 = vand.u32 %v216, 4294901760
    %v218 = vsub.f32 %v216, %v217
    %v219 = vand.u32 %v218, 4294901760
    %220 = vmatmul.mubr.f32.gmra.mxu0 %v219
    %v221 = vpop.f32.mrf.mxu0
    %v222 = vadd.f32 0.0, %v221
    %v223 = vpop.f32.mrf.mxu0
    %v224 = vadd.f32 0.0, %v223
    %225 = vdwg.mxu0
    %226 = vmatprep.subr.mxu0 0.0
    %227 = vmatpush1.msra.mxu0 0.0
    %228 = vmatprep.subr.mxu0 0.0
    %229 = vmatpush1.msra.mxu0 0.0
    %230 = vmatprep.subr.mxu0 0.0
    %231 = vmatpush1.msra.mxu0 0.0
    %232 = vmatprep.subr.mxu0 0.0
    %233 = vmatpush1.msra.mxu0 0.0
    %234 = vmatprep.subr.mxu0 0.0
    %235 = vmatpush1.msra.mxu0 0.0
    %236 = vmatprep.subr.mxu0 0.0
    %237 = vmatpush1.msra.mxu0 0.0
    %238 = vmatprep.subr.mxu0 0.0
    %239 = vmatpush1.msra.mxu0 0.0
    %240 = vmatprep.subr.mxu0 0.0
    %241 = vmatpush1.msra.mxu0 0.0
    %242 = vmatprep.subr.mxu0 0.0
    %243 = vmatpush1.msra.mxu0 0.0
    %244 = vmatprep.subr.mxu0 0.0
    %245 = vmatpush1.msra.mxu0 0.0
    %246 = vmatprep.subr.mxu0 0.0
    %247 = vmatpush1.msra.mxu0 0.0
    %v248 = vand.u32 %v108, 4294901760
    %v249 = vsub.f32 %v108, %v248
    %v250 = vand.u32 %v249, 4294901760
    %v251 = vsub.f32 %v249, %v250
    %v252 = vand.u32 %v251, 4294901760
    %253 = vmatprep.subr.mxu0 %v252
    %v254 = vand.u32 %v105, 4294901760
    %v255 = vsub.f32 %v105, %v254
    %v256 = vand.u32 %v255, 4294901760
    %v257 = vsub.f32 %v255, %v256
    %v258 = vand.u32 %v257, 4294901760
    %259 = vmatpush1.msra.mxu0 %v258
    %v260 = vand.u32 %v76, 4294901760
    %v261 = vsub.f32 %v76, %v260
    %v262 = vand.u32 %v261, 4294901760
    %v263 = vsub.f32 %v261, %v262
    %v264 = vand.u32 %v263, 4294901760
    %265 = vmatprep.subr.mxu0 %v264
    %v266 = vand.u32 %v75, 4294901760
    %v267 = vsub.f32 %v75, %v266
    %v268 = vand.u32 %v267, 4294901760
    %v269 = vsub.f32 %v267, %v268
    %v270 = vand.u32 %v269, 4294901760
    %271 = vmatpush1.msra.mxu0 %v270
    %v272 = vand.u32 %v64, 4294901760
    %v273 = vsub.f32 %v64, %v272
    %v274 = vand.u32 %v273, 4294901760
    %v275 = vsub.f32 %v273, %v274
    %v276 = vand.u32 %v275, 4294901760
    %277 = vmatprep.subr.mxu0 %v276
    %v278 = vand.u32 %v63, 4294901760
    %v279 = vsub.f32 %v63, %v278
    %v280 = vand.u32 %v279, 4294901760
    %v281 = vsub.f32 %v279, %v280
    %v282 = vand.u32 %v281, 4294901760
    %283 = vmatpush1.msra.mxu0 %v282
    %v284 = vand.u32 %v52, 4294901760
    %v285 = vsub.f32 %v52, %v284
    %v286 = vand.u32 %v285, 4294901760
    %v287 = vsub.f32 %v285, %v286
    %v288 = vand.u32 %v287, 4294901760
    %289 = vmatprep.subr.mxu0 %v288
    %v290 = vand.u32 %v51, 4294901760
    %v291 = vsub.f32 %v51, %v290
    %v292 = vand.u32 %v291, 4294901760
    %v293 = vsub.f32 %v291, %v292
    %v294 = vand.u32 %v293, 4294901760
    %295 = vmatpush1.msra.mxu0 %v294
    %v296 = vand.u32 %v40, 4294901760
    %v297 = vsub.f32 %v40, %v296
    %v298 = vand.u32 %v297, 4294901760
    %v299 = vsub.f32 %v297, %v298
    %v300 = vand.u32 %v299, 4294901760
    %301 = vmatprep.subr.mxu0 %v300
    %v302 = vand.u32 %v39, 4294901760
    %v303 = vsub.f32 %v39, %v302
    %v304 = vand.u32 %v303, 4294901760
    %v305 = vsub.f32 %v303, %v304
    %v306 = vand.u32 %v305, 4294901760
    %307 = vmatpush1.msra.mxu0 %v306
    %308 = vmatprep.subr.mxu0 0.0
    %309 = vmatpush2.msra.mxu0 0.0
    %310 = vmatprep.subr.mxu0 0.0
    %311 = vmatpush2.msra.mxu0 0.0
    %312 = vmatprep.subr.mxu0 0.0
    %313 = vmatpush2.msra.mxu0 0.0
    %314 = vmatprep.subr.mxu0 0.0
    %315 = vmatpush2.msra.mxu0 0.0
    %316 = vmatprep.subr.mxu0 0.0
    %317 = vmatpush2.msra.mxu0 0.0
    %318 = vmatprep.subr.mxu0 0.0
    %319 = vmatpush2.msra.mxu0 0.0
    %320 = vmatprep.subr.mxu0 0.0
    %321 = vmatpush2.msra.mxu0 0.0
    %322 = vmatprep.subr.mxu0 0.0
    %323 = vmatpush2.msra.mxu0 0.0
    %324 = vmatprep.subr.mxu0 0.0
    %325 = vmatpush2.msra.mxu0 0.0
    %326 = vmatprep.subr.mxu0 0.0
    %327 = vmatpush2.msra.mxu0 0.0
    %328 = vmatprep.subr.mxu0 0.0
    %329 = vmatpush2.msra.mxu0 0.0
    %330 = vmatprep.subr.mxu0 0.0
    %331 = vmatpush2.msra.mxu0 0.0
    %332 = vmatprep.subr.mxu0 0.0
    %333 = vmatpush2.msra.mxu0 0.0
    %334 = vmatprep.subr.mxu0 0.0
    %335 = vmatpush2.msra.mxu0 0.0
    %336 = vmatprep.subr.mxu0 0.0
    %337 = vmatpush2.msra.mxu0 0.0
    %338 = vmatprep.subr.mxu0 0.0
    %339 = vmatpush2.msra.mxu0 0.0
    %340 = vmatprep.mubr.f32.mxu0 0.0
    %v341 = vand.u32 %v101, 4294901760
    %342 = vmatmul.mubr.f32.gmra.mxu0 %v341
    %v343 = vpop.f32.mrf.mxu0
    %v344 = vadd.f32 %v222, %v343
    %v345 = vpop.f32.mrf.mxu0
    %v346 = vadd.f32 %v224, %v345
    %347 = vdwg.mxu0
    %348 = vmatprep.subr.mxu0 0.0
    %349 = vmatpush1.msra.mxu0 0.0
    %350 = vmatprep.subr.mxu0 0.0
    %351 = vmatpush1.msra.mxu0 0.0
    %352 = vmatprep.subr.mxu0 0.0
    %353 = vmatpush1.msra.mxu0 0.0
    %354 = vmatprep.subr.mxu0 0.0
    %355 = vmatpush1.msra.mxu0 0.0
    %356 = vmatprep.subr.mxu0 0.0
    %357 = vmatpush1.msra.mxu0 0.0
    %358 = vmatprep.subr.mxu0 0.0
    %359 = vmatpush1.msra.mxu0 0.0
    %360 = vmatprep.subr.mxu0 0.0
    %361 = vmatpush1.msra.mxu0 0.0
    %362 = vmatprep.subr.mxu0 0.0
    %363 = vmatpush1.msra.mxu0 0.0
    %364 = vmatprep.subr.mxu0 0.0
    %365 = vmatpush1.msra.mxu0 0.0
    %366 = vmatprep.subr.mxu0 0.0
    %367 = vmatpush1.msra.mxu0 0.0
    %368 = vmatprep.subr.mxu0 0.0
    %369 = vmatpush1.msra.mxu0 0.0
    %v370 = vand.u32 %v108, 4294901760
    %v371 = vsub.f32 %v108, %v370
    %372 = vmatprep.subr.mxu0 %v371
    %v373 = vand.u32 %v105, 4294901760
    %v374 = vsub.f32 %v105, %v373
    %375 = vmatpush1.msra.mxu0 %v374
    %v376 = vand.u32 %v76, 4294901760
    %v377 = vsub.f32 %v76, %v376
    %378 = vmatprep.subr.mxu0 %v377
    %v379 = vand.u32 %v75, 4294901760
    %v380 = vsub.f32 %v75, %v379
    %381 = vmatpush1.msra.mxu0 %v380
    %v382 = vand.u32 %v64, 4294901760
    %v383 = vsub.f32 %v64, %v382
    %384 = vmatprep.subr.mxu0 %v383
    %v385 = vand.u32 %v63, 4294901760
    %v386 = vsub.f32 %v63, %v385
    %387 = vmatpush1.msra.mxu0 %v386
    %v388 = vand.u32 %v52, 4294901760
    %v389 = vsub.f32 %v52, %v388
    %390 = vmatprep.subr.mxu0 %v389
    %v391 = vand.u32 %v51, 4294901760
    %v392 = vsub.f32 %v51, %v391
    %393 = vmatpush1.msra.mxu0 %v392
    %v394 = vand.u32 %v40, 4294901760
    %v395 = vsub.f32 %v40, %v394
    %396 = vmatprep.subr.mxu0 %v395
    %v397 = vand.u32 %v39, 4294901760
    %v398 = vsub.f32 %v39, %v397
    %399 = vmatpush1.msra.mxu0 %v398
    %400 = vmatprep.subr.mxu0 0.0
    %401 = vmatpush2.msra.mxu0 0.0
    %402 = vmatprep.subr.mxu0 0.0
    %403 = vmatpush2.msra.mxu0 0.0
    %404 = vmatprep.subr.mxu0 0.0
    %405 = vmatpush2.msra.mxu0 0.0
    %406 = vmatprep.subr.mxu0 0.0
    %407 = vmatpush2.msra.mxu0 0.0
    %408 = vmatprep.subr.mxu0 0.0
    %409 = vmatpush2.msra.mxu0 0.0
    %410 = vmatprep.subr.mxu0 0.0
    %411 = vmatpush2.msra.mxu0 0.0
    %412 = vmatprep.subr.mxu0 0.0
    %413 = vmatpush2.msra.mxu0 0.0
    %414 = vmatprep.subr.mxu0 0.0
    %415 = vmatpush2.msra.mxu0 0.0
    %416 = vmatprep.subr.mxu0 0.0
    %417 = vmatpush2.msra.mxu0 0.0
    %418 = vmatprep.subr.mxu0 0.0
    %419 = vmatpush2.msra.mxu0 0.0
    %420 = vmatprep.subr.mxu0 0.0
    %421 = vmatpush2.msra.mxu0 0.0
    %422 = vmatprep.subr.mxu0 0.0
    %423 = vmatpush2.msra.mxu0 0.0
    %424 = vmatprep.subr.mxu0 0.0
    %425 = vmatpush2.msra.mxu0 0.0
    %426 = vmatprep.subr.mxu0 0.0
    %427 = vmatpush2.msra.mxu0 0.0
    %428 = vmatprep.subr.mxu0 0.0
    %429 = vmatpush2.msra.mxu0 0.0
    %430 = vmatprep.subr.mxu0 0.0
    %431 = vmatpush2.msra.mxu0 0.0
    %432 = vmatprep.mubr.f32.mxu0 0.0
    %v433 = vand.u32 %v101, 4294901760
    %v434 = vsub.f32 %v101, %v433
    %435 = vmatmul.mubr.f32.gmra.mxu0 %v434
    %v436 = vpop.f32.mrf.mxu0
    %v437 = vadd.f32 %v344, %v436
    %v438 = vpop.f32.mrf.mxu0
    %v439 = vadd.f32 %v346, %v438
    %440 = vdwg.mxu0
    %441 = vmatprep.subr.mxu0 0.0
    %442 = vmatpush1.msra.mxu0 0.0
    %443 = vmatprep.subr.mxu0 0.0
    %444 = vmatpush1.msra.mxu0 0.0
    %445 = vmatprep.subr.mxu0 0.0
    %446 = vmatpush1.msra.mxu0 0.0
    %447 = vmatprep.subr.mxu0 0.0
    %448 = vmatpush1.msra.mxu0 0.0
    %449 = vmatprep.subr.mxu0 0.0
    %450 = vmatpush1.msra.mxu0 0.0
    %451 = vmatprep.subr.mxu0 0.0
    %452 = vmatpush1.msra.mxu0 0.0
    %453 = vmatprep.subr.mxu0 0.0
    %454 = vmatpush1.msra.mxu0 0.0
    %455 = vmatprep.subr.mxu0 0.0
    %456 = vmatpush1.msra.mxu0 0.0
    %457 = vmatprep.subr.mxu0 0.0
    %458 = vmatpush1.msra.mxu0 0.0
    %459 = vmatprep.subr.mxu0 0.0
    %460 = vmatpush1.msra.mxu0 0.0
    %461 = vmatprep.subr.mxu0 0.0
    %462 = vmatpush1.msra.mxu0 0.0
    %v463 = vand.u32 %v108, 4294901760
    %464 = vmatprep.subr.mxu0 %v463
    %v465 = vand.u32 %v105, 4294901760
    %466 = vmatpush1.msra.mxu0 %v465
    %v467 = vand.u32 %v76, 4294901760
    %468 = vmatprep.subr.mxu0 %v467
    %v469 = vand.u32 %v75, 4294901760
    %470 = vmatpush1.msra.mxu0 %v469
    %v471 = vand.u32 %v64, 4294901760
    %472 = vmatprep.subr.mxu0 %v471
    %v473 = vand.u32 %v63, 4294901760
    %474 = vmatpush1.msra.mxu0 %v473
    %v475 = vand.u32 %v52, 4294901760
    %476 = vmatprep.subr.mxu0 %v475
    %v477 = vand.u32 %v51, 4294901760
    %478 = vmatpush1.msra.mxu0 %v477
    %v479 = vand.u32 %v40, 4294901760
    %480 = vmatprep.subr.mxu0 %v479
    %v481 = vand.u32 %v39, 4294901760
    %482 = vmatpush1.msra.mxu0 %v481
    %483 = vmatprep.subr.mxu0 0.0
    %484 = vmatpush2.msra.mxu0 0.0
    %485 = vmatprep.subr.mxu0 0.0
    %486 = vmatpush2.msra.mxu0 0.0
    %487 = vmatprep.subr.mxu0 0.0
    %488 = vmatpush2.msra.mxu0 0.0
    %489 = vmatprep.subr.mxu0 0.0
    %490 = vmatpush2.msra.mxu0 0.0
    %491 = vmatprep.subr.mxu0 0.0
    %492 = vmatpush2.msra.mxu0 0.0
    %493 = vmatprep.subr.mxu0 0.0
    %494 = vmatpush2.msra.mxu0 0.0
    %495 = vmatprep.subr.mxu0 0.0
    %496 = vmatpush2.msra.mxu0 0.0
    %497 = vmatprep.subr.mxu0 0.0
    %498 = vmatpush2.msra.mxu0 0.0
    %499 = vmatprep.subr.mxu0 0.0
    %500 = vmatpush2.msra.mxu0 0.0
    %501 = vmatprep.subr.mxu0 0.0
    %502 = vmatpush2.msra.mxu0 0.0
    %503 = vmatprep.subr.mxu0 0.0
    %504 = vmatpush2.msra.mxu0 0.0
    %505 = vmatprep.subr.mxu0 0.0
    %506 = vmatpush2.msra.mxu0 0.0
    %507 = vmatprep.subr.mxu0 0.0
    %508 = vmatpush2.msra.mxu0 0.0
    %509 = vmatprep.subr.mxu0 0.0
    %510 = vmatpush2.msra.mxu0 0.0
    %511 = vmatprep.subr.mxu0 0.0
    %512 = vmatpush2.msra.mxu0 0.0
    %513 = vmatprep.subr.mxu0 0.0
    %514 = vmatpush2.msra.mxu0 0.0
    %515 = vmatprep.mubr.f32.mxu0 0.0
    %v516 = vand.u32 %v101, 4294901760
    %v517 = vsub.f32 %v101, %v516
    %v518 = vand.u32 %v517, 4294901760
    %519 = vmatmul.mubr.f32.gmra.mxu0 %v518
    %v520 = vpop.f32.mrf.mxu0
    %v521 = vadd.f32 %v437, %v520
    %v522 = vpop.f32.mrf.mxu0
    %v523 = vadd.f32 %v439, %v522
    %524 = vdwg.mxu0
    %525 = vmatprep.subr.mxu0 0.0
    %526 = vmatpush1.msra.mxu0 0.0
    %527 = vmatprep.subr.mxu0 0.0
    %528 = vmatpush1.msra.mxu0 0.0
    %529 = vmatprep.subr.mxu0 0.0
    %530 = vmatpush1.msra.mxu0 0.0
    %531 = vmatprep.subr.mxu0 0.0
    %532 = vmatpush1.msra.mxu0 0.0
    %533 = vmatprep.subr.mxu0 0.0
    %534 = vmatpush1.msra.mxu0 0.0
    %535 = vmatprep.subr.mxu0 0.0
    %536 = vmatpush1.msra.mxu0 0.0
    %537 = vmatprep.subr.mxu0 0.0
    %538 = vmatpush1.msra.mxu0 0.0
    %539 = vmatprep.subr.mxu0 0.0
    %540 = vmatpush1.msra.mxu0 0.0
    %541 = vmatprep.subr.mxu0 0.0
    %542 = vmatpush1.msra.mxu0 0.0
    %543 = vmatprep.subr.mxu0 0.0
    %544 = vmatpush1.msra.mxu0 0.0
    %545 = vmatprep.subr.mxu0 0.0
    %546 = vmatpush1.msra.mxu0 0.0
    %v547 = vand.u32 %v108, 4294901760
    %v548 = vsub.f32 %v108, %v547
    %v549 = vand.u32 %v548, 4294901760
    %550 = vmatprep.subr.mxu0 %v549
    %v551 = vand.u32 %v105, 4294901760
    %v552 = vsub.f32 %v105, %v551
    %v553 = vand.u32 %v552, 4294901760
    %554 = vmatpush1.msra.mxu0 %v553
    %v555 = vand.u32 %v76, 4294901760
    %v556 = vsub.f32 %v76, %v555
    %v557 = vand.u32 %v556, 4294901760
    %558 = vmatprep.subr.mxu0 %v557
    %v559 = vand.u32 %v75, 4294901760
    %v560 = vsub.f32 %v75, %v559
    %v561 = vand.u32 %v560, 4294901760
    %562 = vmatpush1.msra.mxu0 %v561
    %v563 = vand.u32 %v64, 4294901760
    %v564 = vsub.f32 %v64, %v563
    %v565 = vand.u32 %v564, 4294901760
    %566 = vmatprep.subr.mxu0 %v565
    %v567 = vand.u32 %v63, 4294901760
    %v568 = vsub.f32 %v63, %v567
    %v569 = vand.u32 %v568, 4294901760
    %570 = vmatpush1.msra.mxu0 %v569
    %v571 = vand.u32 %v52, 4294901760
    %v572 = vsub.f32 %v52, %v571
    %v573 = vand.u32 %v572, 4294901760
    %574 = vmatprep.subr.mxu0 %v573
    %v575 = vand.u32 %v51, 4294901760
    %v576 = vsub.f32 %v51, %v575
    %v577 = vand.u32 %v576, 4294901760
    %578 = vmatpush1.msra.mxu0 %v577
    %v579 = vand.u32 %v40, 4294901760
    %v580 = vsub.f32 %v40, %v579
    %v581 = vand.u32 %v580, 4294901760
    %582 = vmatprep.subr.mxu0 %v581
    %v583 = vand.u32 %v39, 4294901760
    %v584 = vsub.f32 %v39, %v583
    %v585 = vand.u32 %v584, 4294901760
    %586 = vmatpush1.msra.mxu0 %v585
    %587 = vmatprep.subr.mxu0 0.0
    %588 = vmatpush2.msra.mxu0 0.0
    %589 = vmatprep.subr.mxu0 0.0
    %590 = vmatpush2.msra.mxu0 0.0
    %591 = vmatprep.subr.mxu0 0.0
    %592 = vmatpush2.msra.mxu0 0.0
    %593 = vmatprep.subr.mxu0 0.0
    %594 = vmatpush2.msra.mxu0 0.0
    %595 = vmatprep.subr.mxu0 0.0
    %596 = vmatpush2.msra.mxu0 0.0
    %597 = vmatprep.subr.mxu0 0.0
    %598 = vmatpush2.msra.mxu0 0.0
    %599 = vmatprep.subr.mxu0 0.0
    %600 = vmatpush2.msra.mxu0 0.0
    %601 = vmatprep.subr.mxu0 0.0
    %602 = vmatpush2.msra.mxu0 0.0
    %603 = vmatprep.subr.mxu0 0.0
    %604 = vmatpush2.msra.mxu0 0.0
    %605 = vmatprep.subr.mxu0 0.0
    %606 = vmatpush2.msra.mxu0 0.0
    %607 = vmatprep.subr.mxu0 0.0
    %608 = vmatpush2.msra.mxu0 0.0
    %609 = vmatprep.subr.mxu0 0.0
    %610 = vmatpush2.msra.mxu0 0.0
    %611 = vmatprep.subr.mxu0 0.0
    %612 = vmatpush2.msra.mxu0 0.0
    %613 = vmatprep.subr.mxu0 0.0
    %614 = vmatpush2.msra.mxu0 0.0
    %615 = vmatprep.subr.mxu0 0.0
    %616 = vmatpush2.msra.mxu0 0.0
    %617 = vmatprep.subr.mxu0 0.0
    %618 = vmatpush2.msra.mxu0 0.0
    %619 = vmatprep.mubr.f32.mxu0 0.0
    %v620 = vand.u32 %v101, 4294901760
    %621 = vmatmul.mubr.f32.gmra.mxu0 %v620
    %v622 = vpop.f32.mrf.mxu0
    %v623 = vadd.f32 %v521, %v622
    %v624 = vpop.f32.mrf.mxu0
    %v625 = vadd.f32 %v523, %v624
    %626 = vdwg.mxu0
    %627 = vmatprep.subr.mxu0 0.0
    %628 = vmatpush1.msra.mxu0 0.0
    %629 = vmatprep.subr.mxu0 0.0
    %630 = vmatpush1.msra.mxu0 0.0
    %631 = vmatprep.subr.mxu0 0.0
    %632 = vmatpush1.msra.mxu0 0.0
    %633 = vmatprep.subr.mxu0 0.0
    %634 = vmatpush1.msra.mxu0 0.0
    %635 = vmatprep.subr.mxu0 0.0
    %636 = vmatpush1.msra.mxu0 0.0
    %637 = vmatprep.subr.mxu0 0.0
    %638 = vmatpush1.msra.mxu0 0.0
    %639 = vmatprep.subr.mxu0 0.0
    %640 = vmatpush1.msra.mxu0 0.0
    %641 = vmatprep.subr.mxu0 0.0
    %642 = vmatpush1.msra.mxu0 0.0
    %643 = vmatprep.subr.mxu0 0.0
    %644 = vmatpush1.msra.mxu0 0.0
    %645 = vmatprep.subr.mxu0 0.0
    %646 = vmatpush1.msra.mxu0 0.0
    %647 = vmatprep.subr.mxu0 0.0
    %648 = vmatpush1.msra.mxu0 0.0
    %v649 = vand.u32 %v108, 4294901760
    %650 = vmatprep.subr.mxu0 %v649
    %v651 = vand.u32 %v105, 4294901760
    %652 = vmatpush1.msra.mxu0 %v651
    %v653 = vand.u32 %v76, 4294901760
    %654 = vmatprep.subr.mxu0 %v653
    %v655 = vand.u32 %v75, 4294901760
    %656 = vmatpush1.msra.mxu0 %v655
    %v657 = vand.u32 %v64, 4294901760
    %658 = vmatprep.subr.mxu0 %v657
    %v659 = vand.u32 %v63, 4294901760
    %660 = vmatpush1.msra.mxu0 %v659
    %v661 = vand.u32 %v52, 4294901760
    %662 = vmatprep.subr.mxu0 %v661
    %v663 = vand.u32 %v51, 4294901760
    %664 = vmatpush1.msra.mxu0 %v663
    %v665 = vand.u32 %v40, 4294901760
    %666 = vmatprep.subr.mxu0 %v665
    %v667 = vand.u32 %v39, 4294901760
    %668 = vmatpush1.msra.mxu0 %v667
    %669 = vmatprep.subr.mxu0 0.0
    %670 = vmatpush2.msra.mxu0 0.0
    %671 = vmatprep.subr.mxu0 0.0
    %672 = vmatpush2.msra.mxu0 0.0
    %673 = vmatprep.subr.mxu0 0.0
    %674 = vmatpush2.msra.mxu0 0.0
    %675 = vmatprep.subr.mxu0 0.0
    %676 = vmatpush2.msra.mxu0 0.0
    %677 = vmatprep.subr.mxu0 0.0
    %678 = vmatpush2.msra.mxu0 0.0
    %679 = vmatprep.subr.mxu0 0.0
    %680 = vmatpush2.msra.mxu0 0.0
    %681 = vmatprep.subr.mxu0 0.0
    %682 = vmatpush2.msra.mxu0 0.0
    %683 = vmatprep.subr.mxu0 0.0
    %684 = vmatpush2.msra.mxu0 0.0
    %685 = vmatprep.subr.mxu0 0.0
    %686 = vmatpush2.msra.mxu0 0.0
    %687 = vmatprep.subr.mxu0 0.0
    %688 = vmatpush2.msra.mxu0 0.0
    %689 = vmatprep.subr.mxu0 0.0
    %690 = vmatpush2.msra.mxu0 0.0
    %691 = vmatprep.subr.mxu0 0.0
    %692 = vmatpush2.msra.mxu0 0.0
    %693 = vmatprep.subr.mxu0 0.0
    %694 = vmatpush2.msra.mxu0 0.0
    %695 = vmatprep.subr.mxu0 0.0
    %696 = vmatpush2.msra.mxu0 0.0
    %697 = vmatprep.subr.mxu0 0.0
    %698 = vmatpush2.msra.mxu0 0.0
    %699 = vmatprep.subr.mxu0 0.0
    %700 = vmatpush2.msra.mxu0 0.0
    %701 = vmatprep.mubr.f32.mxu0 0.0
    %v702 = vand.u32 %v101, 4294901760
    %703 = vmatmul.mubr.f32.gmra.mxu0 %v702
    %v704 = vpop.f32.mrf.mxu0
    %v705 = vadd.f32 %v623, %v704
    %v706 = vpop.f32.mrf.mxu0
    %v707 = vadd.f32 %v625, %v706
    %708 = vdwg.mxu0
    %709 = vmatprep.subr.mxu0 0.0
    %710 = vmatpush1.msra.mxu0 0.0
    %711 = vmatprep.subr.mxu0 0.0
    %712 = vmatpush1.msra.mxu0 0.0
    %713 = vmatprep.subr.mxu0 0.0
    %714 = vmatpush1.msra.mxu0 0.0
    %715 = vmatprep.subr.mxu0 0.0
    %716 = vmatpush1.msra.mxu0 0.0
    %717 = vmatprep.subr.mxu0 0.0
    %718 = vmatpush1.msra.mxu0 0.0
    %719 = vmatprep.subr.mxu0 0.0
    %720 = vmatpush1.msra.mxu0 0.0
    %721 = vmatprep.subr.mxu0 0.0
    %722 = vmatpush1.msra.mxu0 0.0
    %723 = vmatprep.subr.mxu0 0.0
    %724 = vmatpush1.msra.mxu0 0.0
    %725 = vmatprep.subr.mxu0 0.0
    %726 = vmatpush1.msra.mxu0 0.0
    %727 = vmatprep.subr.mxu0 0.0
    %728 = vmatpush1.msra.mxu0 0.0
    %729 = vmatprep.subr.mxu0 0.0
    %730 = vmatpush1.msra.mxu0 0.0
    %v731 = vand.u32 %v114, 4294901760
    %732 = vmatprep.subr.mxu0 %v731
    %v733 = vand.u32 %v111, 4294901760
    %734 = vmatpush1.msra.mxu0 %v733
    %v735 = vand.u32 %v78, 4294901760
    %736 = vmatprep.subr.mxu0 %v735
    %v737 = vand.u32 %v77, 4294901760
    %738 = vmatpush1.msra.mxu0 %v737
    %v739 = vand.u32 %v66, 4294901760
    %740 = vmatprep.subr.mxu0 %v739
    %v741 = vand.u32 %v65, 4294901760
    %742 = vmatpush1.msra.mxu0 %v741
    %v743 = vand.u32 %v54, 4294901760
    %744 = vmatprep.subr.mxu0 %v743
    %v745 = vand.u32 %v53, 4294901760
    %746 = vmatpush1.msra.mxu0 %v745
    %v747 = vand.u32 %v42, 4294901760
    %748 = vmatprep.subr.mxu0 %v747
    %v749 = vand.u32 %v41, 4294901760
    %750 = vmatpush1.msra.mxu0 %v749
    %751 = vmatprep.subr.mxu0 0.0
    %752 = vmatpush2.msra.mxu0 0.0
    %753 = vmatprep.subr.mxu0 0.0
    %754 = vmatpush2.msra.mxu0 0.0
    %755 = vmatprep.subr.mxu0 0.0
    %756 = vmatpush2.msra.mxu0 0.0
    %757 = vmatprep.subr.mxu0 0.0
    %758 = vmatpush2.msra.mxu0 0.0
    %759 = vmatprep.subr.mxu0 0.0
    %760 = vmatpush2.msra.mxu0 0.0
    %761 = vmatprep.subr.mxu0 0.0
    %762 = vmatpush2.msra.mxu0 0.0
    %763 = vmatprep.subr.mxu0 0.0
    %764 = vmatpush2.msra.mxu0 0.0
    %765 = vmatprep.subr.mxu0 0.0
    %766 = vmatpush2.msra.mxu0 0.0
    %767 = vmatprep.subr.mxu0 0.0
    %768 = vmatpush2.msra.mxu0 0.0
    %769 = vmatprep.subr.mxu0 0.0
    %770 = vmatpush2.msra.mxu0 0.0
    %771 = vmatprep.subr.mxu0 0.0
    %772 = vmatpush2.msra.mxu0 0.0
    %773 = vmatprep.subr.mxu0 0.0
    %774 = vmatpush2.msra.mxu0 0.0
    %775 = vmatprep.subr.mxu0 0.0
    %776 = vmatpush2.msra.mxu0 0.0
    %777 = vmatprep.subr.mxu0 0.0
    %778 = vmatpush2.msra.mxu0 0.0
    %779 = vmatprep.subr.mxu0 0.0
    %780 = vmatpush2.msra.mxu0 0.0
    %781 = vmatprep.subr.mxu0 0.0
    %782 = vmatpush2.msra.mxu0 0.0
    %783 = vmatprep.mubr.f32.mxu0 0.0
    %v784 = vand.u32 %v101, 4294901760
    %v785 = vsub.f32 %v101, %v784
    %v786 = vand.u32 %v785, 4294901760
    %v787 = vsub.f32 %v785, %v786
    %v788 = vand.u32 %v787, 4294901760
    %789 = vmatmul.mubr.f32.gmra.mxu0 %v788
    %v790 = vpop.f32.mrf.mxu0
    %v791 = vadd.f32 0.0, %v790
    %v792 = vpop.f32.mrf.mxu0
    %v793 = vadd.f32 0.0, %v792
    %794 = vdwg.mxu0
    %795 = vmatprep.subr.mxu0 0.0
    %796 = vmatpush1.msra.mxu0 0.0
    %797 = vmatprep.subr.mxu0 0.0
    %798 = vmatpush1.msra.mxu0 0.0
    %799 = vmatprep.subr.mxu0 0.0
    %800 = vmatpush1.msra.mxu0 0.0
    %801 = vmatprep.subr.mxu0 0.0
    %802 = vmatpush1.msra.mxu0 0.0
    %803 = vmatprep.subr.mxu0 0.0
    %804 = vmatpush1.msra.mxu0 0.0
    %805 = vmatprep.subr.mxu0 0.0
    %806 = vmatpush1.msra.mxu0 0.0
    %807 = vmatprep.subr.mxu0 0.0
    %808 = vmatpush1.msra.mxu0 0.0
    %809 = vmatprep.subr.mxu0 0.0
    %810 = vmatpush1.msra.mxu0 0.0
    %811 = vmatprep.subr.mxu0 0.0
    %812 = vmatpush1.msra.mxu0 0.0
    %813 = vmatprep.subr.mxu0 0.0
    %814 = vmatpush1.msra.mxu0 0.0
    %815 = vmatprep.subr.mxu0 0.0
    %816 = vmatpush1.msra.mxu0 0.0
    %v817 = vand.u32 %v114, 4294901760
    %v818 = vsub.f32 %v114, %v817
    %v819 = vand.u32 %v818, 4294901760
    %v820 = vsub.f32 %v818, %v819
    %v821 = vand.u32 %v820, 4294901760
    %822 = vmatprep.subr.mxu0 %v821
    %v823 = vand.u32 %v111, 4294901760
    %v824 = vsub.f32 %v111, %v823
    %v825 = vand.u32 %v824, 4294901760
    %v826 = vsub.f32 %v824, %v825
    %v827 = vand.u32 %v826, 4294901760
    %828 = vmatpush1.msra.mxu0 %v827
    %v829 = vand.u32 %v78, 4294901760
    %v830 = vsub.f32 %v78, %v829
    %v831 = vand.u32 %v830, 4294901760
    %v832 = vsub.f32 %v830, %v831
    %v833 = vand.u32 %v832, 4294901760
    %834 = vmatprep.subr.mxu0 %v833
    %v835 = vand.u32 %v77, 4294901760
    %v836 = vsub.f32 %v77, %v835
    %v837 = vand.u32 %v836, 4294901760
    %v838 = vsub.f32 %v836, %v837
    %v839 = vand.u32 %v838, 4294901760
    %840 = vmatpush1.msra.mxu0 %v839
    %v841 = vand.u32 %v66, 4294901760
    %v842 = vsub.f32 %v66, %v841
    %v843 = vand.u32 %v842, 4294901760
    %v844 = vsub.f32 %v842, %v843
    %v845 = vand.u32 %v844, 4294901760
    %846 = vmatprep.subr.mxu0 %v845
    %v847 = vand.u32 %v65, 4294901760
    %v848 = vsub.f32 %v65, %v847
    %v849 = vand.u32 %v848, 4294901760
    %v850 = vsub.f32 %v848, %v849
    %v851 = vand.u32 %v850, 4294901760
    %852 = vmatpush1.msra.mxu0 %v851
    %v853 = vand.u32 %v54, 4294901760
    %v854 = vsub.f32 %v54, %v853
    %v855 = vand.u32 %v854, 4294901760
    %v856 = vsub.f32 %v854, %v855
    %v857 = vand.u32 %v856, 4294901760
    %858 = vmatprep.subr.mxu0 %v857
    %v859 = vand.u32 %v53, 4294901760
    %v860 = vsub.f32 %v53, %v859
    %v861 = vand.u32 %v860, 4294901760
    %v862 = vsub.f32 %v860, %v861
    %v863 = vand.u32 %v862, 4294901760
    %864 = vmatpush1.msra.mxu0 %v863
    %v865 = vand.u32 %v42, 4294901760
    %v866 = vsub.f32 %v42, %v865
    %v867 = vand.u32 %v866, 4294901760
    %v868 = vsub.f32 %v866, %v867
    %v869 = vand.u32 %v868, 4294901760
    %870 = vmatprep.subr.mxu0 %v869
    %v871 = vand.u32 %v41, 4294901760
    %v872 = vsub.f32 %v41, %v871
    %v873 = vand.u32 %v872, 4294901760
    %v874 = vsub.f32 %v872, %v873
    %v875 = vand.u32 %v874, 4294901760
    %876 = vmatpush1.msra.mxu0 %v875
    %877 = vmatprep.subr.mxu0 0.0
    %878 = vmatpush2.msra.mxu0 0.0
    %879 = vmatprep.subr.mxu0 0.0
    %880 = vmatpush2.msra.mxu0 0.0
    %881 = vmatprep.subr.mxu0 0.0
    %882 = vmatpush2.msra.mxu0 0.0
    %883 = vmatprep.subr.mxu0 0.0
    %884 = vmatpush2.msra.mxu0 0.0
    %885 = vmatprep.subr.mxu0 0.0
    %886 = vmatpush2.msra.mxu0 0.0
    %887 = vmatprep.subr.mxu0 0.0
    %888 = vmatpush2.msra.mxu0 0.0
    %889 = vmatprep.subr.mxu0 0.0
    %890 = vmatpush2.msra.mxu0 0.0
    %891 = vmatprep.subr.mxu0 0.0
    %892 = vmatpush2.msra.mxu0 0.0
    %893 = vmatprep.subr.mxu0 0.0
    %894 = vmatpush2.msra.mxu0 0.0
    %895 = vmatprep.subr.mxu0 0.0
    %896 = vmatpush2.msra.mxu0 0.0
    %897 = vmatprep.subr.mxu0 0.0
    %898 = vmatpush2.msra.mxu0 0.0
    %899 = vmatprep.subr.mxu0 0.0
    %900 = vmatpush2.msra.mxu0 0.0
    %901 = vmatprep.subr.mxu0 0.0
    %902 = vmatpush2.msra.mxu0 0.0
    %903 = vmatprep.subr.mxu0 0.0
    %904 = vmatpush2.msra.mxu0 0.0
    %905 = vmatprep.subr.mxu0 0.0
    %906 = vmatpush2.msra.mxu0 0.0
    %907 = vmatprep.subr.mxu0 0.0
    %908 = vmatpush2.msra.mxu0 0.0
    %909 = vmatprep.mubr.f32.mxu0 0.0
    %v910 = vand.u32 %v101, 4294901760
    %911 = vmatmul.mubr.f32.gmra.mxu0 %v910
    %v912 = vpop.f32.mrf.mxu0
    %v913 = vadd.f32 %v791, %v912
    %v914 = vpop.f32.mrf.mxu0
    %v915 = vadd.f32 %v793, %v914
    %916 = vdwg.mxu0
    %917 = vmatprep.subr.mxu0 0.0
    %918 = vmatpush1.msra.mxu0 0.0
    %919 = vmatprep.subr.mxu0 0.0
    %920 = vmatpush1.msra.mxu0 0.0
    %921 = vmatprep.subr.mxu0 0.0
    %922 = vmatpush1.msra.mxu0 0.0
    %923 = vmatprep.subr.mxu0 0.0
    %924 = vmatpush1.msra.mxu0 0.0
    %925 = vmatprep.subr.mxu0 0.0
    %926 = vmatpush1.msra.mxu0 0.0
    %927 = vmatprep.subr.mxu0 0.0
    %928 = vmatpush1.msra.mxu0 0.0
    %929 = vmatprep.subr.mxu0 0.0
    %930 = vmatpush1.msra.mxu0 0.0
    %931 = vmatprep.subr.mxu0 0.0
    %932 = vmatpush1.msra.mxu0 0.0
    %933 = vmatprep.subr.mxu0 0.0
    %934 = vmatpush1.msra.mxu0 0.0
    %935 = vmatprep.subr.mxu0 0.0
    %936 = vmatpush1.msra.mxu0 0.0
    %937 = vmatprep.subr.mxu0 0.0
    %938 = vmatpush1.msra.mxu0 0.0
    %v939 = vand.u32 %v114, 4294901760
    %v940 = vsub.f32 %v114, %v939
    %941 = vmatprep.subr.mxu0 %v940
    %v942 = vand.u32 %v111, 4294901760
    %v943 = vsub.f32 %v111, %v942
    %944 = vmatpush1.msra.mxu0 %v943
    %v945 = vand.u32 %v78, 4294901760
    %v946 = vsub.f32 %v78, %v945
    %947 = vmatprep.subr.mxu0 %v946
    %v948 = vand.u32 %v77, 4294901760
    %v949 = vsub.f32 %v77, %v948
    %950 = vmatpush1.msra.mxu0 %v949
    %v951 = vand.u32 %v66, 4294901760
    %v952 = vsub.f32 %v66, %v951
    %953 = vmatprep.subr.mxu0 %v952
    %v954 = vand.u32 %v65, 4294901760
    %v955 = vsub.f32 %v65, %v954
    %956 = vmatpush1.msra.mxu0 %v955
    %v957 = vand.u32 %v54, 4294901760
    %v958 = vsub.f32 %v54, %v957
    %959 = vmatprep.subr.mxu0 %v958
    %v960 = vand.u32 %v53, 4294901760
    %v961 = vsub.f32 %v53, %v960
    %962 = vmatpush1.msra.mxu0 %v961
    %v963 = vand.u32 %v42, 4294901760
    %v964 = vsub.f32 %v42, %v963
    %965 = vmatprep.subr.mxu0 %v964
    %v966 = vand.u32 %v41, 4294901760
    %v967 = vsub.f32 %v41, %v966
    %968 = vmatpush1.msra.mxu0 %v967
    %969 = vmatprep.subr.mxu0 0.0
    %970 = vmatpush2.msra.mxu0 0.0
    %971 = vmatprep.subr.mxu0 0.0
    %972 = vmatpush2.msra.mxu0 0.0
    %973 = vmatprep.subr.mxu0 0.0
    %974 = vmatpush2.msra.mxu0 0.0
    %975 = vmatprep.subr.mxu0 0.0
    %976 = vmatpush2.msra.mxu0 0.0
    %977 = vmatprep.subr.mxu0 0.0
    %978 = vmatpush2.msra.mxu0 0.0
    %979 = vmatprep.subr.mxu0 0.0
    %980 = vmatpush2.msra.mxu0 0.0
    %981 = vmatprep.subr.mxu0 0.0
    %982 = vmatpush2.msra.mxu0 0.0
    %983 = vmatprep.subr.mxu0 0.0
    %984 = vmatpush2.msra.mxu0 0.0
    %985 = vmatprep.subr.mxu0 0.0
    %986 = vmatpush2.msra.mxu0 0.0
    %987 = vmatprep.subr.mxu0 0.0
    %988 = vmatpush2.msra.mxu0 0.0
    %989 = vmatprep.subr.mxu0 0.0
    %990 = vmatpush2.msra.mxu0 0.0
    %991 = vmatprep.subr.mxu0 0.0
    %992 = vmatpush2.msra.mxu0 0.0
    %993 = vmatprep.subr.mxu0 0.0
    %994 = vmatpush2.msra.mxu0 0.0
    %995 = vmatprep.subr.mxu0 0.0
    %996 = vmatpush2.msra.mxu0 0.0
    %997 = vmatprep.subr.mxu0 0.0
    %998 = vmatpush2.msra.mxu0 0.0
    %999 = vmatprep.subr.mxu0 0.0
    %1000 = vmatpush2.msra.mxu0 0.0
    %1001 = vmatprep.mubr.f32.mxu0 0.0
    %v1002 = vand.u32 %v101, 4294901760
    %v1003 = vsub.f32 %v101, %v1002
    %1004 = vmatmul.mubr.f32.gmra.mxu0 %v1003
    %v1005 = vpop.f32.mrf.mxu0
    %v1006 = vadd.f32 %v913, %v1005
    %v1007 = vpop.f32.mrf.mxu0
    %v1008 = vadd.f32 %v915, %v1007
    %1009 = vdwg.mxu0
    %1010 = vmatprep.subr.mxu0 0.0
    %1011 = vmatpush1.msra.mxu0 0.0
    %1012 = vmatprep.subr.mxu0 0.0
    %1013 = vmatpush1.msra.mxu0 0.0
    %1014 = vmatprep.subr.mxu0 0.0
    %1015 = vmatpush1.msra.mxu0 0.0
    %1016 = vmatprep.subr.mxu0 0.0
    %1017 = vmatpush1.msra.mxu0 0.0
    %1018 = vmatprep.subr.mxu0 0.0
    %1019 = vmatpush1.msra.mxu0 0.0
    %1020 = vmatprep.subr.mxu0 0.0
    %1021 = vmatpush1.msra.mxu0 0.0
    %1022 = vmatprep.subr.mxu0 0.0
    %1023 = vmatpush1.msra.mxu0 0.0
    %1024 = vmatprep.subr.mxu0 0.0
    %1025 = vmatpush1.msra.mxu0 0.0
    %1026 = vmatprep.subr.mxu0 0.0
    %1027 = vmatpush1.msra.mxu0 0.0
    %1028 = vmatprep.subr.mxu0 0.0
    %1029 = vmatpush1.msra.mxu0 0.0
    %1030 = vmatprep.subr.mxu0 0.0
    %1031 = vmatpush1.msra.mxu0 0.0
    %v1032 = vand.u32 %v114, 4294901760
    %1033 = vmatprep.subr.mxu0 %v1032
    %v1034 = vand.u32 %v111, 4294901760
    %1035 = vmatpush1.msra.mxu0 %v1034
    %v1036 = vand.u32 %v78, 4294901760
    %1037 = vmatprep.subr.mxu0 %v1036
    %v1038 = vand.u32 %v77, 4294901760
    %1039 = vmatpush1.msra.mxu0 %v1038
    %v1040 = vand.u32 %v66, 4294901760
    %1041 = vmatprep.subr.mxu0 %v1040
    %v1042 = vand.u32 %v65, 4294901760
    %1043 = vmatpush1.msra.mxu0 %v1042
    %v1044 = vand.u32 %v54, 4294901760
    %1045 = vmatprep.subr.mxu0 %v1044
    %v1046 = vand.u32 %v53, 4294901760
    %1047 = vmatpush1.msra.mxu0 %v1046
    %v1048 = vand.u32 %v42, 4294901760
    %1049 = vmatprep.subr.mxu0 %v1048
    %v1050 = vand.u32 %v41, 4294901760
    %1051 = vmatpush1.msra.mxu0 %v1050
    %1052 = vmatprep.subr.mxu0 0.0
    %1053 = vmatpush2.msra.mxu0 0.0
    %1054 = vmatprep.subr.mxu0 0.0
    %1055 = vmatpush2.msra.mxu0 0.0
    %1056 = vmatprep.subr.mxu0 0.0
    %1057 = vmatpush2.msra.mxu0 0.0
    %1058 = vmatprep.subr.mxu0 0.0
    %1059 = vmatpush2.msra.mxu0 0.0
    %1060 = vmatprep.subr.mxu0 0.0
    %1061 = vmatpush2.msra.mxu0 0.0
    %1062 = vmatprep.subr.mxu0 0.0
    %1063 = vmatpush2.msra.mxu0 0.0
    %1064 = vmatprep.subr.mxu0 0.0
    %1065 = vmatpush2.msra.mxu0 0.0
    %1066 = vmatprep.subr.mxu0 0.0
    %1067 = vmatpush2.msra.mxu0 0.0
    %1068 = vmatprep.subr.mxu0 0.0
    %1069 = vmatpush2.msra.mxu0 0.0
    %1070 = vmatprep.subr.mxu0 0.0
    %1071 = vmatpush2.msra.mxu0 0.0
    %1072 = vmatprep.subr.mxu0 0.0
    %1073 = vmatpush2.msra.mxu0 0.0
    %1074 = vmatprep.subr.mxu0 0.0
    %1075 = vmatpush2.msra.mxu0 0.0
    %1076 = vmatprep.subr.mxu0 0.0
    %1077 = vmatpush2.msra.mxu0 0.0
    %1078 = vmatprep.subr.mxu0 0.0
    %1079 = vmatpush2.msra.mxu0 0.0
    %1080 = vmatprep.subr.mxu0 0.0
    %1081 = vmatpush2.msra.mxu0 0.0
    %1082 = vmatprep.subr.mxu0 0.0
    %1083 = vmatpush2.msra.mxu0 0.0
    %1084 = vmatprep.mubr.f32.mxu0 0.0
    %v1085 = vand.u32 %v101, 4294901760
    %v1086 = vsub.f32 %v101, %v1085
    %v1087 = vand.u32 %v1086, 4294901760
    %1088 = vmatmul.mubr.f32.gmra.mxu0 %v1087
    %v1089 = vpop.f32.mrf.mxu0
    %v1090 = vadd.f32 %v1006, %v1089
    %v1091 = vpop.f32.mrf.mxu0
    %v1092 = vadd.f32 %v1008, %v1091
    %1093 = vdwg.mxu0
    %1094 = vmatprep.subr.mxu0 0.0
    %1095 = vmatpush1.msra.mxu0 0.0
    %1096 = vmatprep.subr.mxu0 0.0
    %1097 = vmatpush1.msra.mxu0 0.0
    %1098 = vmatprep.subr.mxu0 0.0
    %1099 = vmatpush1.msra.mxu0 0.0
    %1100 = vmatprep.subr.mxu0 0.0
    %1101 = vmatpush1.msra.mxu0 0.0
    %1102 = vmatprep.subr.mxu0 0.0
    %1103 = vmatpush1.msra.mxu0 0.0
    %1104 = vmatprep.subr.mxu0 0.0
    %1105 = vmatpush1.msra.mxu0 0.0
    %1106 = vmatprep.subr.mxu0 0.0
    %1107 = vmatpush1.msra.mxu0 0.0
    %1108 = vmatprep.subr.mxu0 0.0
    %1109 = vmatpush1.msra.mxu0 0.0
    %1110 = vmatprep.subr.mxu0 0.0
    %1111 = vmatpush1.msra.mxu0 0.0
    %1112 = vmatprep.subr.mxu0 0.0
    %1113 = vmatpush1.msra.mxu0 0.0
    %1114 = vmatprep.subr.mxu0 0.0
    %1115 = vmatpush1.msra.mxu0 0.0
    %v1116 = vand.u32 %v114, 4294901760
    %v1117 = vsub.f32 %v114, %v1116
    %v1118 = vand.u32 %v1117, 4294901760
    %1119 = vmatprep.subr.mxu0 %v1118
    %v1120 = vand.u32 %v111, 4294901760
    %v1121 = vsub.f32 %v111, %v1120
    %v1122 = vand.u32 %v1121, 4294901760
    %1123 = vmatpush1.msra.mxu0 %v1122
    %v1124 = vand.u32 %v78, 4294901760
    %v1125 = vsub.f32 %v78, %v1124
    %v1126 = vand.u32 %v1125, 4294901760
    %1127 = vmatprep.subr.mxu0 %v1126
    %v1128 = vand.u32 %v77, 4294901760
    %v1129 = vsub.f32 %v77, %v1128
    %v1130 = vand.u32 %v1129, 4294901760
    %1131 = vmatpush1.msra.mxu0 %v1130
    %v1132 = vand.u32 %v66, 4294901760
    %v1133 = vsub.f32 %v66, %v1132
    %v1134 = vand.u32 %v1133, 4294901760
    %1135 = vmatprep.subr.mxu0 %v1134
    %v1136 = vand.u32 %v65, 4294901760
    %v1137 = vsub.f32 %v65, %v1136
    %v1138 = vand.u32 %v1137, 4294901760
    %1139 = vmatpush1.msra.mxu0 %v1138
    %v1140 = vand.u32 %v54, 4294901760
    %v1141 = vsub.f32 %v54, %v1140
    %v1142 = vand.u32 %v1141, 4294901760
    %1143 = vmatprep.subr.mxu0 %v1142
    %v1144 = vand.u32 %v53, 4294901760
    %v1145 = vsub.f32 %v53, %v1144
    %v1146 = vand.u32 %v1145, 4294901760
    %1147 = vmatpush1.msra.mxu0 %v1146
    %v1148 = vand.u32 %v42, 4294901760
    %v1149 = vsub.f32 %v42, %v1148
    %v1150 = vand.u32 %v1149, 4294901760
    %1151 = vmatprep.subr.mxu0 %v1150
    %v1152 = vand.u32 %v41, 4294901760
    %v1153 = vsub.f32 %v41, %v1152
    %v1154 = vand.u32 %v1153, 4294901760
    %1155 = vmatpush1.msra.mxu0 %v1154
    %1156 = vmatprep.subr.mxu0 0.0
    %1157 = vmatpush2.msra.mxu0 0.0
    %1158 = vmatprep.subr.mxu0 0.0
    %1159 = vmatpush2.msra.mxu0 0.0
    %1160 = vmatprep.subr.mxu0 0.0
    %1161 = vmatpush2.msra.mxu0 0.0
    %1162 = vmatprep.subr.mxu0 0.0
    %1163 = vmatpush2.msra.mxu0 0.0
    %1164 = vmatprep.subr.mxu0 0.0
    %1165 = vmatpush2.msra.mxu0 0.0
    %1166 = vmatprep.subr.mxu0 0.0
    %1167 = vmatpush2.msra.mxu0 0.0
    %1168 = vmatprep.subr.mxu0 0.0
    %1169 = vmatpush2.msra.mxu0 0.0
    %1170 = vmatprep.subr.mxu0 0.0
    %1171 = vmatpush2.msra.mxu0 0.0
    %1172 = vmatprep.subr.mxu0 0.0
    %1173 = vmatpush2.msra.mxu0 0.0
    %1174 = vmatprep.subr.mxu0 0.0
    %1175 = vmatpush2.msra.mxu0 0.0
    %1176 = vmatprep.subr.mxu0 0.0
    %1177 = vmatpush2.msra.mxu0 0.0
    %1178 = vmatprep.subr.mxu0 0.0
    %1179 = vmatpush2.msra.mxu0 0.0
    %1180 = vmatprep.subr.mxu0 0.0
    %1181 = vmatpush2.msra.mxu0 0.0
    %1182 = vmatprep.subr.mxu0 0.0
    %1183 = vmatpush2.msra.mxu0 0.0
    %1184 = vmatprep.subr.mxu0 0.0
    %1185 = vmatpush2.msra.mxu0 0.0
    %1186 = vmatprep.subr.mxu0 0.0
    %1187 = vmatpush2.msra.mxu0 0.0
    %1188 = vmatprep.mubr.f32.mxu0 0.0
    %v1189 = vand.u32 %v101, 4294901760
    %1190 = vmatmul.mubr.f32.gmra.mxu0 %v1189
    %v1191 = vpop.f32.mrf.mxu0
    %v1192 = vadd.f32 %v1090, %v1191
    %v1193 = vpop.f32.mrf.mxu0
    %v1194 = vadd.f32 %v1092, %v1193
    %1195 = vdwg.mxu0
    %1196 = vmatprep.subr.mxu0 0.0
    %1197 = vmatpush1.msra.mxu0 0.0
    %1198 = vmatprep.subr.mxu0 0.0
    %1199 = vmatpush1.msra.mxu0 0.0
    %1200 = vmatprep.subr.mxu0 0.0
    %1201 = vmatpush1.msra.mxu0 0.0
    %1202 = vmatprep.subr.mxu0 0.0
    %1203 = vmatpush1.msra.mxu0 0.0
    %1204 = vmatprep.subr.mxu0 0.0
    %1205 = vmatpush1.msra.mxu0 0.0
    %1206 = vmatprep.subr.mxu0 0.0
    %1207 = vmatpush1.msra.mxu0 0.0
    %1208 = vmatprep.subr.mxu0 0.0
    %1209 = vmatpush1.msra.mxu0 0.0
    %1210 = vmatprep.subr.mxu0 0.0
    %1211 = vmatpush1.msra.mxu0 0.0
    %1212 = vmatprep.subr.mxu0 0.0
    %1213 = vmatpush1.msra.mxu0 0.0
    %1214 = vmatprep.subr.mxu0 0.0
    %1215 = vmatpush1.msra.mxu0 0.0
    %1216 = vmatprep.subr.mxu0 0.0
    %1217 = vmatpush1.msra.mxu0 0.0
    %v1218 = vand.u32 %v114, 4294901760
    %1219 = vmatprep.subr.mxu0 %v1218
    %v1220 = vand.u32 %v111, 4294901760
    %1221 = vmatpush1.msra.mxu0 %v1220
    %v1222 = vand.u32 %v78, 4294901760
    %1223 = vmatprep.subr.mxu0 %v1222
    %v1224 = vand.u32 %v77, 4294901760
    %1225 = vmatpush1.msra.mxu0 %v1224
    %v1226 = vand.u32 %v66, 4294901760
    %1227 = vmatprep.subr.mxu0 %v1226
    %v1228 = vand.u32 %v65, 4294901760
    %1229 = vmatpush1.msra.mxu0 %v1228
    %v1230 = vand.u32 %v54, 4294901760
    %1231 = vmatprep.subr.mxu0 %v1230
    %v1232 = vand.u32 %v53, 4294901760
    %1233 = vmatpush1.msra.mxu0 %v1232
    %v1234 = vand.u32 %v42, 4294901760
    %1235 = vmatprep.subr.mxu0 %v1234
    %v1236 = vand.u32 %v41, 4294901760
    %1237 = vmatpush1.msra.mxu0 %v1236
    %1238 = vmatprep.subr.mxu0 0.0
    %1239 = vmatpush2.msra.mxu0 0.0
    %1240 = vmatprep.subr.mxu0 0.0
    %1241 = vmatpush2.msra.mxu0 0.0
    %1242 = vmatprep.subr.mxu0 0.0
    %1243 = vmatpush2.msra.mxu0 0.0
    %1244 = vmatprep.subr.mxu0 0.0
    %1245 = vmatpush2.msra.mxu0 0.0
    %1246 = vmatprep.subr.mxu0 0.0
    %1247 = vmatpush2.msra.mxu0 0.0
    %1248 = vmatprep.subr.mxu0 0.0
    %1249 = vmatpush2.msra.mxu0 0.0
    %1250 = vmatprep.subr.mxu0 0.0
    %1251 = vmatpush2.msra.mxu0 0.0
    %1252 = vmatprep.subr.mxu0 0.0
    %1253 = vmatpush2.msra.mxu0 0.0
    %1254 = vmatprep.subr.mxu0 0.0
    %1255 = vmatpush2.msra.mxu0 0.0
    %1256 = vmatprep.subr.mxu0 0.0
    %1257 = vmatpush2.msra.mxu0 0.0
    %1258 = vmatprep.subr.mxu0 0.0
    %1259 = vmatpush2.msra.mxu0 0.0
    %1260 = vmatprep.subr.mxu0 0.0
    %1261 = vmatpush2.msra.mxu0 0.0
    %1262 = vmatprep.subr.mxu0 0.0
    %1263 = vmatpush2.msra.mxu0 0.0
    %1264 = vmatprep.subr.mxu0 0.0
    %1265 = vmatpush2.msra.mxu0 0.0
    %1266 = vmatprep.subr.mxu0 0.0
    %1267 = vmatpush2.msra.mxu0 0.0
    %1268 = vmatprep.subr.mxu0 0.0
    %1269 = vmatpush2.msra.mxu0 0.0
    %1270 = vmatprep.mubr.f32.mxu0 0.0
    %v1271 = vand.u32 %v101, 4294901760
    %1272 = vmatmul.mubr.f32.gmra.mxu0 %v1271
    %v1273 = vpop.f32.mrf.mxu0
    %v1274 = vadd.f32 %v1192, %v1273
    %v1275 = vpop.f32.mrf.mxu0
    %v1276 = vadd.f32 %v1194, %v1275
    %1277 = vdwg.mxu0
    %1278 = vmatprep.subr.mxu0 0.0
    %1279 = vmatpush1.msra.mxu0 0.0
    %1280 = vmatprep.subr.mxu0 0.0
    %1281 = vmatpush1.msra.mxu0 0.0
    %1282 = vmatprep.subr.mxu0 0.0
    %1283 = vmatpush1.msra.mxu0 0.0
    %1284 = vmatprep.subr.mxu0 0.0
    %1285 = vmatpush1.msra.mxu0 0.0
    %1286 = vmatprep.subr.mxu0 0.0
    %1287 = vmatpush1.msra.mxu0 0.0
    %1288 = vmatprep.subr.mxu0 0.0
    %1289 = vmatpush1.msra.mxu0 0.0
    %1290 = vmatprep.subr.mxu0 0.0
    %1291 = vmatpush1.msra.mxu0 0.0
    %1292 = vmatprep.subr.mxu0 0.0
    %1293 = vmatpush1.msra.mxu0 0.0
    %1294 = vmatprep.subr.mxu0 0.0
    %1295 = vmatpush1.msra.mxu0 0.0
    %1296 = vmatprep.subr.mxu0 0.0
    %1297 = vmatpush1.msra.mxu0 0.0
    %1298 = vmatprep.subr.mxu0 0.0
    %1299 = vmatpush1.msra.mxu0 0.0
    %v1300 = vand.u32 %v120, 4294901760
    %1301 = vmatprep.subr.mxu0 %v1300
    %v1302 = vand.u32 %v117, 4294901760
    %1303 = vmatpush1.msra.mxu0 %v1302
    %v1304 = vand.u32 %v80, 4294901760
    %1305 = vmatprep.subr.mxu0 %v1304
    %v1306 = vand.u32 %v79, 4294901760
    %1307 = vmatpush1.msra.mxu0 %v1306
    %v1308 = vand.u32 %v68, 4294901760
    %1309 = vmatprep.subr.mxu0 %v1308
    %v1310 = vand.u32 %v67, 4294901760
    %1311 = vmatpush1.msra.mxu0 %v1310
    %v1312 = vand.u32 %v56, 4294901760
    %1313 = vmatprep.subr.mxu0 %v1312
    %v1314 = vand.u32 %v55, 4294901760
    %1315 = vmatpush1.msra.mxu0 %v1314
    %v1316 = vand.u32 %v44, 4294901760
    %1317 = vmatprep.subr.mxu0 %v1316
    %v1318 = vand.u32 %v43, 4294901760
    %1319 = vmatpush1.msra.mxu0 %v1318
    %1320 = vmatprep.subr.mxu0 0.0
    %1321 = vmatpush2.msra.mxu0 0.0
    %1322 = vmatprep.subr.mxu0 0.0
    %1323 = vmatpush2.msra.mxu0 0.0
    %1324 = vmatprep.subr.mxu0 0.0
    %1325 = vmatpush2.msra.mxu0 0.0
    %1326 = vmatprep.subr.mxu0 0.0
    %1327 = vmatpush2.msra.mxu0 0.0
    %1328 = vmatprep.subr.mxu0 0.0
    %1329 = vmatpush2.msra.mxu0 0.0
    %1330 = vmatprep.subr.mxu0 0.0
    %1331 = vmatpush2.msra.mxu0 0.0
    %1332 = vmatprep.subr.mxu0 0.0
    %1333 = vmatpush2.msra.mxu0 0.0
    %1334 = vmatprep.subr.mxu0 0.0
    %1335 = vmatpush2.msra.mxu0 0.0
    %1336 = vmatprep.subr.mxu0 0.0
    %1337 = vmatpush2.msra.mxu0 0.0
    %1338 = vmatprep.subr.mxu0 0.0
    %1339 = vmatpush2.msra.mxu0 0.0
    %1340 = vmatprep.subr.mxu0 0.0
    %1341 = vmatpush2.msra.mxu0 0.0
    %1342 = vmatprep.subr.mxu0 0.0
    %1343 = vmatpush2.msra.mxu0 0.0
    %1344 = vmatprep.subr.mxu0 0.0
    %1345 = vmatpush2.msra.mxu0 0.0
    %1346 = vmatprep.subr.mxu0 0.0
    %1347 = vmatpush2.msra.mxu0 0.0
    %1348 = vmatprep.subr.mxu0 0.0
    %1349 = vmatpush2.msra.mxu0 0.0
    %1350 = vmatprep.subr.mxu0 0.0
    %1351 = vmatpush2.msra.mxu0 0.0
    %1352 = vmatprep.mubr.f32.mxu0 0.0
    %v1353 = vand.u32 %v101, 4294901760
    %v1354 = vsub.f32 %v101, %v1353
    %v1355 = vand.u32 %v1354, 4294901760
    %v1356 = vsub.f32 %v1354, %v1355
    %v1357 = vand.u32 %v1356, 4294901760
    %1358 = vmatmul.mubr.f32.gmra.mxu0 %v1357
    %v1359 = vpop.f32.mrf.mxu0
    %v1360 = vadd.f32 0.0, %v1359
    %v1361 = vpop.f32.mrf.mxu0
    %v1362 = vadd.f32 0.0, %v1361
    %1363 = vdwg.mxu0
    %1364 = vmatprep.subr.mxu0 0.0
    %1365 = vmatpush1.msra.mxu0 0.0
    %1366 = vmatprep.subr.mxu0 0.0
    %1367 = vmatpush1.msra.mxu0 0.0
    %1368 = vmatprep.subr.mxu0 0.0
    %1369 = vmatpush1.msra.mxu0 0.0
    %1370 = vmatprep.subr.mxu0 0.0
    %1371 = vmatpush1.msra.mxu0 0.0
    %1372 = vmatprep.subr.mxu0 0.0
    %1373 = vmatpush1.msra.mxu0 0.0
    %1374 = vmatprep.subr.mxu0 0.0
    %1375 = vmatpush1.msra.mxu0 0.0
    %1376 = vmatprep.subr.mxu0 0.0
    %1377 = vmatpush1.msra.mxu0 0.0
    %1378 = vmatprep.subr.mxu0 0.0
    %1379 = vmatpush1.msra.mxu0 0.0
    %1380 = vmatprep.subr.mxu0 0.0
    %1381 = vmatpush1.msra.mxu0 0.0
    %1382 = vmatprep.subr.mxu0 0.0
    %1383 = vmatpush1.msra.mxu0 0.0
    %1384 = vmatprep.subr.mxu0 0.0
    %1385 = vmatpush1.msra.mxu0 0.0
    %v1386 = vand.u32 %v120, 4294901760
    %v1387 = vsub.f32 %v120, %v1386
    %v1388 = vand.u32 %v1387, 4294901760
    %v1389 = vsub.f32 %v1387, %v1388
    %v1390 = vand.u32 %v1389, 4294901760
    %1391 = vmatprep.subr.mxu0 %v1390
    %v1392 = vand.u32 %v117, 4294901760
    %v1393 = vsub.f32 %v117, %v1392
    %v1394 = vand.u32 %v1393, 4294901760
    %v1395 = vsub.f32 %v1393, %v1394
    %v1396 = vand.u32 %v1395, 4294901760
    %1397 = vmatpush1.msra.mxu0 %v1396
    %v1398 = vand.u32 %v80, 4294901760
    %v1399 = vsub.f32 %v80, %v1398
    %v1400 = vand.u32 %v1399, 4294901760
    %v1401 = vsub.f32 %v1399, %v1400
    %v1402 = vand.u32 %v1401, 4294901760
    %1403 = vmatprep.subr.mxu0 %v1402
    %v1404 = vand.u32 %v79, 4294901760
    %v1405 = vsub.f32 %v79, %v1404
    %v1406 = vand.u32 %v1405, 4294901760
    %v1407 = vsub.f32 %v1405, %v1406
    %v1408 = vand.u32 %v1407, 4294901760
    %1409 = vmatpush1.msra.mxu0 %v1408
    %v1410 = vand.u32 %v68, 4294901760
    %v1411 = vsub.f32 %v68, %v1410
    %v1412 = vand.u32 %v1411, 4294901760
    %v1413 = vsub.f32 %v1411, %v1412
    %v1414 = vand.u32 %v1413, 4294901760
    %1415 = vmatprep.subr.mxu0 %v1414
    %v1416 = vand.u32 %v67, 4294901760
    %v1417 = vsub.f32 %v67, %v1416
    %v1418 = vand.u32 %v1417, 4294901760
    %v1419 = vsub.f32 %v1417, %v1418
    %v1420 = vand.u32 %v1419, 4294901760
    %1421 = vmatpush1.msra.mxu0 %v1420
    %v1422 = vand.u32 %v56, 4294901760
    %v1423 = vsub.f32 %v56, %v1422
    %v1424 = vand.u32 %v1423, 4294901760
    %v1425 = vsub.f32 %v1423, %v1424
    %v1426 = vand.u32 %v1425, 4294901760
    %1427 = vmatprep.subr.mxu0 %v1426
    %v1428 = vand.u32 %v55, 4294901760
    %v1429 = vsub.f32 %v55, %v1428
    %v1430 = vand.u32 %v1429, 4294901760
    %v1431 = vsub.f32 %v1429, %v1430
    %v1432 = vand.u32 %v1431, 4294901760
    %1433 = vmatpush1.msra.mxu0 %v1432
    %v1434 = vand.u32 %v44, 4294901760
    %v1435 = vsub.f32 %v44, %v1434
    %v1436 = vand.u32 %v1435, 4294901760
    %v1437 = vsub.f32 %v1435, %v1436
    %v1438 = vand.u32 %v1437, 4294901760
    %1439 = vmatprep.subr.mxu0 %v1438
    %v1440 = vand.u32 %v43, 4294901760
    %v1441 = vsub.f32 %v43, %v1440
    %v1442 = vand.u32 %v1441, 4294901760
    %v1443 = vsub.f32 %v1441, %v1442
    %v1444 = vand.u32 %v1443, 4294901760
    %1445 = vmatpush1.msra.mxu0 %v1444
    %1446 = vmatprep.subr.mxu0 0.0
    %1447 = vmatpush2.msra.mxu0 0.0
    %1448 = vmatprep.subr.mxu0 0.0
    %1449 = vmatpush2.msra.mxu0 0.0
    %1450 = vmatprep.subr.mxu0 0.0
    %1451 = vmatpush2.msra.mxu0 0.0
    %1452 = vmatprep.subr.mxu0 0.0
    %1453 = vmatpush2.msra.mxu0 0.0
    %1454 = vmatprep.subr.mxu0 0.0
    %1455 = vmatpush2.msra.mxu0 0.0
    %1456 = vmatprep.subr.mxu0 0.0
    %1457 = vmatpush2.msra.mxu0 0.0
    %1458 = vmatprep.subr.mxu0 0.0
    %1459 = vmatpush2.msra.mxu0 0.0
    %1460 = vmatprep.subr.mxu0 0.0
    %1461 = vmatpush2.msra.mxu0 0.0
    %1462 = vmatprep.subr.mxu0 0.0
    %1463 = vmatpush2.msra.mxu0 0.0
    %1464 = vmatprep.subr.mxu0 0.0
    %1465 = vmatpush2.msra.mxu0 0.0
    %1466 = vmatprep.subr.mxu0 0.0
    %1467 = vmatpush2.msra.mxu0 0.0
    %1468 = vmatprep.subr.mxu0 0.0
    %1469 = vmatpush2.msra.mxu0 0.0
    %1470 = vmatprep.subr.mxu0 0.0
    %1471 = vmatpush2.msra.mxu0 0.0
    %1472 = vmatprep.subr.mxu0 0.0
    %1473 = vmatpush2.msra.mxu0 0.0
    %1474 = vmatprep.subr.mxu0 0.0
    %1475 = vmatpush2.msra.mxu0 0.0
    %1476 = vmatprep.subr.mxu0 0.0
    %1477 = vmatpush2.msra.mxu0 0.0
    %1478 = vmatprep.mubr.f32.mxu0 0.0
    %v1479 = vand.u32 %v101, 4294901760
    %1480 = vmatmul.mubr.f32.gmra.mxu0 %v1479
    %v1481 = vpop.f32.mrf.mxu0
    %v1482 = vadd.f32 %v1360, %v1481
    %v1483 = vpop.f32.mrf.mxu0
    %v1484 = vadd.f32 %v1362, %v1483
    %1485 = vdwg.mxu0
    %1486 = vmatprep.subr.mxu0 0.0
    %1487 = vmatpush1.msra.mxu0 0.0
    %1488 = vmatprep.subr.mxu0 0.0
    %1489 = vmatpush1.msra.mxu0 0.0
    %1490 = vmatprep.subr.mxu0 0.0
    %1491 = vmatpush1.msra.mxu0 0.0
    %1492 = vmatprep.subr.mxu0 0.0
    %1493 = vmatpush1.msra.mxu0 0.0
    %1494 = vmatprep.subr.mxu0 0.0
    %1495 = vmatpush1.msra.mxu0 0.0
    %1496 = vmatprep.subr.mxu0 0.0
    %1497 = vmatpush1.msra.mxu0 0.0
    %1498 = vmatprep.subr.mxu0 0.0
    %1499 = vmatpush1.msra.mxu0 0.0
    %1500 = vmatprep.subr.mxu0 0.0
    %1501 = vmatpush1.msra.mxu0 0.0
    %1502 = vmatprep.subr.mxu0 0.0
    %1503 = vmatpush1.msra.mxu0 0.0
    %1504 = vmatprep.subr.mxu0 0.0
    %1505 = vmatpush1.msra.mxu0 0.0
    %1506 = vmatprep.subr.mxu0 0.0
    %1507 = vmatpush1.msra.mxu0 0.0
    %v1508 = vand.u32 %v120, 4294901760
    %v1509 = vsub.f32 %v120, %v1508
    %1510 = vmatprep.subr.mxu0 %v1509
    %v1511 = vand.u32 %v117, 4294901760
    %v1512 = vsub.f32 %v117, %v1511
    %1513 = vmatpush1.msra.mxu0 %v1512
    %v1514 = vand.u32 %v80, 4294901760
    %v1515 = vsub.f32 %v80, %v1514
    %1516 = vmatprep.subr.mxu0 %v1515
    %v1517 = vand.u32 %v79, 4294901760
    %v1518 = vsub.f32 %v79, %v1517
    %1519 = vmatpush1.msra.mxu0 %v1518
    %v1520 = vand.u32 %v68, 4294901760
    %v1521 = vsub.f32 %v68, %v1520
    %1522 = vmatprep.subr.mxu0 %v1521
    %v1523 = vand.u32 %v67, 4294901760
    %v1524 = vsub.f32 %v67, %v1523
    %1525 = vmatpush1.msra.mxu0 %v1524
    %v1526 = vand.u32 %v56, 4294901760
    %v1527 = vsub.f32 %v56, %v1526
    %1528 = vmatprep.subr.mxu0 %v1527
    %v1529 = vand.u32 %v55, 4294901760
    %v1530 = vsub.f32 %v55, %v1529
    %1531 = vmatpush1.msra.mxu0 %v1530
    %v1532 = vand.u32 %v44, 4294901760
    %v1533 = vsub.f32 %v44, %v1532
    %1534 = vmatprep.subr.mxu0 %v1533
    %v1535 = vand.u32 %v43, 4294901760
    %v1536 = vsub.f32 %v43, %v1535
    %1537 = vmatpush1.msra.mxu0 %v1536
    %1538 = vmatprep.subr.mxu0 0.0
    %1539 = vmatpush2.msra.mxu0 0.0
    %1540 = vmatprep.subr.mxu0 0.0
    %1541 = vmatpush2.msra.mxu0 0.0
    %1542 = vmatprep.subr.mxu0 0.0
    %1543 = vmatpush2.msra.mxu0 0.0
    %1544 = vmatprep.subr.mxu0 0.0
    %1545 = vmatpush2.msra.mxu0 0.0
    %1546 = vmatprep.subr.mxu0 0.0
    %1547 = vmatpush2.msra.mxu0 0.0
    %1548 = vmatprep.subr.mxu0 0.0
    %1549 = vmatpush2.msra.mxu0 0.0
    %1550 = vmatprep.subr.mxu0 0.0
    %1551 = vmatpush2.msra.mxu0 0.0
    %1552 = vmatprep.subr.mxu0 0.0
    %1553 = vmatpush2.msra.mxu0 0.0
    %1554 = vmatprep.subr.mxu0 0.0
    %1555 = vmatpush2.msra.mxu0 0.0
    %1556 = vmatprep.subr.mxu0 0.0
    %1557 = vmatpush2.msra.mxu0 0.0
    %1558 = vmatprep.subr.mxu0 0.0
    %1559 = vmatpush2.msra.mxu0 0.0
    %1560 = vmatprep.subr.mxu0 0.0
    %1561 = vmatpush2.msra.mxu0 0.0
    %1562 = vmatprep.subr.mxu0 0.0
    %1563 = vmatpush2.msra.mxu0 0.0
    %1564 = vmatprep.subr.mxu0 0.0
    %1565 = vmatpush2.msra.mxu0 0.0
    %1566 = vmatprep.subr.mxu0 0.0
    %1567 = vmatpush2.msra.mxu0 0.0
    %1568 = vmatprep.subr.mxu0 0.0
    %1569 = vmatpush2.msra.mxu0 0.0
    %1570 = vmatprep.mubr.f32.mxu0 0.0
    %v1571 = vand.u32 %v101, 4294901760
    %v1572 = vsub.f32 %v101, %v1571
    %1573 = vmatmul.mubr.f32.gmra.mxu0 %v1572
    %v1574 = vpop.f32.mrf.mxu0
    %v1575 = vadd.f32 %v1482, %v1574
    %v1576 = vpop.f32.mrf.mxu0
    %v1577 = vadd.f32 %v1484, %v1576
    %1578 = vdwg.mxu0
    %1579 = vmatprep.subr.mxu0 0.0
    %1580 = vmatpush1.msra.mxu0 0.0
    %1581 = vmatprep.subr.mxu0 0.0
    %1582 = vmatpush1.msra.mxu0 0.0
    %1583 = vmatprep.subr.mxu0 0.0
    %1584 = vmatpush1.msra.mxu0 0.0
    %1585 = vmatprep.subr.mxu0 0.0
    %1586 = vmatpush1.msra.mxu0 0.0
    %1587 = vmatprep.subr.mxu0 0.0
    %1588 = vmatpush1.msra.mxu0 0.0
    %1589 = vmatprep.subr.mxu0 0.0
    %1590 = vmatpush1.msra.mxu0 0.0
    %1591 = vmatprep.subr.mxu0 0.0
    %1592 = vmatpush1.msra.mxu0 0.0
    %1593 = vmatprep.subr.mxu0 0.0
    %1594 = vmatpush1.msra.mxu0 0.0
    %1595 = vmatprep.subr.mxu0 0.0
    %1596 = vmatpush1.msra.mxu0 0.0
    %1597 = vmatprep.subr.mxu0 0.0
    %1598 = vmatpush1.msra.mxu0 0.0
    %1599 = vmatprep.subr.mxu0 0.0
    %1600 = vmatpush1.msra.mxu0 0.0
    %v1601 = vand.u32 %v120, 4294901760
    %1602 = vmatprep.subr.mxu0 %v1601
    %v1603 = vand.u32 %v117, 4294901760
    %1604 = vmatpush1.msra.mxu0 %v1603
    %v1605 = vand.u32 %v80, 4294901760
    %1606 = vmatprep.subr.mxu0 %v1605
    %v1607 = vand.u32 %v79, 4294901760
    %1608 = vmatpush1.msra.mxu0 %v1607
    %v1609 = vand.u32 %v68, 4294901760
    %1610 = vmatprep.subr.mxu0 %v1609
    %v1611 = vand.u32 %v67, 4294901760
    %1612 = vmatpush1.msra.mxu0 %v1611
    %v1613 = vand.u32 %v56, 4294901760
    %1614 = vmatprep.subr.mxu0 %v1613
    %v1615 = vand.u32 %v55, 4294901760
    %1616 = vmatpush1.msra.mxu0 %v1615
    %v1617 = vand.u32 %v44, 4294901760
    %1618 = vmatprep.subr.mxu0 %v1617
    %v1619 = vand.u32 %v43, 4294901760
    %1620 = vmatpush1.msra.mxu0 %v1619
    %1621 = vmatprep.subr.mxu0 0.0
    %1622 = vmatpush2.msra.mxu0 0.0
    %1623 = vmatprep.subr.mxu0 0.0
    %1624 = vmatpush2.msra.mxu0 0.0
    %1625 = vmatprep.subr.mxu0 0.0
    %1626 = vmatpush2.msra.mxu0 0.0
    %1627 = vmatprep.subr.mxu0 0.0
    %1628 = vmatpush2.msra.mxu0 0.0
    %1629 = vmatprep.subr.mxu0 0.0
    %1630 = vmatpush2.msra.mxu0 0.0
    %1631 = vmatprep.subr.mxu0 0.0
    %1632 = vmatpush2.msra.mxu0 0.0
    %1633 = vmatprep.subr.mxu0 0.0
    %1634 = vmatpush2.msra.mxu0 0.0
    %1635 = vmatprep.subr.mxu0 0.0
    %1636 = vmatpush2.msra.mxu0 0.0
    %1637 = vmatprep.subr.mxu0 0.0
    %1638 = vmatpush2.msra.mxu0 0.0
    %1639 = vmatprep.subr.mxu0 0.0
    %1640 = vmatpush2.msra.mxu0 0.0
    %1641 = vmatprep.subr.mxu0 0.0
    %1642 = vmatpush2.msra.mxu0 0.0
    %1643 = vmatprep.subr.mxu0 0.0
    %1644 = vmatpush2.msra.mxu0 0.0
    %1645 = vmatprep.subr.mxu0 0.0
    %1646 = vmatpush2.msra.mxu0 0.0
    %1647 = vmatprep.subr.mxu0 0.0
    %1648 = vmatpush2.msra.mxu0 0.0
    %1649 = vmatprep.subr.mxu0 0.0
    %1650 = vmatpush2.msra.mxu0 0.0
    %1651 = vmatprep.subr.mxu0 0.0
    %1652 = vmatpush2.msra.mxu0 0.0
    %1653 = vmatprep.mubr.f32.mxu0 0.0
    %v1654 = vand.u32 %v101, 4294901760
    %v1655 = vsub.f32 %v101, %v1654
    %v1656 = vand.u32 %v1655, 4294901760
    %1657 = vmatmul.mubr.f32.gmra.mxu0 %v1656
    %v1658 = vpop.f32.mrf.mxu0
    %v1659 = vadd.f32 %v1575, %v1658
    %v1660 = vpop.f32.mrf.mxu0
    %v1661 = vadd.f32 %v1577, %v1660
    %1662 = vdwg.mxu0
    %1663 = vmatprep.subr.mxu0 0.0
    %1664 = vmatpush1.msra.mxu0 0.0
    %1665 = vmatprep.subr.mxu0 0.0
    %1666 = vmatpush1.msra.mxu0 0.0
    %1667 = vmatprep.subr.mxu0 0.0
    %1668 = vmatpush1.msra.mxu0 0.0
    %1669 = vmatprep.subr.mxu0 0.0
    %1670 = vmatpush1.msra.mxu0 0.0
    %1671 = vmatprep.subr.mxu0 0.0
    %1672 = vmatpush1.msra.mxu0 0.0
    %1673 = vmatprep.subr.mxu0 0.0
    %1674 = vmatpush1.msra.mxu0 0.0
    %1675 = vmatprep.subr.mxu0 0.0
    %1676 = vmatpush1.msra.mxu0 0.0
    %1677 = vmatprep.subr.mxu0 0.0
    %1678 = vmatpush1.msra.mxu0 0.0
    %1679 = vmatprep.subr.mxu0 0.0
    %1680 = vmatpush1.msra.mxu0 0.0
    %1681 = vmatprep.subr.mxu0 0.0
    %1682 = vmatpush1.msra.mxu0 0.0
    %1683 = vmatprep.subr.mxu0 0.0
    %1684 = vmatpush1.msra.mxu0 0.0
    %v1685 = vand.u32 %v120, 4294901760
    %v1686 = vsub.f32 %v120, %v1685
    %v1687 = vand.u32 %v1686, 4294901760
    %1688 = vmatprep.subr.mxu0 %v1687
    %v1689 = vand.u32 %v117, 4294901760
    %v1690 = vsub.f32 %v117, %v1689
    %v1691 = vand.u32 %v1690, 4294901760
    %1692 = vmatpush1.msra.mxu0 %v1691
    %v1693 = vand.u32 %v80, 4294901760
    %v1694 = vsub.f32 %v80, %v1693
    %v1695 = vand.u32 %v1694, 4294901760
    %1696 = vmatprep.subr.mxu0 %v1695
    %v1697 = vand.u32 %v79, 4294901760
    %v1698 = vsub.f32 %v79, %v1697
    %v1699 = vand.u32 %v1698, 4294901760
    %1700 = vmatpush1.msra.mxu0 %v1699
    %v1701 = vand.u32 %v68, 4294901760
    %v1702 = vsub.f32 %v68, %v1701
    %v1703 = vand.u32 %v1702, 4294901760
    %1704 = vmatprep.subr.mxu0 %v1703
    %v1705 = vand.u32 %v67, 4294901760
    %v1706 = vsub.f32 %v67, %v1705
    %v1707 = vand.u32 %v1706, 4294901760
    %1708 = vmatpush1.msra.mxu0 %v1707
    %v1709 = vand.u32 %v56, 4294901760
    %v1710 = vsub.f32 %v56, %v1709
    %v1711 = vand.u32 %v1710, 4294901760
    %1712 = vmatprep.subr.mxu0 %v1711
    %v1713 = vand.u32 %v55, 4294901760
    %v1714 = vsub.f32 %v55, %v1713
    %v1715 = vand.u32 %v1714, 4294901760
    %1716 = vmatpush1.msra.mxu0 %v1715
    %v1717 = vand.u32 %v44, 4294901760
    %v1718 = vsub.f32 %v44, %v1717
    %v1719 = vand.u32 %v1718, 4294901760
    %1720 = vmatprep.subr.mxu0 %v1719
    %v1721 = vand.u32 %v43, 4294901760
    %v1722 = vsub.f32 %v43, %v1721
    %v1723 = vand.u32 %v1722, 4294901760
    %1724 = vmatpush1.msra.mxu0 %v1723
    %1725 = vmatprep.subr.mxu0 0.0
    %1726 = vmatpush2.msra.mxu0 0.0
    %1727 = vmatprep.subr.mxu0 0.0
    %1728 = vmatpush2.msra.mxu0 0.0
    %1729 = vmatprep.subr.mxu0 0.0
    %1730 = vmatpush2.msra.mxu0 0.0
    %1731 = vmatprep.subr.mxu0 0.0
    %1732 = vmatpush2.msra.mxu0 0.0
    %1733 = vmatprep.subr.mxu0 0.0
    %1734 = vmatpush2.msra.mxu0 0.0
    %1735 = vmatprep.subr.mxu0 0.0
    %1736 = vmatpush2.msra.mxu0 0.0
    %1737 = vmatprep.subr.mxu0 0.0
    %1738 = vmatpush2.msra.mxu0 0.0
    %1739 = vmatprep.subr.mxu0 0.0
    %1740 = vmatpush2.msra.mxu0 0.0
    %1741 = vmatprep.subr.mxu0 0.0
    %1742 = vmatpush2.msra.mxu0 0.0
    %1743 = vmatprep.subr.mxu0 0.0
    %1744 = vmatpush2.msra.mxu0 0.0
    %1745 = vmatprep.subr.mxu0 0.0
    %1746 = vmatpush2.msra.mxu0 0.0
    %1747 = vmatprep.subr.mxu0 0.0
    %1748 = vmatpush2.msra.mxu0 0.0
    %1749 = vmatprep.subr.mxu0 0.0
    %1750 = vmatpush2.msra.mxu0 0.0
    %1751 = vmatprep.subr.mxu0 0.0
    %1752 = vmatpush2.msra.mxu0 0.0
    %1753 = vmatprep.subr.mxu0 0.0
    %1754 = vmatpush2.msra.mxu0 0.0
    %1755 = vmatprep.subr.mxu0 0.0
    %1756 = vmatpush2.msra.mxu0 0.0
    %1757 = vmatprep.mubr.f32.mxu0 0.0
    %v1758 = vand.u32 %v101, 4294901760
    %1759 = vmatmul.mubr.f32.gmra.mxu0 %v1758
    %v1760 = vpop.f32.mrf.mxu0
    %v1761 = vadd.f32 %v1659, %v1760
    %v1762 = vpop.f32.mrf.mxu0
    %v1763 = vadd.f32 %v1661, %v1762
    %1764 = vdwg.mxu0
    %1765 = vmatprep.subr.mxu0 0.0
    %1766 = vmatpush1.msra.mxu0 0.0
    %1767 = vmatprep.subr.mxu0 0.0
    %1768 = vmatpush1.msra.mxu0 0.0
    %1769 = vmatprep.subr.mxu0 0.0
    %1770 = vmatpush1.msra.mxu0 0.0
    %1771 = vmatprep.subr.mxu0 0.0
    %1772 = vmatpush1.msra.mxu0 0.0
    %1773 = vmatprep.subr.mxu0 0.0
    %1774 = vmatpush1.msra.mxu0 0.0
    %1775 = vmatprep.subr.mxu0 0.0
    %1776 = vmatpush1.msra.mxu0 0.0
    %1777 = vmatprep.subr.mxu0 0.0
    %1778 = vmatpush1.msra.mxu0 0.0
    %1779 = vmatprep.subr.mxu0 0.0
    %1780 = vmatpush1.msra.mxu0 0.0
    %1781 = vmatprep.subr.mxu0 0.0
    %1782 = vmatpush1.msra.mxu0 0.0
    %1783 = vmatprep.subr.mxu0 0.0
    %1784 = vmatpush1.msra.mxu0 0.0
    %1785 = vmatprep.subr.mxu0 0.0
    %1786 = vmatpush1.msra.mxu0 0.0
    %v1787 = vand.u32 %v120, 4294901760
    %1788 = vmatprep.subr.mxu0 %v1787
    %v1789 = vand.u32 %v117, 4294901760
    %1790 = vmatpush1.msra.mxu0 %v1789
    %v1791 = vand.u32 %v80, 4294901760
    %1792 = vmatprep.subr.mxu0 %v1791
    %v1793 = vand.u32 %v79, 4294901760
    %1794 = vmatpush1.msra.mxu0 %v1793
    %v1795 = vand.u32 %v68, 4294901760
    %1796 = vmatprep.subr.mxu0 %v1795
    %v1797 = vand.u32 %v67, 4294901760
    %1798 = vmatpush1.msra.mxu0 %v1797
    %v1799 = vand.u32 %v56, 4294901760
    %1800 = vmatprep.subr.mxu0 %v1799
    %v1801 = vand.u32 %v55, 4294901760
    %1802 = vmatpush1.msra.mxu0 %v1801
    %v1803 = vand.u32 %v44, 4294901760
    %1804 = vmatprep.subr.mxu0 %v1803
    %v1805 = vand.u32 %v43, 4294901760
    %1806 = vmatpush1.msra.mxu0 %v1805
    %1807 = vmatprep.subr.mxu0 0.0
    %1808 = vmatpush2.msra.mxu0 0.0
    %1809 = vmatprep.subr.mxu0 0.0
    %1810 = vmatpush2.msra.mxu0 0.0
    %1811 = vmatprep.subr.mxu0 0.0
    %1812 = vmatpush2.msra.mxu0 0.0
    %1813 = vmatprep.subr.mxu0 0.0
    %1814 = vmatpush2.msra.mxu0 0.0
    %1815 = vmatprep.subr.mxu0 0.0
    %1816 = vmatpush2.msra.mxu0 0.0
    %1817 = vmatprep.subr.mxu0 0.0
    %1818 = vmatpush2.msra.mxu0 0.0
    %1819 = vmatprep.subr.mxu0 0.0
    %1820 = vmatpush2.msra.mxu0 0.0
    %1821 = vmatprep.subr.mxu0 0.0
    %1822 = vmatpush2.msra.mxu0 0.0
    %1823 = vmatprep.subr.mxu0 0.0
    %1824 = vmatpush2.msra.mxu0 0.0
    %1825 = vmatprep.subr.mxu0 0.0
    %1826 = vmatpush2.msra.mxu0 0.0
    %1827 = vmatprep.subr.mxu0 0.0
    %1828 = vmatpush2.msra.mxu0 0.0
    %1829 = vmatprep.subr.mxu0 0.0
    %1830 = vmatpush2.msra.mxu0 0.0
    %1831 = vmatprep.subr.mxu0 0.0
    %1832 = vmatpush2.msra.mxu0 0.0
    %1833 = vmatprep.subr.mxu0 0.0
    %1834 = vmatpush2.msra.mxu0 0.0
    %1835 = vmatprep.subr.mxu0 0.0
    %1836 = vmatpush2.msra.mxu0 0.0
    %1837 = vmatprep.subr.mxu0 0.0
    %1838 = vmatpush2.msra.mxu0 0.0
    %1839 = vmatprep.mubr.f32.mxu0 0.0
    %v1840 = vand.u32 %v101, 4294901760
    %1841 = vmatmul.mubr.f32.gmra.mxu0 %v1840
    %v1842 = vpop.f32.mrf.mxu0
    %v1843 = vadd.f32 %v1761, %v1842
    %v1844 = vpop.f32.mrf.mxu0
    %v1845 = vadd.f32 %v1763, %v1844
    %1846 = vdwg.mxu0
    %1847 = vmatprep.subr.mxu0 0.0
    %1848 = vmatpush1.msra.mxu0 0.0
    %1849 = vmatprep.subr.mxu0 0.0
    %1850 = vmatpush1.msra.mxu0 0.0
    %1851 = vmatprep.subr.mxu0 0.0
    %1852 = vmatpush1.msra.mxu0 0.0
    %1853 = vmatprep.subr.mxu0 0.0
    %1854 = vmatpush1.msra.mxu0 0.0
    %1855 = vmatprep.subr.mxu0 0.0
    %1856 = vmatpush1.msra.mxu0 0.0
    %1857 = vmatprep.subr.mxu0 0.0
    %1858 = vmatpush1.msra.mxu0 0.0
    %1859 = vmatprep.subr.mxu0 0.0
    %1860 = vmatpush1.msra.mxu0 0.0
    %1861 = vmatprep.subr.mxu0 0.0
    %1862 = vmatpush1.msra.mxu0 0.0
    %1863 = vmatprep.subr.mxu0 0.0
    %1864 = vmatpush1.msra.mxu0 0.0
    %1865 = vmatprep.subr.mxu0 0.0
    %1866 = vmatpush1.msra.mxu0 0.0
    %1867 = vmatprep.subr.mxu0 0.0
    %1868 = vmatpush1.msra.mxu0 0.0
    %v1869 = vand.u32 %v126, 4294901760
    %1870 = vmatprep.subr.mxu0 %v1869
    %v1871 = vand.u32 %v123, 4294901760
    %1872 = vmatpush1.msra.mxu0 %v1871
    %v1873 = vand.u32 %v82, 4294901760
    %1874 = vmatprep.subr.mxu0 %v1873
    %v1875 = vand.u32 %v81, 4294901760
    %1876 = vmatpush1.msra.mxu0 %v1875
    %v1877 = vand.u32 %v70, 4294901760
    %1878 = vmatprep.subr.mxu0 %v1877
    %v1879 = vand.u32 %v69, 4294901760
    %1880 = vmatpush1.msra.mxu0 %v1879
    %v1881 = vand.u32 %v58, 4294901760
    %1882 = vmatprep.subr.mxu0 %v1881
    %v1883 = vand.u32 %v57, 4294901760
    %1884 = vmatpush1.msra.mxu0 %v1883
    %v1885 = vand.u32 %v46, 4294901760
    %1886 = vmatprep.subr.mxu0 %v1885
    %v1887 = vand.u32 %v45, 4294901760
    %1888 = vmatpush1.msra.mxu0 %v1887
    %1889 = vmatprep.subr.mxu0 0.0
    %1890 = vmatpush2.msra.mxu0 0.0
    %1891 = vmatprep.subr.mxu0 0.0
    %1892 = vmatpush2.msra.mxu0 0.0
    %1893 = vmatprep.subr.mxu0 0.0
    %1894 = vmatpush2.msra.mxu0 0.0
    %1895 = vmatprep.subr.mxu0 0.0
    %1896 = vmatpush2.msra.mxu0 0.0
    %1897 = vmatprep.subr.mxu0 0.0
    %1898 = vmatpush2.msra.mxu0 0.0
    %1899 = vmatprep.subr.mxu0 0.0
    %1900 = vmatpush2.msra.mxu0 0.0
    %1901 = vmatprep.subr.mxu0 0.0
    %1902 = vmatpush2.msra.mxu0 0.0
    %1903 = vmatprep.subr.mxu0 0.0
    %1904 = vmatpush2.msra.mxu0 0.0
    %1905 = vmatprep.subr.mxu0 0.0
    %1906 = vmatpush2.msra.mxu0 0.0
    %1907 = vmatprep.subr.mxu0 0.0
    %1908 = vmatpush2.msra.mxu0 0.0
    %1909 = vmatprep.subr.mxu0 0.0
    %1910 = vmatpush2.msra.mxu0 0.0
    %1911 = vmatprep.subr.mxu0 0.0
    %1912 = vmatpush2.msra.mxu0 0.0
    %1913 = vmatprep.subr.mxu0 0.0
    %1914 = vmatpush2.msra.mxu0 0.0
    %1915 = vmatprep.subr.mxu0 0.0
    %1916 = vmatpush2.msra.mxu0 0.0
    %1917 = vmatprep.subr.mxu0 0.0
    %1918 = vmatpush2.msra.mxu0 0.0
    %1919 = vmatprep.subr.mxu0 0.0
    %1920 = vmatpush2.msra.mxu0 0.0
    %1921 = vmatprep.mubr.f32.mxu0 0.0
    %v1922 = vand.u32 %v101, 4294901760
    %v1923 = vsub.f32 %v101, %v1922
    %v1924 = vand.u32 %v1923, 4294901760
    %v1925 = vsub.f32 %v1923, %v1924
    %v1926 = vand.u32 %v1925, 4294901760
    %1927 = vmatmul.mubr.f32.gmra.mxu0 %v1926
    %v1928 = vpop.f32.mrf.mxu0
    %v1929 = vadd.f32 0.0, %v1928
    %v1930 = vpop.f32.mrf.mxu0
    %v1931 = vadd.f32 0.0, %v1930
    %1932 = vdwg.mxu0
    %1933 = vmatprep.subr.mxu0 0.0
    %1934 = vmatpush1.msra.mxu0 0.0
    %1935 = vmatprep.subr.mxu0 0.0
    %1936 = vmatpush1.msra.mxu0 0.0
    %1937 = vmatprep.subr.mxu0 0.0
    %1938 = vmatpush1.msra.mxu0 0.0
    %1939 = vmatprep.subr.mxu0 0.0
    %1940 = vmatpush1.msra.mxu0 0.0
    %1941 = vmatprep.subr.mxu0 0.0
    %1942 = vmatpush1.msra.mxu0 0.0
    %1943 = vmatprep.subr.mxu0 0.0
    %1944 = vmatpush1.msra.mxu0 0.0
    %1945 = vmatprep.subr.mxu0 0.0
    %1946 = vmatpush1.msra.mxu0 0.0
    %1947 = vmatprep.subr.mxu0 0.0
    %1948 = vmatpush1.msra.mxu0 0.0
    %1949 = vmatprep.subr.mxu0 0.0
    %1950 = vmatpush1.msra.mxu0 0.0
    %1951 = vmatprep.subr.mxu0 0.0
    %1952 = vmatpush1.msra.mxu0 0.0
    %1953 = vmatprep.subr.mxu0 0.0
    %1954 = vmatpush1.msra.mxu0 0.0
    %v1955 = vand.u32 %v126, 4294901760
    %v1956 = vsub.f32 %v126, %v1955
    %v1957 = vand.u32 %v1956, 4294901760
    %v1958 = vsub.f32 %v1956, %v1957
    %v1959 = vand.u32 %v1958, 4294901760
    %1960 = vmatprep.subr.mxu0 %v1959
    %v1961 = vand.u32 %v123, 4294901760
    %v1962 = vsub.f32 %v123, %v1961
    %v1963 = vand.u32 %v1962, 4294901760
    %v1964 = vsub.f32 %v1962, %v1963
    %v1965 = vand.u32 %v1964, 4294901760
    %1966 = vmatpush1.msra.mxu0 %v1965
    %v1967 = vand.u32 %v82, 4294901760
    %v1968 = vsub.f32 %v82, %v1967
    %v1969 = vand.u32 %v1968, 4294901760
    %v1970 = vsub.f32 %v1968, %v1969
    %v1971 = vand.u32 %v1970, 4294901760
    %1972 = vmatprep.subr.mxu0 %v1971
    %v1973 = vand.u32 %v81, 4294901760
    %v1974 = vsub.f32 %v81, %v1973
    %v1975 = vand.u32 %v1974, 4294901760
    %v1976 = vsub.f32 %v1974, %v1975
    %v1977 = vand.u32 %v1976, 4294901760
    %1978 = vmatpush1.msra.mxu0 %v1977
    %v1979 = vand.u32 %v70, 4294901760
    %v1980 = vsub.f32 %v70, %v1979
    %v1981 = vand.u32 %v1980, 4294901760
    %v1982 = vsub.f32 %v1980, %v1981
    %v1983 = vand.u32 %v1982, 4294901760
    %1984 = vmatprep.subr.mxu0 %v1983
    %v1985 = vand.u32 %v69, 4294901760
    %v1986 = vsub.f32 %v69, %v1985
    %v1987 = vand.u32 %v1986, 4294901760
    %v1988 = vsub.f32 %v1986, %v1987
    %v1989 = vand.u32 %v1988, 4294901760
    %1990 = vmatpush1.msra.mxu0 %v1989
    %v1991 = vand.u32 %v58, 4294901760
    %v1992 = vsub.f32 %v58, %v1991
    %v1993 = vand.u32 %v1992, 4294901760
    %v1994 = vsub.f32 %v1992, %v1993
    %v1995 = vand.u32 %v1994, 4294901760
    %1996 = vmatprep.subr.mxu0 %v1995
    %v1997 = vand.u32 %v57, 4294901760
    %v1998 = vsub.f32 %v57, %v1997
    %v1999 = vand.u32 %v1998, 4294901760
    %v2000 = vsub.f32 %v1998, %v1999
    %v2001 = vand.u32 %v2000, 4294901760
    %2002 = vmatpush1.msra.mxu0 %v2001
    %v2003 = vand.u32 %v46, 4294901760
    %v2004 = vsub.f32 %v46, %v2003
    %v2005 = vand.u32 %v2004, 4294901760
    %v2006 = vsub.f32 %v2004, %v2005
    %v2007 = vand.u32 %v2006, 4294901760
    %2008 = vmatprep.subr.mxu0 %v2007
    %v2009 = vand.u32 %v45, 4294901760
    %v2010 = vsub.f32 %v45, %v2009
    %v2011 = vand.u32 %v2010, 4294901760
    %v2012 = vsub.f32 %v2010, %v2011
    %v2013 = vand.u32 %v2012, 4294901760
    %2014 = vmatpush1.msra.mxu0 %v2013
    %2015 = vmatprep.subr.mxu0 0.0
    %2016 = vmatpush2.msra.mxu0 0.0
    %2017 = vmatprep.subr.mxu0 0.0
    %2018 = vmatpush2.msra.mxu0 0.0
    %2019 = vmatprep.subr.mxu0 0.0
    %2020 = vmatpush2.msra.mxu0 0.0
    %2021 = vmatprep.subr.mxu0 0.0
    %2022 = vmatpush2.msra.mxu0 0.0
    %2023 = vmatprep.subr.mxu0 0.0
    %2024 = vmatpush2.msra.mxu0 0.0
    %2025 = vmatprep.subr.mxu0 0.0
    %2026 = vmatpush2.msra.mxu0 0.0
    %2027 = vmatprep.subr.mxu0 0.0
    %2028 = vmatpush2.msra.mxu0 0.0
    %2029 = vmatprep.subr.mxu0 0.0
    %2030 = vmatpush2.msra.mxu0 0.0
    %2031 = vmatprep.subr.mxu0 0.0
    %2032 = vmatpush2.msra.mxu0 0.0
    %2033 = vmatprep.subr.mxu0 0.0
    %2034 = vmatpush2.msra.mxu0 0.0
    %2035 = vmatprep.subr.mxu0 0.0
    %2036 = vmatpush2.msra.mxu0 0.0
    %2037 = vmatprep.subr.mxu0 0.0
    %2038 = vmatpush2.msra.mxu0 0.0
    %2039 = vmatprep.subr.mxu0 0.0
    %2040 = vmatpush2.msra.mxu0 0.0
    %2041 = vmatprep.subr.mxu0 0.0
    %2042 = vmatpush2.msra.mxu0 0.0
    %2043 = vmatprep.subr.mxu0 0.0
    %2044 = vmatpush2.msra.mxu0 0.0
    %2045 = vmatprep.subr.mxu0 0.0
    %2046 = vmatpush2.msra.mxu0 0.0
    %2047 = vmatprep.mubr.f32.mxu0 0.0
    %v2048 = vand.u32 %v101, 4294901760
    %2049 = vmatmul.mubr.f32.gmra.mxu0 %v2048
    %v2050 = vpop.f32.mrf.mxu0
    %v2051 = vadd.f32 %v1929, %v2050
    %v2052 = vpop.f32.mrf.mxu0
    %v2053 = vadd.f32 %v1931, %v2052
    %2054 = vdwg.mxu0
    %2055 = vmatprep.subr.mxu0 0.0
    %2056 = vmatpush1.msra.mxu0 0.0
    %2057 = vmatprep.subr.mxu0 0.0
    %2058 = vmatpush1.msra.mxu0 0.0
    %2059 = vmatprep.subr.mxu0 0.0
    %2060 = vmatpush1.msra.mxu0 0.0
    %2061 = vmatprep.subr.mxu0 0.0
    %2062 = vmatpush1.msra.mxu0 0.0
    %2063 = vmatprep.subr.mxu0 0.0
    %2064 = vmatpush1.msra.mxu0 0.0
    %2065 = vmatprep.subr.mxu0 0.0
    %2066 = vmatpush1.msra.mxu0 0.0
    %2067 = vmatprep.subr.mxu0 0.0
    %2068 = vmatpush1.msra.mxu0 0.0
    %2069 = vmatprep.subr.mxu0 0.0
    %2070 = vmatpush1.msra.mxu0 0.0
    %2071 = vmatprep.subr.mxu0 0.0
    %2072 = vmatpush1.msra.mxu0 0.0
    %2073 = vmatprep.subr.mxu0 0.0
    %2074 = vmatpush1.msra.mxu0 0.0
    %2075 = vmatprep.subr.mxu0 0.0
    %2076 = vmatpush1.msra.mxu0 0.0
    %v2077 = vand.u32 %v126, 4294901760
    %v2078 = vsub.f32 %v126, %v2077
    %2079 = vmatprep.subr.mxu0 %v2078
    %v2080 = vand.u32 %v123, 4294901760
    %v2081 = vsub.f32 %v123, %v2080
    %2082 = vmatpush1.msra.mxu0 %v2081
    %v2083 = vand.u32 %v82, 4294901760
    %v2084 = vsub.f32 %v82, %v2083
    %2085 = vmatprep.subr.mxu0 %v2084
    %v2086 = vand.u32 %v81, 4294901760
    %v2087 = vsub.f32 %v81, %v2086
    %2088 = vmatpush1.msra.mxu0 %v2087
    %v2089 = vand.u32 %v70, 4294901760
    %v2090 = vsub.f32 %v70, %v2089
    %2091 = vmatprep.subr.mxu0 %v2090
    %v2092 = vand.u32 %v69, 4294901760
    %v2093 = vsub.f32 %v69, %v2092
    %2094 = vmatpush1.msra.mxu0 %v2093
    %v2095 = vand.u32 %v58, 4294901760
    %v2096 = vsub.f32 %v58, %v2095
    %2097 = vmatprep.subr.mxu0 %v2096
    %v2098 = vand.u32 %v57, 4294901760
    %v2099 = vsub.f32 %v57, %v2098
    %2100 = vmatpush1.msra.mxu0 %v2099
    %v2101 = vand.u32 %v46, 4294901760
    %v2102 = vsub.f32 %v46, %v2101
    %2103 = vmatprep.subr.mxu0 %v2102
    %v2104 = vand.u32 %v45, 4294901760
    %v2105 = vsub.f32 %v45, %v2104
    %2106 = vmatpush1.msra.mxu0 %v2105
    %2107 = vmatprep.subr.mxu0 0.0
    %2108 = vmatpush2.msra.mxu0 0.0
    %2109 = vmatprep.subr.mxu0 0.0
    %2110 = vmatpush2.msra.mxu0 0.0
    %2111 = vmatprep.subr.mxu0 0.0
    %2112 = vmatpush2.msra.mxu0 0.0
    %2113 = vmatprep.subr.mxu0 0.0
    %2114 = vmatpush2.msra.mxu0 0.0
    %2115 = vmatprep.subr.mxu0 0.0
    %2116 = vmatpush2.msra.mxu0 0.0
    %2117 = vmatprep.subr.mxu0 0.0
    %2118 = vmatpush2.msra.mxu0 0.0
    %2119 = vmatprep.subr.mxu0 0.0
    %2120 = vmatpush2.msra.mxu0 0.0
    %2121 = vmatprep.subr.mxu0 0.0
    %2122 = vmatpush2.msra.mxu0 0.0
    %2123 = vmatprep.subr.mxu0 0.0
    %2124 = vmatpush2.msra.mxu0 0.0
    %2125 = vmatprep.subr.mxu0 0.0
    %2126 = vmatpush2.msra.mxu0 0.0
    %2127 = vmatprep.subr.mxu0 0.0
    %2128 = vmatpush2.msra.mxu0 0.0
    %2129 = vmatprep.subr.mxu0 0.0
    %2130 = vmatpush2.msra.mxu0 0.0
    %2131 = vmatprep.subr.mxu0 0.0
    %2132 = vmatpush2.msra.mxu0 0.0
    %2133 = vmatprep.subr.mxu0 0.0
    %2134 = vmatpush2.msra.mxu0 0.0
    %2135 = vmatprep.subr.mxu0 0.0
    %2136 = vmatpush2.msra.mxu0 0.0
    %2137 = vmatprep.subr.mxu0 0.0
    %2138 = vmatpush2.msra.mxu0 0.0
    %2139 = vmatprep.mubr.f32.mxu0 0.0
    %v2140 = vand.u32 %v101, 4294901760
    %v2141 = vsub.f32 %v101, %v2140
    %2142 = vmatmul.mubr.f32.gmra.mxu0 %v2141
    %v2143 = vpop.f32.mrf.mxu0
    %v2144 = vadd.f32 %v2051, %v2143
    %v2145 = vpop.f32.mrf.mxu0
    %v2146 = vadd.f32 %v2053, %v2145
    %2147 = vdwg.mxu0
    %2148 = vmatprep.subr.mxu0 0.0
    %2149 = vmatpush1.msra.mxu0 0.0
    %2150 = vmatprep.subr.mxu0 0.0
    %2151 = vmatpush1.msra.mxu0 0.0
    %2152 = vmatprep.subr.mxu0 0.0
    %2153 = vmatpush1.msra.mxu0 0.0
    %2154 = vmatprep.subr.mxu0 0.0
    %2155 = vmatpush1.msra.mxu0 0.0
    %2156 = vmatprep.subr.mxu0 0.0
    %2157 = vmatpush1.msra.mxu0 0.0
    %2158 = vmatprep.subr.mxu0 0.0
    %2159 = vmatpush1.msra.mxu0 0.0
    %2160 = vmatprep.subr.mxu0 0.0
    %2161 = vmatpush1.msra.mxu0 0.0
    %2162 = vmatprep.subr.mxu0 0.0
    %2163 = vmatpush1.msra.mxu0 0.0
    %2164 = vmatprep.subr.mxu0 0.0
    %2165 = vmatpush1.msra.mxu0 0.0
    %2166 = vmatprep.subr.mxu0 0.0
    %2167 = vmatpush1.msra.mxu0 0.0
    %2168 = vmatprep.subr.mxu0 0.0
    %2169 = vmatpush1.msra.mxu0 0.0
    %v2170 = vand.u32 %v126, 4294901760
    %2171 = vmatprep.subr.mxu0 %v2170
    %v2172 = vand.u32 %v123, 4294901760
    %2173 = vmatpush1.msra.mxu0 %v2172
    %v2174 = vand.u32 %v82, 4294901760
    %2175 = vmatprep.subr.mxu0 %v2174
    %v2176 = vand.u32 %v81, 4294901760
    %2177 = vmatpush1.msra.mxu0 %v2176
    %v2178 = vand.u32 %v70, 4294901760
    %2179 = vmatprep.subr.mxu0 %v2178
    %v2180 = vand.u32 %v69, 4294901760
    %2181 = vmatpush1.msra.mxu0 %v2180
    %v2182 = vand.u32 %v58, 4294901760
    %2183 = vmatprep.subr.mxu0 %v2182
    %v2184 = vand.u32 %v57, 4294901760
    %2185 = vmatpush1.msra.mxu0 %v2184
    %v2186 = vand.u32 %v46, 4294901760
    %2187 = vmatprep.subr.mxu0 %v2186
    %v2188 = vand.u32 %v45, 4294901760
    %2189 = vmatpush1.msra.mxu0 %v2188
    %2190 = vmatprep.subr.mxu0 0.0
    %2191 = vmatpush2.msra.mxu0 0.0
    %2192 = vmatprep.subr.mxu0 0.0
    %2193 = vmatpush2.msra.mxu0 0.0
    %2194 = vmatprep.subr.mxu0 0.0
    %2195 = vmatpush2.msra.mxu0 0.0
    %2196 = vmatprep.subr.mxu0 0.0
    %2197 = vmatpush2.msra.mxu0 0.0
    %2198 = vmatprep.subr.mxu0 0.0
    %2199 = vmatpush2.msra.mxu0 0.0
    %2200 = vmatprep.subr.mxu0 0.0
    %2201 = vmatpush2.msra.mxu0 0.0
    %2202 = vmatprep.subr.mxu0 0.0
    %2203 = vmatpush2.msra.mxu0 0.0
    %2204 = vmatprep.subr.mxu0 0.0
    %2205 = vmatpush2.msra.mxu0 0.0
    %2206 = vmatprep.subr.mxu0 0.0
    %2207 = vmatpush2.msra.mxu0 0.0
    %2208 = vmatprep.subr.mxu0 0.0
    %2209 = vmatpush2.msra.mxu0 0.0
    %2210 = vmatprep.subr.mxu0 0.0
    %2211 = vmatpush2.msra.mxu0 0.0
    %2212 = vmatprep.subr.mxu0 0.0
    %2213 = vmatpush2.msra.mxu0 0.0
    %2214 = vmatprep.subr.mxu0 0.0
    %2215 = vmatpush2.msra.mxu0 0.0
    %2216 = vmatprep.subr.mxu0 0.0
    %2217 = vmatpush2.msra.mxu0 0.0
    %2218 = vmatprep.subr.mxu0 0.0
    %2219 = vmatpush2.msra.mxu0 0.0
    %2220 = vmatprep.subr.mxu0 0.0
    %2221 = vmatpush2.msra.mxu0 0.0
    %2222 = vmatprep.mubr.f32.mxu0 0.0
    %v2223 = vand.u32 %v101, 4294901760
    %v2224 = vsub.f32 %v101, %v2223
    %v2225 = vand.u32 %v2224, 4294901760
    %2226 = vmatmul.mubr.f32.gmra.mxu0 %v2225
    %v2227 = vpop.f32.mrf.mxu0
    %v2228 = vadd.f32 %v2144, %v2227
    %v2229 = vpop.f32.mrf.mxu0
    %v2230 = vadd.f32 %v2146, %v2229
    %2231 = vdwg.mxu0
    %2232 = vmatprep.subr.mxu0 0.0
    %2233 = vmatpush1.msra.mxu0 0.0
    %2234 = vmatprep.subr.mxu0 0.0
    %2235 = vmatpush1.msra.mxu0 0.0
    %2236 = vmatprep.subr.mxu0 0.0
    %2237 = vmatpush1.msra.mxu0 0.0
    %2238 = vmatprep.subr.mxu0 0.0
    %2239 = vmatpush1.msra.mxu0 0.0
    %2240 = vmatprep.subr.mxu0 0.0
    %2241 = vmatpush1.msra.mxu0 0.0
    %2242 = vmatprep.subr.mxu0 0.0
    %2243 = vmatpush1.msra.mxu0 0.0
    %2244 = vmatprep.subr.mxu0 0.0
    %2245 = vmatpush1.msra.mxu0 0.0
    %2246 = vmatprep.subr.mxu0 0.0
    %2247 = vmatpush1.msra.mxu0 0.0
    %2248 = vmatprep.subr.mxu0 0.0
    %2249 = vmatpush1.msra.mxu0 0.0
    %2250 = vmatprep.subr.mxu0 0.0
    %2251 = vmatpush1.msra.mxu0 0.0
    %2252 = vmatprep.subr.mxu0 0.0
    %2253 = vmatpush1.msra.mxu0 0.0
    %v2254 = vand.u32 %v126, 4294901760
    %v2255 = vsub.f32 %v126, %v2254
    %v2256 = vand.u32 %v2255, 4294901760
    %2257 = vmatprep.subr.mxu0 %v2256
    %v2258 = vand.u32 %v123, 4294901760
    %v2259 = vsub.f32 %v123, %v2258
    %v2260 = vand.u32 %v2259, 4294901760
    %2261 = vmatpush1.msra.mxu0 %v2260
    %v2262 = vand.u32 %v82, 4294901760
    %v2263 = vsub.f32 %v82, %v2262
    %v2264 = vand.u32 %v2263, 4294901760
    %2265 = vmatprep.subr.mxu0 %v2264
    %v2266 = vand.u32 %v81, 4294901760
    %v2267 = vsub.f32 %v81, %v2266
    %v2268 = vand.u32 %v2267, 4294901760
    %2269 = vmatpush1.msra.mxu0 %v2268
    %v2270 = vand.u32 %v70, 4294901760
    %v2271 = vsub.f32 %v70, %v2270
    %v2272 = vand.u32 %v2271, 4294901760
    %2273 = vmatprep.subr.mxu0 %v2272
    %v2274 = vand.u32 %v69, 4294901760
    %v2275 = vsub.f32 %v69, %v2274
    %v2276 = vand.u32 %v2275, 4294901760
    %2277 = vmatpush1.msra.mxu0 %v2276
    %v2278 = vand.u32 %v58, 4294901760
    %v2279 = vsub.f32 %v58, %v2278
    %v2280 = vand.u32 %v2279, 4294901760
    %2281 = vmatprep.subr.mxu0 %v2280
    %v2282 = vand.u32 %v57, 4294901760
    %v2283 = vsub.f32 %v57, %v2282
    %v2284 = vand.u32 %v2283, 4294901760
    %2285 = vmatpush1.msra.mxu0 %v2284
    %v2286 = vand.u32 %v46, 4294901760
    %v2287 = vsub.f32 %v46, %v2286
    %v2288 = vand.u32 %v2287, 4294901760
    %2289 = vmatprep.subr.mxu0 %v2288
    %v2290 = vand.u32 %v45, 4294901760
    %v2291 = vsub.f32 %v45, %v2290
    %v2292 = vand.u32 %v2291, 4294901760
    %2293 = vmatpush1.msra.mxu0 %v2292
    %2294 = vmatprep.subr.mxu0 0.0
    %2295 = vmatpush2.msra.mxu0 0.0
    %2296 = vmatprep.subr.mxu0 0.0
    %2297 = vmatpush2.msra.mxu0 0.0
    %2298 = vmatprep.subr.mxu0 0.0
    %2299 = vmatpush2.msra.mxu0 0.0
    %2300 = vmatprep.subr.mxu0 0.0
    %2301 = vmatpush2.msra.mxu0 0.0
    %2302 = vmatprep.subr.mxu0 0.0
    %2303 = vmatpush2.msra.mxu0 0.0
    %2304 = vmatprep.subr.mxu0 0.0
    %2305 = vmatpush2.msra.mxu0 0.0
    %2306 = vmatprep.subr.mxu0 0.0
    %2307 = vmatpush2.msra.mxu0 0.0
    %2308 = vmatprep.subr.mxu0 0.0
    %2309 = vmatpush2.msra.mxu0 0.0
    %2310 = vmatprep.subr.mxu0 0.0
    %2311 = vmatpush2.msra.mxu0 0.0
    %2312 = vmatprep.subr.mxu0 0.0
    %2313 = vmatpush2.msra.mxu0 0.0
    %2314 = vmatprep.subr.mxu0 0.0
    %2315 = vmatpush2.msra.mxu0 0.0
    %2316 = vmatprep.subr.mxu0 0.0
    %2317 = vmatpush2.msra.mxu0 0.0
    %2318 = vmatprep.subr.mxu0 0.0
    %2319 = vmatpush2.msra.mxu0 0.0
    %2320 = vmatprep.subr.mxu0 0.0
    %2321 = vmatpush2.msra.mxu0 0.0
    %2322 = vmatprep.subr.mxu0 0.0
    %2323 = vmatpush2.msra.mxu0 0.0
    %2324 = vmatprep.subr.mxu0 0.0
    %2325 = vmatpush2.msra.mxu0 0.0
    %2326 = vmatprep.mubr.f32.mxu0 0.0
    %v2327 = vand.u32 %v101, 4294901760
    %2328 = vmatmul.mubr.f32.gmra.mxu0 %v2327
    %v2329 = vpop.f32.mrf.mxu0
    %v2330 = vadd.f32 %v2228, %v2329
    %v2331 = vpop.f32.mrf.mxu0
    %v2332 = vadd.f32 %v2230, %v2331
    %2333 = vdwg.mxu0
    %2334 = vmatprep.subr.mxu0 0.0
    %2335 = vmatpush1.msra.mxu0 0.0
    %2336 = vmatprep.subr.mxu0 0.0
    %2337 = vmatpush1.msra.mxu0 0.0
    %2338 = vmatprep.subr.mxu0 0.0
    %2339 = vmatpush1.msra.mxu0 0.0
    %2340 = vmatprep.subr.mxu0 0.0
    %2341 = vmatpush1.msra.mxu0 0.0
    %2342 = vmatprep.subr.mxu0 0.0
    %2343 = vmatpush1.msra.mxu0 0.0
    %2344 = vmatprep.subr.mxu0 0.0
    %2345 = vmatpush1.msra.mxu0 0.0
    %2346 = vmatprep.subr.mxu0 0.0
    %2347 = vmatpush1.msra.mxu0 0.0
    %2348 = vmatprep.subr.mxu0 0.0
    %2349 = vmatpush1.msra.mxu0 0.0
    %2350 = vmatprep.subr.mxu0 0.0
    %2351 = vmatpush1.msra.mxu0 0.0
    %2352 = vmatprep.subr.mxu0 0.0
    %2353 = vmatpush1.msra.mxu0 0.0
    %2354 = vmatprep.subr.mxu0 0.0
    %2355 = vmatpush1.msra.mxu0 0.0
    %v2356 = vand.u32 %v126, 4294901760
    %2357 = vmatprep.subr.mxu0 %v2356
    %v2358 = vand.u32 %v123, 4294901760
    %2359 = vmatpush1.msra.mxu0 %v2358
    %v2360 = vand.u32 %v82, 4294901760
    %2361 = vmatprep.subr.mxu0 %v2360
    %v2362 = vand.u32 %v81, 4294901760
    %2363 = vmatpush1.msra.mxu0 %v2362
    %v2364 = vand.u32 %v70, 4294901760
    %2365 = vmatprep.subr.mxu0 %v2364
    %v2366 = vand.u32 %v69, 4294901760
    %2367 = vmatpush1.msra.mxu0 %v2366
    %v2368 = vand.u32 %v58, 4294901760
    %2369 = vmatprep.subr.mxu0 %v2368
    %v2370 = vand.u32 %v57, 4294901760
    %2371 = vmatpush1.msra.mxu0 %v2370
    %v2372 = vand.u32 %v46, 4294901760
    %2373 = vmatprep.subr.mxu0 %v2372
    %v2374 = vand.u32 %v45, 4294901760
    %2375 = vmatpush1.msra.mxu0 %v2374
    %2376 = vmatprep.subr.mxu0 0.0
    %2377 = vmatpush2.msra.mxu0 0.0
    %2378 = vmatprep.subr.mxu0 0.0
    %2379 = vmatpush2.msra.mxu0 0.0
    %2380 = vmatprep.subr.mxu0 0.0
    %2381 = vmatpush2.msra.mxu0 0.0
    %2382 = vmatprep.subr.mxu0 0.0
    %2383 = vmatpush2.msra.mxu0 0.0
    %2384 = vmatprep.subr.mxu0 0.0
    %2385 = vmatpush2.msra.mxu0 0.0
    %2386 = vmatprep.subr.mxu0 0.0
    %2387 = vmatpush2.msra.mxu0 0.0
    %2388 = vmatprep.subr.mxu0 0.0
    %2389 = vmatpush2.msra.mxu0 0.0
    %2390 = vmatprep.subr.mxu0 0.0
    %2391 = vmatpush2.msra.mxu0 0.0
    %2392 = vmatprep.subr.mxu0 0.0
    %2393 = vmatpush2.msra.mxu0 0.0
    %2394 = vmatprep.subr.mxu0 0.0
    %2395 = vmatpush2.msra.mxu0 0.0
    %2396 = vmatprep.subr.mxu0 0.0
    %2397 = vmatpush2.msra.mxu0 0.0
    %2398 = vmatprep.subr.mxu0 0.0
    %2399 = vmatpush2.msra.mxu0 0.0
    %2400 = vmatprep.subr.mxu0 0.0
    %2401 = vmatpush2.msra.mxu0 0.0
    %2402 = vmatprep.subr.mxu0 0.0
    %2403 = vmatpush2.msra.mxu0 0.0
    %2404 = vmatprep.subr.mxu0 0.0
    %2405 = vmatpush2.msra.mxu0 0.0
    %2406 = vmatprep.subr.mxu0 0.0
    %2407 = vmatpush2.msra.mxu0 0.0
    %2408 = vmatprep.mubr.f32.mxu0 0.0
    %v2409 = vand.u32 %v101, 4294901760
    %2410 = vmatmul.mubr.f32.gmra.mxu0 %v2409
    %v2411 = vpop.f32.mrf.mxu0
    %v2412 = vadd.f32 %v2330, %v2411
    %v2413 = vpop.f32.mrf.mxu0
    %v2414 = vadd.f32 %v2332, %v2413
    %2415 = vdwg.mxu0
    %2416 = vmatprep.subr.mxu0 0.0
    %2417 = vmatpush1.msra.mxu0 0.0
    %2418 = vmatprep.subr.mxu0 0.0
    %2419 = vmatpush1.msra.mxu0 0.0
    %2420 = vmatprep.subr.mxu0 0.0
    %2421 = vmatpush1.msra.mxu0 0.0
    %2422 = vmatprep.subr.mxu0 0.0
    %2423 = vmatpush1.msra.mxu0 0.0
    %2424 = vmatprep.subr.mxu0 0.0
    %2425 = vmatpush1.msra.mxu0 0.0
    %2426 = vmatprep.subr.mxu0 0.0
    %2427 = vmatpush1.msra.mxu0 0.0
    %2428 = vmatprep.subr.mxu0 0.0
    %2429 = vmatpush1.msra.mxu0 0.0
    %2430 = vmatprep.subr.mxu0 0.0
    %2431 = vmatpush1.msra.mxu0 0.0
    %2432 = vmatprep.subr.mxu0 0.0
    %2433 = vmatpush1.msra.mxu0 0.0
    %2434 = vmatprep.subr.mxu0 0.0
    %2435 = vmatpush1.msra.mxu0 0.0
    %2436 = vmatprep.subr.mxu0 0.0
    %2437 = vmatpush1.msra.mxu0 0.0
    %v2438 = vand.u32 %v132, 4294901760
    %2439 = vmatprep.subr.mxu0 %v2438
    %v2440 = vand.u32 %v129, 4294901760
    %2441 = vmatpush1.msra.mxu0 %v2440
    %v2442 = vand.u32 %v84, 4294901760
    %2443 = vmatprep.subr.mxu0 %v2442
    %v2444 = vand.u32 %v83, 4294901760
    %2445 = vmatpush1.msra.mxu0 %v2444
    %v2446 = vand.u32 %v72, 4294901760
    %2447 = vmatprep.subr.mxu0 %v2446
    %v2448 = vand.u32 %v71, 4294901760
    %2449 = vmatpush1.msra.mxu0 %v2448
    %v2450 = vand.u32 %v60, 4294901760
    %2451 = vmatprep.subr.mxu0 %v2450
    %v2452 = vand.u32 %v59, 4294901760
    %2453 = vmatpush1.msra.mxu0 %v2452
    %v2454 = vand.u32 %v48, 4294901760
    %2455 = vmatprep.subr.mxu0 %v2454
    %v2456 = vand.u32 %v47, 4294901760
    %2457 = vmatpush1.msra.mxu0 %v2456
    %2458 = vmatprep.subr.mxu0 0.0
    %2459 = vmatpush2.msra.mxu0 0.0
    %2460 = vmatprep.subr.mxu0 0.0
    %2461 = vmatpush2.msra.mxu0 0.0
    %2462 = vmatprep.subr.mxu0 0.0
    %2463 = vmatpush2.msra.mxu0 0.0
    %2464 = vmatprep.subr.mxu0 0.0
    %2465 = vmatpush2.msra.mxu0 0.0
    %2466 = vmatprep.subr.mxu0 0.0
    %2467 = vmatpush2.msra.mxu0 0.0
    %2468 = vmatprep.subr.mxu0 0.0
    %2469 = vmatpush2.msra.mxu0 0.0
    %2470 = vmatprep.subr.mxu0 0.0
    %2471 = vmatpush2.msra.mxu0 0.0
    %2472 = vmatprep.subr.mxu0 0.0
    %2473 = vmatpush2.msra.mxu0 0.0
    %2474 = vmatprep.subr.mxu0 0.0
    %2475 = vmatpush2.msra.mxu0 0.0
    %2476 = vmatprep.subr.mxu0 0.0
    %2477 = vmatpush2.msra.mxu0 0.0
    %2478 = vmatprep.subr.mxu0 0.0
    %2479 = vmatpush2.msra.mxu0 0.0
    %2480 = vmatprep.subr.mxu0 0.0
    %2481 = vmatpush2.msra.mxu0 0.0
    %2482 = vmatprep.subr.mxu0 0.0
    %2483 = vmatpush2.msra.mxu0 0.0
    %2484 = vmatprep.subr.mxu0 0.0
    %2485 = vmatpush2.msra.mxu0 0.0
    %2486 = vmatprep.subr.mxu0 0.0
    %2487 = vmatpush2.msra.mxu0 0.0
    %2488 = vmatprep.subr.mxu0 0.0
    %2489 = vmatpush2.msra.mxu0 0.0
    %2490 = vmatprep.mubr.f32.mxu0 0.0
    %v2491 = vand.u32 %v101, 4294901760
    %v2492 = vsub.f32 %v101, %v2491
    %v2493 = vand.u32 %v2492, 4294901760
    %v2494 = vsub.f32 %v2492, %v2493
    %v2495 = vand.u32 %v2494, 4294901760
    %2496 = vmatmul.mubr.f32.gmra.mxu0 %v2495
    %v2497 = vpop.f32.mrf.mxu0
    %v2498 = vadd.f32 0.0, %v2497
    %v2499 = vpop.f32.mrf.mxu0
    %v2500 = vadd.f32 0.0, %v2499
    %2501 = vdwg.mxu0
    %2502 = vmatprep.subr.mxu0 0.0
    %2503 = vmatpush1.msra.mxu0 0.0
    %2504 = vmatprep.subr.mxu0 0.0
    %2505 = vmatpush1.msra.mxu0 0.0
    %2506 = vmatprep.subr.mxu0 0.0
    %2507 = vmatpush1.msra.mxu0 0.0
    %2508 = vmatprep.subr.mxu0 0.0
    %2509 = vmatpush1.msra.mxu0 0.0
    %2510 = vmatprep.subr.mxu0 0.0
    %2511 = vmatpush1.msra.mxu0 0.0
    %2512 = vmatprep.subr.mxu0 0.0
    %2513 = vmatpush1.msra.mxu0 0.0
    %2514 = vmatprep.subr.mxu0 0.0
    %2515 = vmatpush1.msra.mxu0 0.0
    %2516 = vmatprep.subr.mxu0 0.0
    %2517 = vmatpush1.msra.mxu0 0.0
    %2518 = vmatprep.subr.mxu0 0.0
    %2519 = vmatpush1.msra.mxu0 0.0
    %2520 = vmatprep.subr.mxu0 0.0
    %2521 = vmatpush1.msra.mxu0 0.0
    %2522 = vmatprep.subr.mxu0 0.0
    %2523 = vmatpush1.msra.mxu0 0.0
    %v2524 = vand.u32 %v132, 4294901760
    %v2525 = vsub.f32 %v132, %v2524
    %v2526 = vand.u32 %v2525, 4294901760
    %v2527 = vsub.f32 %v2525, %v2526
    %v2528 = vand.u32 %v2527, 4294901760
    %2529 = vmatprep.subr.mxu0 %v2528
    %v2530 = vand.u32 %v129, 4294901760
    %v2531 = vsub.f32 %v129, %v2530
    %v2532 = vand.u32 %v2531, 4294901760
    %v2533 = vsub.f32 %v2531, %v2532
    %v2534 = vand.u32 %v2533, 4294901760
    %2535 = vmatpush1.msra.mxu0 %v2534
    %v2536 = vand.u32 %v84, 4294901760
    %v2537 = vsub.f32 %v84, %v2536
    %v2538 = vand.u32 %v2537, 4294901760
    %v2539 = vsub.f32 %v2537, %v2538
    %v2540 = vand.u32 %v2539, 4294901760
    %2541 = vmatprep.subr.mxu0 %v2540
    %v2542 = vand.u32 %v83, 4294901760
    %v2543 = vsub.f32 %v83, %v2542
    %v2544 = vand.u32 %v2543, 4294901760
    %v2545 = vsub.f32 %v2543, %v2544
    %v2546 = vand.u32 %v2545, 4294901760
    %2547 = vmatpush1.msra.mxu0 %v2546
    %v2548 = vand.u32 %v72, 4294901760
    %v2549 = vsub.f32 %v72, %v2548
    %v2550 = vand.u32 %v2549, 4294901760
    %v2551 = vsub.f32 %v2549, %v2550
    %v2552 = vand.u32 %v2551, 4294901760
    %2553 = vmatprep.subr.mxu0 %v2552
    %v2554 = vand.u32 %v71, 4294901760
    %v2555 = vsub.f32 %v71, %v2554
    %v2556 = vand.u32 %v2555, 4294901760
    %v2557 = vsub.f32 %v2555, %v2556
    %v2558 = vand.u32 %v2557, 4294901760
    %2559 = vmatpush1.msra.mxu0 %v2558
    %v2560 = vand.u32 %v60, 4294901760
    %v2561 = vsub.f32 %v60, %v2560
    %v2562 = vand.u32 %v2561, 4294901760
    %v2563 = vsub.f32 %v2561, %v2562
    %v2564 = vand.u32 %v2563, 4294901760
    %2565 = vmatprep.subr.mxu0 %v2564
    %v2566 = vand.u32 %v59, 4294901760
    %v2567 = vsub.f32 %v59, %v2566
    %v2568 = vand.u32 %v2567, 4294901760
    %v2569 = vsub.f32 %v2567, %v2568
    %v2570 = vand.u32 %v2569, 4294901760
    %2571 = vmatpush1.msra.mxu0 %v2570
    %v2572 = vand.u32 %v48, 4294901760
    %v2573 = vsub.f32 %v48, %v2572
    %v2574 = vand.u32 %v2573, 4294901760
    %v2575 = vsub.f32 %v2573, %v2574
    %v2576 = vand.u32 %v2575, 4294901760
    %2577 = vmatprep.subr.mxu0 %v2576
    %v2578 = vand.u32 %v47, 4294901760
    %v2579 = vsub.f32 %v47, %v2578
    %v2580 = vand.u32 %v2579, 4294901760
    %v2581 = vsub.f32 %v2579, %v2580
    %v2582 = vand.u32 %v2581, 4294901760
    %2583 = vmatpush1.msra.mxu0 %v2582
    %2584 = vmatprep.subr.mxu0 0.0
    %2585 = vmatpush2.msra.mxu0 0.0
    %2586 = vmatprep.subr.mxu0 0.0
    %2587 = vmatpush2.msra.mxu0 0.0
    %2588 = vmatprep.subr.mxu0 0.0
    %2589 = vmatpush2.msra.mxu0 0.0
    %2590 = vmatprep.subr.mxu0 0.0
    %2591 = vmatpush2.msra.mxu0 0.0
    %2592 = vmatprep.subr.mxu0 0.0
    %2593 = vmatpush2.msra.mxu0 0.0
    %2594 = vmatprep.subr.mxu0 0.0
    %2595 = vmatpush2.msra.mxu0 0.0
    %2596 = vmatprep.subr.mxu0 0.0
    %2597 = vmatpush2.msra.mxu0 0.0
    %2598 = vmatprep.subr.mxu0 0.0
    %2599 = vmatpush2.msra.mxu0 0.0
    %2600 = vmatprep.subr.mxu0 0.0
    %2601 = vmatpush2.msra.mxu0 0.0
    %2602 = vmatprep.subr.mxu0 0.0
    %2603 = vmatpush2.msra.mxu0 0.0
    %2604 = vmatprep.subr.mxu0 0.0
    %2605 = vmatpush2.msra.mxu0 0.0
    %2606 = vmatprep.subr.mxu0 0.0
    %2607 = vmatpush2.msra.mxu0 0.0
    %2608 = vmatprep.subr.mxu0 0.0
    %2609 = vmatpush2.msra.mxu0 0.0
    %2610 = vmatprep.subr.mxu0 0.0
    %2611 = vmatpush2.msra.mxu0 0.0
    %2612 = vmatprep.subr.mxu0 0.0
    %2613 = vmatpush2.msra.mxu0 0.0
    %2614 = vmatprep.subr.mxu0 0.0
    %2615 = vmatpush2.msra.mxu0 0.0
    %2616 = vmatprep.mubr.f32.mxu0 0.0
    %v2617 = vand.u32 %v101, 4294901760
    %2618 = vmatmul.mubr.f32.gmra.mxu0 %v2617
    %v2619 = vpop.f32.mrf.mxu0
    %v2620 = vadd.f32 %v2498, %v2619
    %v2621 = vpop.f32.mrf.mxu0
    %v2622 = vadd.f32 %v2500, %v2621
    %2623 = vdwg.mxu0
    %2624 = vmatprep.subr.mxu0 0.0
    %2625 = vmatpush1.msra.mxu0 0.0
    %2626 = vmatprep.subr.mxu0 0.0
    %2627 = vmatpush1.msra.mxu0 0.0
    %2628 = vmatprep.subr.mxu0 0.0
    %2629 = vmatpush1.msra.mxu0 0.0
    %2630 = vmatprep.subr.mxu0 0.0
    %2631 = vmatpush1.msra.mxu0 0.0
    %2632 = vmatprep.subr.mxu0 0.0
    %2633 = vmatpush1.msra.mxu0 0.0
    %2634 = vmatprep.subr.mxu0 0.0
    %2635 = vmatpush1.msra.mxu0 0.0
    %2636 = vmatprep.subr.mxu0 0.0
    %2637 = vmatpush1.msra.mxu0 0.0
    %2638 = vmatprep.subr.mxu0 0.0
    %2639 = vmatpush1.msra.mxu0 0.0
    %2640 = vmatprep.subr.mxu0 0.0
    %2641 = vmatpush1.msra.mxu0 0.0
    %2642 = vmatprep.subr.mxu0 0.0
    %2643 = vmatpush1.msra.mxu0 0.0
    %2644 = vmatprep.subr.mxu0 0.0
    %2645 = vmatpush1.msra.mxu0 0.0
    %v2646 = vand.u32 %v132, 4294901760
    %v2647 = vsub.f32 %v132, %v2646
    %2648 = vmatprep.subr.mxu0 %v2647
    %v2649 = vand.u32 %v129, 4294901760
    %v2650 = vsub.f32 %v129, %v2649
    %2651 = vmatpush1.msra.mxu0 %v2650
    %v2652 = vand.u32 %v84, 4294901760
    %v2653 = vsub.f32 %v84, %v2652
    %2654 = vmatprep.subr.mxu0 %v2653
    %v2655 = vand.u32 %v83, 4294901760
    %v2656 = vsub.f32 %v83, %v2655
    %2657 = vmatpush1.msra.mxu0 %v2656
    %v2658 = vand.u32 %v72, 4294901760
    %v2659 = vsub.f32 %v72, %v2658
    %2660 = vmatprep.subr.mxu0 %v2659
    %v2661 = vand.u32 %v71, 4294901760
    %v2662 = vsub.f32 %v71, %v2661
    %2663 = vmatpush1.msra.mxu0 %v2662
    %v2664 = vand.u32 %v60, 4294901760
    %v2665 = vsub.f32 %v60, %v2664
    %2666 = vmatprep.subr.mxu0 %v2665
    %v2667 = vand.u32 %v59, 4294901760
    %v2668 = vsub.f32 %v59, %v2667
    %2669 = vmatpush1.msra.mxu0 %v2668
    %v2670 = vand.u32 %v48, 4294901760
    %v2671 = vsub.f32 %v48, %v2670
    %2672 = vmatprep.subr.mxu0 %v2671
    %v2673 = vand.u32 %v47, 4294901760
    %v2674 = vsub.f32 %v47, %v2673
    %2675 = vmatpush1.msra.mxu0 %v2674
    %2676 = vmatprep.subr.mxu0 0.0
    %2677 = vmatpush2.msra.mxu0 0.0
    %2678 = vmatprep.subr.mxu0 0.0
    %2679 = vmatpush2.msra.mxu0 0.0
    %2680 = vmatprep.subr.mxu0 0.0
    %2681 = vmatpush2.msra.mxu0 0.0
    %2682 = vmatprep.subr.mxu0 0.0
    %2683 = vmatpush2.msra.mxu0 0.0
    %2684 = vmatprep.subr.mxu0 0.0
    %2685 = vmatpush2.msra.mxu0 0.0
    %2686 = vmatprep.subr.mxu0 0.0
    %2687 = vmatpush2.msra.mxu0 0.0
    %2688 = vmatprep.subr.mxu0 0.0
    %2689 = vmatpush2.msra.mxu0 0.0
    %2690 = vmatprep.subr.mxu0 0.0
    %2691 = vmatpush2.msra.mxu0 0.0
    %2692 = vmatprep.subr.mxu0 0.0
    %2693 = vmatpush2.msra.mxu0 0.0
    %2694 = vmatprep.subr.mxu0 0.0
    %2695 = vmatpush2.msra.mxu0 0.0
    %2696 = vmatprep.subr.mxu0 0.0
    %2697 = vmatpush2.msra.mxu0 0.0
    %2698 = vmatprep.subr.mxu0 0.0
    %2699 = vmatpush2.msra.mxu0 0.0
    %2700 = vmatprep.subr.mxu0 0.0
    %2701 = vmatpush2.msra.mxu0 0.0
    %2702 = vmatprep.subr.mxu0 0.0
    %2703 = vmatpush2.msra.mxu0 0.0
    %2704 = vmatprep.subr.mxu0 0.0
    %2705 = vmatpush2.msra.mxu0 0.0
    %2706 = vmatprep.subr.mxu0 0.0
    %2707 = vmatpush2.msra.mxu0 0.0
    %2708 = vmatprep.mubr.f32.mxu0 0.0
    %v2709 = vand.u32 %v101, 4294901760
    %v2710 = vsub.f32 %v101, %v2709
    %2711 = vmatmul.mubr.f32.gmra.mxu0 %v2710
    %v2712 = vpop.f32.mrf.mxu0
    %v2713 = vadd.f32 %v2620, %v2712
    %v2714 = vpop.f32.mrf.mxu0
    %v2715 = vadd.f32 %v2622, %v2714
    %2716 = vdwg.mxu0
    %2717 = vmatprep.subr.mxu0 0.0
    %2718 = vmatpush1.msra.mxu0 0.0
    %2719 = vmatprep.subr.mxu0 0.0
    %2720 = vmatpush1.msra.mxu0 0.0
    %2721 = vmatprep.subr.mxu0 0.0
    %2722 = vmatpush1.msra.mxu0 0.0
    %2723 = vmatprep.subr.mxu0 0.0
    %2724 = vmatpush1.msra.mxu0 0.0
    %2725 = vmatprep.subr.mxu0 0.0
    %2726 = vmatpush1.msra.mxu0 0.0
    %2727 = vmatprep.subr.mxu0 0.0
    %2728 = vmatpush1.msra.mxu0 0.0
    %2729 = vmatprep.subr.mxu0 0.0
    %2730 = vmatpush1.msra.mxu0 0.0
    %2731 = vmatprep.subr.mxu0 0.0
    %2732 = vmatpush1.msra.mxu0 0.0
    %2733 = vmatprep.subr.mxu0 0.0
    %2734 = vmatpush1.msra.mxu0 0.0
    %2735 = vmatprep.subr.mxu0 0.0
    %2736 = vmatpush1.msra.mxu0 0.0
    %2737 = vmatprep.subr.mxu0 0.0
    %2738 = vmatpush1.msra.mxu0 0.0
    %v2739 = vand.u32 %v132, 4294901760
    %2740 = vmatprep.subr.mxu0 %v2739
    %v2741 = vand.u32 %v129, 4294901760
    %2742 = vmatpush1.msra.mxu0 %v2741
    %v2743 = vand.u32 %v84, 4294901760
    %2744 = vmatprep.subr.mxu0 %v2743
    %v2745 = vand.u32 %v83, 4294901760
    %2746 = vmatpush1.msra.mxu0 %v2745
    %v2747 = vand.u32 %v72, 4294901760
    %2748 = vmatprep.subr.mxu0 %v2747
    %v2749 = vand.u32 %v71, 4294901760
    %2750 = vmatpush1.msra.mxu0 %v2749
    %v2751 = vand.u32 %v60, 4294901760
    %2752 = vmatprep.subr.mxu0 %v2751
    %v2753 = vand.u32 %v59, 4294901760
    %2754 = vmatpush1.msra.mxu0 %v2753
    %v2755 = vand.u32 %v48, 4294901760
    %2756 = vmatprep.subr.mxu0 %v2755
    %v2757 = vand.u32 %v47, 4294901760
    %2758 = vmatpush1.msra.mxu0 %v2757
    %2759 = vmatprep.subr.mxu0 0.0
    %2760 = vmatpush2.msra.mxu0 0.0
    %2761 = vmatprep.subr.mxu0 0.0
    %2762 = vmatpush2.msra.mxu0 0.0
    %2763 = vmatprep.subr.mxu0 0.0
    %2764 = vmatpush2.msra.mxu0 0.0
    %2765 = vmatprep.subr.mxu0 0.0
    %2766 = vmatpush2.msra.mxu0 0.0
    %2767 = vmatprep.subr.mxu0 0.0
    %2768 = vmatpush2.msra.mxu0 0.0
    %2769 = vmatprep.subr.mxu0 0.0
    %2770 = vmatpush2.msra.mxu0 0.0
    %2771 = vmatprep.subr.mxu0 0.0
    %2772 = vmatpush2.msra.mxu0 0.0
    %2773 = vmatprep.subr.mxu0 0.0
    %2774 = vmatpush2.msra.mxu0 0.0
    %2775 = vmatprep.subr.mxu0 0.0
    %2776 = vmatpush2.msra.mxu0 0.0
    %2777 = vmatprep.subr.mxu0 0.0
    %2778 = vmatpush2.msra.mxu0 0.0
    %2779 = vmatprep.subr.mxu0 0.0
    %2780 = vmatpush2.msra.mxu0 0.0
    %2781 = vmatprep.subr.mxu0 0.0
    %2782 = vmatpush2.msra.mxu0 0.0
    %2783 = vmatprep.subr.mxu0 0.0
    %2784 = vmatpush2.msra.mxu0 0.0
    %2785 = vmatprep.subr.mxu0 0.0
    %2786 = vmatpush2.msra.mxu0 0.0
    %2787 = vmatprep.subr.mxu0 0.0
    %2788 = vmatpush2.msra.mxu0 0.0
    %2789 = vmatprep.subr.mxu0 0.0
    %2790 = vmatpush2.msra.mxu0 0.0
    %2791 = vmatprep.mubr.f32.mxu0 0.0
    %v2792 = vand.u32 %v101, 4294901760
    %v2793 = vsub.f32 %v101, %v2792
    %v2794 = vand.u32 %v2793, 4294901760
    %2795 = vmatmul.mubr.f32.gmra.mxu0 %v2794
    %v2796 = vpop.f32.mrf.mxu0
    %v2797 = vadd.f32 %v2713, %v2796
    %v2798 = vpop.f32.mrf.mxu0
    %v2799 = vadd.f32 %v2715, %v2798
    %2800 = vdwg.mxu0
    %2801 = vmatprep.subr.mxu0 0.0
    %2802 = vmatpush1.msra.mxu0 0.0
    %2803 = vmatprep.subr.mxu0 0.0
    %2804 = vmatpush1.msra.mxu0 0.0
    %2805 = vmatprep.subr.mxu0 0.0
    %2806 = vmatpush1.msra.mxu0 0.0
    %2807 = vmatprep.subr.mxu0 0.0
    %2808 = vmatpush1.msra.mxu0 0.0
    %2809 = vmatprep.subr.mxu0 0.0
    %2810 = vmatpush1.msra.mxu0 0.0
    %2811 = vmatprep.subr.mxu0 0.0
    %2812 = vmatpush1.msra.mxu0 0.0
    %2813 = vmatprep.subr.mxu0 0.0
    %2814 = vmatpush1.msra.mxu0 0.0
    %2815 = vmatprep.subr.mxu0 0.0
    %2816 = vmatpush1.msra.mxu0 0.0
    %2817 = vmatprep.subr.mxu0 0.0
    %2818 = vmatpush1.msra.mxu0 0.0
    %2819 = vmatprep.subr.mxu0 0.0
    %2820 = vmatpush1.msra.mxu0 0.0
    %2821 = vmatprep.subr.mxu0 0.0
    %2822 = vmatpush1.msra.mxu0 0.0
    %v2823 = vand.u32 %v132, 4294901760
    %v2824 = vsub.f32 %v132, %v2823
    %v2825 = vand.u32 %v2824, 4294901760
    %2826 = vmatprep.subr.mxu0 %v2825
    %v2827 = vand.u32 %v129, 4294901760
    %v2828 = vsub.f32 %v129, %v2827
    %v2829 = vand.u32 %v2828, 4294901760
    %2830 = vmatpush1.msra.mxu0 %v2829
    %v2831 = vand.u32 %v84, 4294901760
    %v2832 = vsub.f32 %v84, %v2831
    %v2833 = vand.u32 %v2832, 4294901760
    %2834 = vmatprep.subr.mxu0 %v2833
    %v2835 = vand.u32 %v83, 4294901760
    %v2836 = vsub.f32 %v83, %v2835
    %v2837 = vand.u32 %v2836, 4294901760
    %2838 = vmatpush1.msra.mxu0 %v2837
    %v2839 = vand.u32 %v72, 4294901760
    %v2840 = vsub.f32 %v72, %v2839
    %v2841 = vand.u32 %v2840, 4294901760
    %2842 = vmatprep.subr.mxu0 %v2841
    %v2843 = vand.u32 %v71, 4294901760
    %v2844 = vsub.f32 %v71, %v2843
    %v2845 = vand.u32 %v2844, 4294901760
    %2846 = vmatpush1.msra.mxu0 %v2845
    %v2847 = vand.u32 %v60, 4294901760
    %v2848 = vsub.f32 %v60, %v2847
    %v2849 = vand.u32 %v2848, 4294901760
    %2850 = vmatprep.subr.mxu0 %v2849
    %v2851 = vand.u32 %v59, 4294901760
    %v2852 = vsub.f32 %v59, %v2851
    %v2853 = vand.u32 %v2852, 4294901760
    %2854 = vmatpush1.msra.mxu0 %v2853
    %v2855 = vand.u32 %v48, 4294901760
    %v2856 = vsub.f32 %v48, %v2855
    %v2857 = vand.u32 %v2856, 4294901760
    %2858 = vmatprep.subr.mxu0 %v2857
    %v2859 = vand.u32 %v47, 4294901760
    %v2860 = vsub.f32 %v47, %v2859
    %v2861 = vand.u32 %v2860, 4294901760
    %2862 = vmatpush1.msra.mxu0 %v2861
    %2863 = vmatprep.subr.mxu0 0.0
    %2864 = vmatpush2.msra.mxu0 0.0
    %2865 = vmatprep.subr.mxu0 0.0
    %2866 = vmatpush2.msra.mxu0 0.0
    %2867 = vmatprep.subr.mxu0 0.0
    %2868 = vmatpush2.msra.mxu0 0.0
    %2869 = vmatprep.subr.mxu0 0.0
    %2870 = vmatpush2.msra.mxu0 0.0
    %2871 = vmatprep.subr.mxu0 0.0
    %2872 = vmatpush2.msra.mxu0 0.0
    %2873 = vmatprep.subr.mxu0 0.0
    %2874 = vmatpush2.msra.mxu0 0.0
    %2875 = vmatprep.subr.mxu0 0.0
    %2876 = vmatpush2.msra.mxu0 0.0
    %2877 = vmatprep.subr.mxu0 0.0
    %2878 = vmatpush2.msra.mxu0 0.0
    %2879 = vmatprep.subr.mxu0 0.0
    %2880 = vmatpush2.msra.mxu0 0.0
    %2881 = vmatprep.subr.mxu0 0.0
    %2882 = vmatpush2.msra.mxu0 0.0
    %2883 = vmatprep.subr.mxu0 0.0
    %2884 = vmatpush2.msra.mxu0 0.0
    %2885 = vmatprep.subr.mxu0 0.0
    %2886 = vmatpush2.msra.mxu0 0.0
    %2887 = vmatprep.subr.mxu0 0.0
    %2888 = vmatpush2.msra.mxu0 0.0
    %2889 = vmatprep.subr.mxu0 0.0
    %2890 = vmatpush2.msra.mxu0 0.0
    %2891 = vmatprep.subr.mxu0 0.0
    %2892 = vmatpush2.msra.mxu0 0.0
    %2893 = vmatprep.subr.mxu0 0.0
    %2894 = vmatpush2.msra.mxu0 0.0
    %2895 = vmatprep.mubr.f32.mxu0 0.0
    %v2896 = vand.u32 %v101, 4294901760
    %2897 = vmatmul.mubr.f32.gmra.mxu0 %v2896
    %v2898 = vpop.f32.mrf.mxu0
    %v2899 = vadd.f32 %v2797, %v2898
    %v2900 = vpop.f32.mrf.mxu0
    %v2901 = vadd.f32 %v2799, %v2900
    %2902 = vdwg.mxu0
    %2903 = vmatprep.subr.mxu0 0.0
    %2904 = vmatpush1.msra.mxu0 0.0
    %2905 = vmatprep.subr.mxu0 0.0
    %2906 = vmatpush1.msra.mxu0 0.0
    %2907 = vmatprep.subr.mxu0 0.0
    %2908 = vmatpush1.msra.mxu0 0.0
    %2909 = vmatprep.subr.mxu0 0.0
    %2910 = vmatpush1.msra.mxu0 0.0
    %2911 = vmatprep.subr.mxu0 0.0
    %2912 = vmatpush1.msra.mxu0 0.0
    %2913 = vmatprep.subr.mxu0 0.0
    %2914 = vmatpush1.msra.mxu0 0.0
    %2915 = vmatprep.subr.mxu0 0.0
    %2916 = vmatpush1.msra.mxu0 0.0
    %2917 = vmatprep.subr.mxu0 0.0
    %2918 = vmatpush1.msra.mxu0 0.0
    %2919 = vmatprep.subr.mxu0 0.0
    %2920 = vmatpush1.msra.mxu0 0.0
    %2921 = vmatprep.subr.mxu0 0.0
    %2922 = vmatpush1.msra.mxu0 0.0
    %2923 = vmatprep.subr.mxu0 0.0
    %2924 = vmatpush1.msra.mxu0 0.0
    %v2925 = vand.u32 %v132, 4294901760
    %2926 = vmatprep.subr.mxu0 %v2925
    %v2927 = vand.u32 %v129, 4294901760
    %2928 = vmatpush1.msra.mxu0 %v2927
    %v2929 = vand.u32 %v84, 4294901760
    %2930 = vmatprep.subr.mxu0 %v2929
    %v2931 = vand.u32 %v83, 4294901760
    %2932 = vmatpush1.msra.mxu0 %v2931
    %v2933 = vand.u32 %v72, 4294901760
    %2934 = vmatprep.subr.mxu0 %v2933
    %v2935 = vand.u32 %v71, 4294901760
    %2936 = vmatpush1.msra.mxu0 %v2935
    %v2937 = vand.u32 %v60, 4294901760
    %2938 = vmatprep.subr.mxu0 %v2937
    %v2939 = vand.u32 %v59, 4294901760
    %2940 = vmatpush1.msra.mxu0 %v2939
    %v2941 = vand.u32 %v48, 4294901760
    %2942 = vmatprep.subr.mxu0 %v2941
    %v2943 = vand.u32 %v47, 4294901760
    %2944 = vmatpush1.msra.mxu0 %v2943
    %2945 = vmatprep.subr.mxu0 0.0
    %2946 = vmatpush2.msra.mxu0 0.0
    %2947 = vmatprep.subr.mxu0 0.0
    %2948 = vmatpush2.msra.mxu0 0.0
    %2949 = vmatprep.subr.mxu0 0.0
    %2950 = vmatpush2.msra.mxu0 0.0
    %2951 = vmatprep.subr.mxu0 0.0
    %2952 = vmatpush2.msra.mxu0 0.0
    %2953 = vmatprep.subr.mxu0 0.0
    %2954 = vmatpush2.msra.mxu0 0.0
    %2955 = vmatprep.subr.mxu0 0.0
    %2956 = vmatpush2.msra.mxu0 0.0
    %2957 = vmatprep.subr.mxu0 0.0
    %2958 = vmatpush2.msra.mxu0 0.0
    %2959 = vmatprep.subr.mxu0 0.0
    %2960 = vmatpush2.msra.mxu0 0.0
    %2961 = vmatprep.subr.mxu0 0.0
    %2962 = vmatpush2.msra.mxu0 0.0
    %2963 = vmatprep.subr.mxu0 0.0
    %2964 = vmatpush2.msra.mxu0 0.0
    %2965 = vmatprep.subr.mxu0 0.0
    %2966 = vmatpush2.msra.mxu0 0.0
    %2967 = vmatprep.subr.mxu0 0.0
    %2968 = vmatpush2.msra.mxu0 0.0
    %2969 = vmatprep.subr.mxu0 0.0
    %2970 = vmatpush2.msra.mxu0 0.0
    %2971 = vmatprep.subr.mxu0 0.0
    %2972 = vmatpush2.msra.mxu0 0.0
    %2973 = vmatprep.subr.mxu0 0.0
    %2974 = vmatpush2.msra.mxu0 0.0
    %2975 = vmatprep.subr.mxu0 0.0
    %2976 = vmatpush2.msra.mxu0 0.0
    %2977 = vmatprep.mubr.f32.mxu0 0.0
    %v2978 = vand.u32 %v101, 4294901760
    %2979 = vmatmul.mubr.f32.gmra.mxu0 %v2978
    %v2980 = vpop.f32.mrf.mxu0
    %v2981 = vadd.f32 %v2899, %v2980
    %v2982 = vpop.f32.mrf.mxu0
    %v2983 = vadd.f32 %v2901, %v2982
    %2984 = vdwg.mxu0
    %2985 = vmatprep.subr.mxu0 0.0
    %2986 = vmatpush1.msra.mxu0 0.0
    %2987 = vmatprep.subr.mxu0 0.0
    %2988 = vmatpush1.msra.mxu0 0.0
    %2989 = vmatprep.subr.mxu0 0.0
    %2990 = vmatpush1.msra.mxu0 0.0
    %2991 = vmatprep.subr.mxu0 0.0
    %2992 = vmatpush1.msra.mxu0 0.0
    %2993 = vmatprep.subr.mxu0 0.0
    %2994 = vmatpush1.msra.mxu0 0.0
    %2995 = vmatprep.subr.mxu0 0.0
    %2996 = vmatpush1.msra.mxu0 0.0
    %2997 = vmatprep.subr.mxu0 0.0
    %2998 = vmatpush1.msra.mxu0 0.0
    %2999 = vmatprep.subr.mxu0 0.0
    %3000 = vmatpush1.msra.mxu0 0.0
    %3001 = vmatprep.subr.mxu0 0.0
    %3002 = vmatpush1.msra.mxu0 0.0
    %3003 = vmatprep.subr.mxu0 0.0
    %3004 = vmatpush1.msra.mxu0 0.0
    %3005 = vmatprep.subr.mxu0 0.0
    %3006 = vmatpush1.msra.mxu0 0.0
    %v3007 = vand.u32 %v138, 4294901760
    %3008 = vmatprep.subr.mxu0 %v3007
    %v3009 = vand.u32 %v135, 4294901760
    %3010 = vmatpush1.msra.mxu0 %v3009
    %v3011 = vand.u32 %v86, 4294901760
    %3012 = vmatprep.subr.mxu0 %v3011
    %v3013 = vand.u32 %v85, 4294901760
    %3014 = vmatpush1.msra.mxu0 %v3013
    %v3015 = vand.u32 %v74, 4294901760
    %3016 = vmatprep.subr.mxu0 %v3015
    %v3017 = vand.u32 %v73, 4294901760
    %3018 = vmatpush1.msra.mxu0 %v3017
    %v3019 = vand.u32 %v62, 4294901760
    %3020 = vmatprep.subr.mxu0 %v3019
    %v3021 = vand.u32 %v61, 4294901760
    %3022 = vmatpush1.msra.mxu0 %v3021
    %v3023 = vand.u32 %v50, 4294901760
    %3024 = vmatprep.subr.mxu0 %v3023
    %v3025 = vand.u32 %v49, 4294901760
    %3026 = vmatpush1.msra.mxu0 %v3025
    %3027 = vmatprep.subr.mxu0 0.0
    %3028 = vmatpush2.msra.mxu0 0.0
    %3029 = vmatprep.subr.mxu0 0.0
    %3030 = vmatpush2.msra.mxu0 0.0
    %3031 = vmatprep.subr.mxu0 0.0
    %3032 = vmatpush2.msra.mxu0 0.0
    %3033 = vmatprep.subr.mxu0 0.0
    %3034 = vmatpush2.msra.mxu0 0.0
    %3035 = vmatprep.subr.mxu0 0.0
    %3036 = vmatpush2.msra.mxu0 0.0
    %3037 = vmatprep.subr.mxu0 0.0
    %3038 = vmatpush2.msra.mxu0 0.0
    %3039 = vmatprep.subr.mxu0 0.0
    %3040 = vmatpush2.msra.mxu0 0.0
    %3041 = vmatprep.subr.mxu0 0.0
    %3042 = vmatpush2.msra.mxu0 0.0
    %3043 = vmatprep.subr.mxu0 0.0
    %3044 = vmatpush2.msra.mxu0 0.0
    %3045 = vmatprep.subr.mxu0 0.0
    %3046 = vmatpush2.msra.mxu0 0.0
    %3047 = vmatprep.subr.mxu0 0.0
    %3048 = vmatpush2.msra.mxu0 0.0
    %3049 = vmatprep.subr.mxu0 0.0
    %3050 = vmatpush2.msra.mxu0 0.0
    %3051 = vmatprep.subr.mxu0 0.0
    %3052 = vmatpush2.msra.mxu0 0.0
    %3053 = vmatprep.subr.mxu0 0.0
    %3054 = vmatpush2.msra.mxu0 0.0
    %3055 = vmatprep.subr.mxu0 0.0
    %3056 = vmatpush2.msra.mxu0 0.0
    %3057 = vmatprep.subr.mxu0 0.0
    %3058 = vmatpush2.msra.mxu0 0.0
    %3059 = vmatprep.mubr.f32.mxu0 0.0
    %v3060 = vand.u32 %v101, 4294901760
    %v3061 = vsub.f32 %v101, %v3060
    %v3062 = vand.u32 %v3061, 4294901760
    %v3063 = vsub.f32 %v3061, %v3062
    %v3064 = vand.u32 %v3063, 4294901760
    %3065 = vmatmul.mubr.f32.gmra.mxu0 %v3064
    %v3066 = vpop.f32.mrf.mxu0
    %v3067 = vadd.f32 0.0, %v3066
    %v3068 = vpop.f32.mrf.mxu0
    %v3069 = vadd.f32 0.0, %v3068
    %3070 = vdwg.mxu0
    %3071 = vmatprep.subr.mxu0 0.0
    %3072 = vmatpush1.msra.mxu0 0.0
    %3073 = vmatprep.subr.mxu0 0.0
    %3074 = vmatpush1.msra.mxu0 0.0
    %3075 = vmatprep.subr.mxu0 0.0
    %3076 = vmatpush1.msra.mxu0 0.0
    %3077 = vmatprep.subr.mxu0 0.0
    %3078 = vmatpush1.msra.mxu0 0.0
    %3079 = vmatprep.subr.mxu0 0.0
    %3080 = vmatpush1.msra.mxu0 0.0
    %3081 = vmatprep.subr.mxu0 0.0
    %3082 = vmatpush1.msra.mxu0 0.0
    %3083 = vmatprep.subr.mxu0 0.0
    %3084 = vmatpush1.msra.mxu0 0.0
    %3085 = vmatprep.subr.mxu0 0.0
    %3086 = vmatpush1.msra.mxu0 0.0
    %3087 = vmatprep.subr.mxu0 0.0
    %3088 = vmatpush1.msra.mxu0 0.0
    %3089 = vmatprep.subr.mxu0 0.0
    %3090 = vmatpush1.msra.mxu0 0.0
    %3091 = vmatprep.subr.mxu0 0.0
    %3092 = vmatpush1.msra.mxu0 0.0
    %v3093 = vand.u32 %v138, 4294901760
    %v3094 = vsub.f32 %v138, %v3093
    %v3095 = vand.u32 %v3094, 4294901760
    %v3096 = vsub.f32 %v3094, %v3095
    %v3097 = vand.u32 %v3096, 4294901760
    %3098 = vmatprep.subr.mxu0 %v3097
    %v3099 = vand.u32 %v135, 4294901760
    %v3100 = vsub.f32 %v135, %v3099
    %v3101 = vand.u32 %v3100, 4294901760
    %v3102 = vsub.f32 %v3100, %v3101
    %v3103 = vand.u32 %v3102, 4294901760
    %3104 = vmatpush1.msra.mxu0 %v3103
    %v3105 = vand.u32 %v86, 4294901760
    %v3106 = vsub.f32 %v86, %v3105
    %v3107 = vand.u32 %v3106, 4294901760
    %v3108 = vsub.f32 %v3106, %v3107
    %v3109 = vand.u32 %v3108, 4294901760
    %3110 = vmatprep.subr.mxu0 %v3109
    %v3111 = vand.u32 %v85, 4294901760
    %v3112 = vsub.f32 %v85, %v3111
    %v3113 = vand.u32 %v3112, 4294901760
    %v3114 = vsub.f32 %v3112, %v3113
    %v3115 = vand.u32 %v3114, 4294901760
    %3116 = vmatpush1.msra.mxu0 %v3115
    %v3117 = vand.u32 %v74, 4294901760
    %v3118 = vsub.f32 %v74, %v3117
    %v3119 = vand.u32 %v3118, 4294901760
    %v3120 = vsub.f32 %v3118, %v3119
    %v3121 = vand.u32 %v3120, 4294901760
    %3122 = vmatprep.subr.mxu0 %v3121
    %v3123 = vand.u32 %v73, 4294901760
    %v3124 = vsub.f32 %v73, %v3123
    %v3125 = vand.u32 %v3124, 4294901760
    %v3126 = vsub.f32 %v3124, %v3125
    %v3127 = vand.u32 %v3126, 4294901760
    %3128 = vmatpush1.msra.mxu0 %v3127
    %v3129 = vand.u32 %v62, 4294901760
    %v3130 = vsub.f32 %v62, %v3129
    %v3131 = vand.u32 %v3130, 4294901760
    %v3132 = vsub.f32 %v3130, %v3131
    %v3133 = vand.u32 %v3132, 4294901760
    %3134 = vmatprep.subr.mxu0 %v3133
    %v3135 = vand.u32 %v61, 4294901760
    %v3136 = vsub.f32 %v61, %v3135
    %v3137 = vand.u32 %v3136, 4294901760
    %v3138 = vsub.f32 %v3136, %v3137
    %v3139 = vand.u32 %v3138, 4294901760
    %3140 = vmatpush1.msra.mxu0 %v3139
    %v3141 = vand.u32 %v50, 4294901760
    %v3142 = vsub.f32 %v50, %v3141
    %v3143 = vand.u32 %v3142, 4294901760
    %v3144 = vsub.f32 %v3142, %v3143
    %v3145 = vand.u32 %v3144, 4294901760
    %3146 = vmatprep.subr.mxu0 %v3145
    %v3147 = vand.u32 %v49, 4294901760
    %v3148 = vsub.f32 %v49, %v3147
    %v3149 = vand.u32 %v3148, 4294901760
    %v3150 = vsub.f32 %v3148, %v3149
    %v3151 = vand.u32 %v3150, 4294901760
    %3152 = vmatpush1.msra.mxu0 %v3151
    %3153 = vmatprep.subr.mxu0 0.0
    %3154 = vmatpush2.msra.mxu0 0.0
    %3155 = vmatprep.subr.mxu0 0.0
    %3156 = vmatpush2.msra.mxu0 0.0
    %3157 = vmatprep.subr.mxu0 0.0
    %3158 = vmatpush2.msra.mxu0 0.0
    %3159 = vmatprep.subr.mxu0 0.0
    %3160 = vmatpush2.msra.mxu0 0.0
    %3161 = vmatprep.subr.mxu0 0.0
    %3162 = vmatpush2.msra.mxu0 0.0
    %3163 = vmatprep.subr.mxu0 0.0
    %3164 = vmatpush2.msra.mxu0 0.0
    %3165 = vmatprep.subr.mxu0 0.0
    %3166 = vmatpush2.msra.mxu0 0.0
    %3167 = vmatprep.subr.mxu0 0.0
    %3168 = vmatpush2.msra.mxu0 0.0
    %3169 = vmatprep.subr.mxu0 0.0
    %3170 = vmatpush2.msra.mxu0 0.0
    %3171 = vmatprep.subr.mxu0 0.0
    %3172 = vmatpush2.msra.mxu0 0.0
    %3173 = vmatprep.subr.mxu0 0.0
    %3174 = vmatpush2.msra.mxu0 0.0
    %3175 = vmatprep.subr.mxu0 0.0
    %3176 = vmatpush2.msra.mxu0 0.0
    %3177 = vmatprep.subr.mxu0 0.0
    %3178 = vmatpush2.msra.mxu0 0.0
    %3179 = vmatprep.subr.mxu0 0.0
    %3180 = vmatpush2.msra.mxu0 0.0
    %3181 = vmatprep.subr.mxu0 0.0
    %3182 = vmatpush2.msra.mxu0 0.0
    %3183 = vmatprep.subr.mxu0 0.0
    %3184 = vmatpush2.msra.mxu0 0.0
    %3185 = vmatprep.mubr.f32.mxu0 0.0
    %v3186 = vand.u32 %v101, 4294901760
    %3187 = vmatmul.mubr.f32.gmra.mxu0 %v3186
    %v3188 = vpop.f32.mrf.mxu0
    %v3189 = vadd.f32 %v3067, %v3188
    %v3190 = vpop.f32.mrf.mxu0
    %v3191 = vadd.f32 %v3069, %v3190
    %3192 = vdwg.mxu0
    %3193 = vmatprep.subr.mxu0 0.0
    %3194 = vmatpush1.msra.mxu0 0.0
    %3195 = vmatprep.subr.mxu0 0.0
    %3196 = vmatpush1.msra.mxu0 0.0
    %3197 = vmatprep.subr.mxu0 0.0
    %3198 = vmatpush1.msra.mxu0 0.0
    %3199 = vmatprep.subr.mxu0 0.0
    %3200 = vmatpush1.msra.mxu0 0.0
    %3201 = vmatprep.subr.mxu0 0.0
    %3202 = vmatpush1.msra.mxu0 0.0
    %3203 = vmatprep.subr.mxu0 0.0
    %3204 = vmatpush1.msra.mxu0 0.0
    %3205 = vmatprep.subr.mxu0 0.0
    %3206 = vmatpush1.msra.mxu0 0.0
    %3207 = vmatprep.subr.mxu0 0.0
    %3208 = vmatpush1.msra.mxu0 0.0
    %3209 = vmatprep.subr.mxu0 0.0
    %3210 = vmatpush1.msra.mxu0 0.0
    %3211 = vmatprep.subr.mxu0 0.0
    %3212 = vmatpush1.msra.mxu0 0.0
    %3213 = vmatprep.subr.mxu0 0.0
    %3214 = vmatpush1.msra.mxu0 0.0
    %v3215 = vand.u32 %v138, 4294901760
    %v3216 = vsub.f32 %v138, %v3215
    %3217 = vmatprep.subr.mxu0 %v3216
    %v3218 = vand.u32 %v135, 4294901760
    %v3219 = vsub.f32 %v135, %v3218
    %3220 = vmatpush1.msra.mxu0 %v3219
    %v3221 = vand.u32 %v86, 4294901760
    %v3222 = vsub.f32 %v86, %v3221
    %3223 = vmatprep.subr.mxu0 %v3222
    %v3224 = vand.u32 %v85, 4294901760
    %v3225 = vsub.f32 %v85, %v3224
    %3226 = vmatpush1.msra.mxu0 %v3225
    %v3227 = vand.u32 %v74, 4294901760
    %v3228 = vsub.f32 %v74, %v3227
    %3229 = vmatprep.subr.mxu0 %v3228
    %v3230 = vand.u32 %v73, 4294901760
    %v3231 = vsub.f32 %v73, %v3230
    %3232 = vmatpush1.msra.mxu0 %v3231
    %v3233 = vand.u32 %v62, 4294901760
    %v3234 = vsub.f32 %v62, %v3233
    %3235 = vmatprep.subr.mxu0 %v3234
    %v3236 = vand.u32 %v61, 4294901760
    %v3237 = vsub.f32 %v61, %v3236
    %3238 = vmatpush1.msra.mxu0 %v3237
    %v3239 = vand.u32 %v50, 4294901760
    %v3240 = vsub.f32 %v50, %v3239
    %3241 = vmatprep.subr.mxu0 %v3240
    %v3242 = vand.u32 %v49, 4294901760
    %v3243 = vsub.f32 %v49, %v3242
    %3244 = vmatpush1.msra.mxu0 %v3243
    %3245 = vmatprep.subr.mxu0 0.0
    %3246 = vmatpush2.msra.mxu0 0.0
    %3247 = vmatprep.subr.mxu0 0.0
    %3248 = vmatpush2.msra.mxu0 0.0
    %3249 = vmatprep.subr.mxu0 0.0
    %3250 = vmatpush2.msra.mxu0 0.0
    %3251 = vmatprep.subr.mxu0 0.0
    %3252 = vmatpush2.msra.mxu0 0.0
    %3253 = vmatprep.subr.mxu0 0.0
    %3254 = vmatpush2.msra.mxu0 0.0
    %3255 = vmatprep.subr.mxu0 0.0
    %3256 = vmatpush2.msra.mxu0 0.0
    %3257 = vmatprep.subr.mxu0 0.0
    %3258 = vmatpush2.msra.mxu0 0.0
    %3259 = vmatprep.subr.mxu0 0.0
    %3260 = vmatpush2.msra.mxu0 0.0
    %3261 = vmatprep.subr.mxu0 0.0
    %3262 = vmatpush2.msra.mxu0 0.0
    %3263 = vmatprep.subr.mxu0 0.0
    %3264 = vmatpush2.msra.mxu0 0.0
    %3265 = vmatprep.subr.mxu0 0.0
    %3266 = vmatpush2.msra.mxu0 0.0
    %3267 = vmatprep.subr.mxu0 0.0
    %3268 = vmatpush2.msra.mxu0 0.0
    %3269 = vmatprep.subr.mxu0 0.0
    %3270 = vmatpush2.msra.mxu0 0.0
    %3271 = vmatprep.subr.mxu0 0.0
    %3272 = vmatpush2.msra.mxu0 0.0
    %3273 = vmatprep.subr.mxu0 0.0
    %3274 = vmatpush2.msra.mxu0 0.0
    %3275 = vmatprep.subr.mxu0 0.0
    %3276 = vmatpush2.msra.mxu0 0.0
    %3277 = vmatprep.mubr.f32.mxu0 0.0
    %v3278 = vand.u32 %v101, 4294901760
    %v3279 = vsub.f32 %v101, %v3278
    %3280 = vmatmul.mubr.f32.gmra.mxu0 %v3279
    %v3281 = vpop.f32.mrf.mxu0
    %v3282 = vadd.f32 %v3189, %v3281
    %v3283 = vpop.f32.mrf.mxu0
    %v3284 = vadd.f32 %v3191, %v3283
    %3285 = vdwg.mxu0
    %3286 = vmatprep.subr.mxu0 0.0
    %3287 = vmatpush1.msra.mxu0 0.0
    %3288 = vmatprep.subr.mxu0 0.0
    %3289 = vmatpush1.msra.mxu0 0.0
    %3290 = vmatprep.subr.mxu0 0.0
    %3291 = vmatpush1.msra.mxu0 0.0
    %3292 = vmatprep.subr.mxu0 0.0
    %3293 = vmatpush1.msra.mxu0 0.0
    %3294 = vmatprep.subr.mxu0 0.0
    %3295 = vmatpush1.msra.mxu0 0.0
    %3296 = vmatprep.subr.mxu0 0.0
    %3297 = vmatpush1.msra.mxu0 0.0
    %3298 = vmatprep.subr.mxu0 0.0
    %3299 = vmatpush1.msra.mxu0 0.0
    %3300 = vmatprep.subr.mxu0 0.0
    %3301 = vmatpush1.msra.mxu0 0.0
    %3302 = vmatprep.subr.mxu0 0.0
    %3303 = vmatpush1.msra.mxu0 0.0
    %3304 = vmatprep.subr.mxu0 0.0
    %3305 = vmatpush1.msra.mxu0 0.0
    %3306 = vmatprep.subr.mxu0 0.0
    %3307 = vmatpush1.msra.mxu0 0.0
    %v3308 = vand.u32 %v138, 4294901760
    %3309 = vmatprep.subr.mxu0 %v3308
    %v3310 = vand.u32 %v135, 4294901760
    %3311 = vmatpush1.msra.mxu0 %v3310
    %v3312 = vand.u32 %v86, 4294901760
    %3313 = vmatprep.subr.mxu0 %v3312
    %v3314 = vand.u32 %v85, 4294901760
    %3315 = vmatpush1.msra.mxu0 %v3314
    %v3316 = vand.u32 %v74, 4294901760
    %3317 = vmatprep.subr.mxu0 %v3316
    %v3318 = vand.u32 %v73, 4294901760
    %3319 = vmatpush1.msra.mxu0 %v3318
    %v3320 = vand.u32 %v62, 4294901760
    %3321 = vmatprep.subr.mxu0 %v3320
    %v3322 = vand.u32 %v61, 4294901760
    %3323 = vmatpush1.msra.mxu0 %v3322
    %v3324 = vand.u32 %v50, 4294901760
    %3325 = vmatprep.subr.mxu0 %v3324
    %v3326 = vand.u32 %v49, 4294901760
    %3327 = vmatpush1.msra.mxu0 %v3326
    %3328 = vmatprep.subr.mxu0 0.0
    %3329 = vmatpush2.msra.mxu0 0.0
    %3330 = vmatprep.subr.mxu0 0.0
    %3331 = vmatpush2.msra.mxu0 0.0
    %3332 = vmatprep.subr.mxu0 0.0
    %3333 = vmatpush2.msra.mxu0 0.0
    %3334 = vmatprep.subr.mxu0 0.0
    %3335 = vmatpush2.msra.mxu0 0.0
    %3336 = vmatprep.subr.mxu0 0.0
    %3337 = vmatpush2.msra.mxu0 0.0
    %3338 = vmatprep.subr.mxu0 0.0
    %3339 = vmatpush2.msra.mxu0 0.0
    %3340 = vmatprep.subr.mxu0 0.0
    %3341 = vmatpush2.msra.mxu0 0.0
    %3342 = vmatprep.subr.mxu0 0.0
    %3343 = vmatpush2.msra.mxu0 0.0
    %3344 = vmatprep.subr.mxu0 0.0
    %3345 = vmatpush2.msra.mxu0 0.0
    %3346 = vmatprep.subr.mxu0 0.0
    %3347 = vmatpush2.msra.mxu0 0.0
    %3348 = vmatprep.subr.mxu0 0.0
    %3349 = vmatpush2.msra.mxu0 0.0
    %3350 = vmatprep.subr.mxu0 0.0
    %3351 = vmatpush2.msra.mxu0 0.0
    %3352 = vmatprep.subr.mxu0 0.0
    %3353 = vmatpush2.msra.mxu0 0.0
    %3354 = vmatprep.subr.mxu0 0.0
    %3355 = vmatpush2.msra.mxu0 0.0
    %3356 = vmatprep.subr.mxu0 0.0
    %3357 = vmatpush2.msra.mxu0 0.0
    %3358 = vmatprep.subr.mxu0 0.0
    %3359 = vmatpush2.msra.mxu0 0.0
    %3360 = vmatprep.mubr.f32.mxu0 0.0
    %v3361 = vand.u32 %v101, 4294901760
    %v3362 = vsub.f32 %v101, %v3361
    %v3363 = vand.u32 %v3362, 4294901760
    %3364 = vmatmul.mubr.f32.gmra.mxu0 %v3363
    %v3365 = vpop.f32.mrf.mxu0
    %v3366 = vadd.f32 %v3282, %v3365
    %v3367 = vpop.f32.mrf.mxu0
    %v3368 = vadd.f32 %v3284, %v3367
    %3369 = vdwg.mxu0
    %3370 = vmatprep.subr.mxu0 0.0
    %3371 = vmatpush1.msra.mxu0 0.0
    %3372 = vmatprep.subr.mxu0 0.0
    %3373 = vmatpush1.msra.mxu0 0.0
    %3374 = vmatprep.subr.mxu0 0.0
    %3375 = vmatpush1.msra.mxu0 0.0
    %3376 = vmatprep.subr.mxu0 0.0
    %3377 = vmatpush1.msra.mxu0 0.0
    %3378 = vmatprep.subr.mxu0 0.0
    %3379 = vmatpush1.msra.mxu0 0.0
    %3380 = vmatprep.subr.mxu0 0.0
    %3381 = vmatpush1.msra.mxu0 0.0
    %3382 = vmatprep.subr.mxu0 0.0
    %3383 = vmatpush1.msra.mxu0 0.0
    %3384 = vmatprep.subr.mxu0 0.0
    %3385 = vmatpush1.msra.mxu0 0.0
    %3386 = vmatprep.subr.mxu0 0.0
    %3387 = vmatpush1.msra.mxu0 0.0
    %3388 = vmatprep.subr.mxu0 0.0
    %3389 = vmatpush1.msra.mxu0 0.0
    %3390 = vmatprep.subr.mxu0 0.0
    %3391 = vmatpush1.msra.mxu0 0.0
    %v3392 = vand.u32 %v138, 4294901760
    %v3393 = vsub.f32 %v138, %v3392
    %v3394 = vand.u32 %v3393, 4294901760
    %3395 = vmatprep.subr.mxu0 %v3394
    %v3396 = vand.u32 %v135, 4294901760
    %v3397 = vsub.f32 %v135, %v3396
    %v3398 = vand.u32 %v3397, 4294901760
    %3399 = vmatpush1.msra.mxu0 %v3398
    %v3400 = vand.u32 %v86, 4294901760
    %v3401 = vsub.f32 %v86, %v3400
    %v3402 = vand.u32 %v3401, 4294901760
    %3403 = vmatprep.subr.mxu0 %v3402
    %v3404 = vand.u32 %v85, 4294901760
    %v3405 = vsub.f32 %v85, %v3404
    %v3406 = vand.u32 %v3405, 4294901760
    %3407 = vmatpush1.msra.mxu0 %v3406
    %v3408 = vand.u32 %v74, 4294901760
    %v3409 = vsub.f32 %v74, %v3408
    %v3410 = vand.u32 %v3409, 4294901760
    %3411 = vmatprep.subr.mxu0 %v3410
    %v3412 = vand.u32 %v73, 4294901760
    %v3413 = vsub.f32 %v73, %v3412
    %v3414 = vand.u32 %v3413, 4294901760
    %3415 = vmatpush1.msra.mxu0 %v3414
    %v3416 = vand.u32 %v62, 4294901760
    %v3417 = vsub.f32 %v62, %v3416
    %v3418 = vand.u32 %v3417, 4294901760
    %3419 = vmatprep.subr.mxu0 %v3418
    %v3420 = vand.u32 %v61, 4294901760
    %v3421 = vsub.f32 %v61, %v3420
    %v3422 = vand.u32 %v3421, 4294901760
    %3423 = vmatpush1.msra.mxu0 %v3422
    %v3424 = vand.u32 %v50, 4294901760
    %v3425 = vsub.f32 %v50, %v3424
    %v3426 = vand.u32 %v3425, 4294901760
    %3427 = vmatprep.subr.mxu0 %v3426
    %v3428 = vand.u32 %v49, 4294901760
    %v3429 = vsub.f32 %v49, %v3428
    %v3430 = vand.u32 %v3429, 4294901760
    %3431 = vmatpush1.msra.mxu0 %v3430
    %3432 = vmatprep.subr.mxu0 0.0
    %3433 = vmatpush2.msra.mxu0 0.0
    %3434 = vmatprep.subr.mxu0 0.0
    %3435 = vmatpush2.msra.mxu0 0.0
    %3436 = vmatprep.subr.mxu0 0.0
    %3437 = vmatpush2.msra.mxu0 0.0
    %3438 = vmatprep.subr.mxu0 0.0
    %3439 = vmatpush2.msra.mxu0 0.0
    %3440 = vmatprep.subr.mxu0 0.0
    %3441 = vmatpush2.msra.mxu0 0.0
    %3442 = vmatprep.subr.mxu0 0.0
    %3443 = vmatpush2.msra.mxu0 0.0
    %3444 = vmatprep.subr.mxu0 0.0
    %3445 = vmatpush2.msra.mxu0 0.0
    %3446 = vmatprep.subr.mxu0 0.0
    %3447 = vmatpush2.msra.mxu0 0.0
    %3448 = vmatprep.subr.mxu0 0.0
    %3449 = vmatpush2.msra.mxu0 0.0
    %3450 = vmatprep.subr.mxu0 0.0
    %3451 = vmatpush2.msra.mxu0 0.0
    %3452 = vmatprep.subr.mxu0 0.0
    %3453 = vmatpush2.msra.mxu0 0.0
    %3454 = vmatprep.subr.mxu0 0.0
    %3455 = vmatpush2.msra.mxu0 0.0
    %3456 = vmatprep.subr.mxu0 0.0
    %3457 = vmatpush2.msra.mxu0 0.0
    %3458 = vmatprep.subr.mxu0 0.0
    %3459 = vmatpush2.msra.mxu0 0.0
    %3460 = vmatprep.subr.mxu0 0.0
    %3461 = vmatpush2.msra.mxu0 0.0
    %3462 = vmatprep.subr.mxu0 0.0
    %3463 = vmatpush2.msra.mxu0 0.0
    %3464 = vmatprep.mubr.f32.mxu0 0.0
    %v3465 = vand.u32 %v101, 4294901760
    %3466 = vmatmul.mubr.f32.gmra.mxu0 %v3465
    %v3467 = vpop.f32.mrf.mxu0
    %v3468 = vadd.f32 %v3366, %v3467
    %v3469 = vpop.f32.mrf.mxu0
    %v3470 = vadd.f32 %v3368, %v3469
    %3471 = vdwg.mxu0
    %3472 = vmatprep.subr.mxu0 0.0
    %3473 = vmatpush1.msra.mxu0 0.0
    %3474 = vmatprep.subr.mxu0 0.0
    %3475 = vmatpush1.msra.mxu0 0.0
    %3476 = vmatprep.subr.mxu0 0.0
    %3477 = vmatpush1.msra.mxu0 0.0
    %3478 = vmatprep.subr.mxu0 0.0
    %3479 = vmatpush1.msra.mxu0 0.0
    %3480 = vmatprep.subr.mxu0 0.0
    %3481 = vmatpush1.msra.mxu0 0.0
    %3482 = vmatprep.subr.mxu0 0.0
    %3483 = vmatpush1.msra.mxu0 0.0
    %3484 = vmatprep.subr.mxu0 0.0
    %3485 = vmatpush1.msra.mxu0 0.0
    %3486 = vmatprep.subr.mxu0 0.0
    %3487 = vmatpush1.msra.mxu0 0.0
    %3488 = vmatprep.subr.mxu0 0.0
    %3489 = vmatpush1.msra.mxu0 0.0
    %3490 = vmatprep.subr.mxu0 0.0
    %3491 = vmatpush1.msra.mxu0 0.0
    %3492 = vmatprep.subr.mxu0 0.0
    %3493 = vmatpush1.msra.mxu0 0.0
    %v3494 = vand.u32 %v138, 4294901760
    %3495 = vmatprep.subr.mxu0 %v3494
    %v3496 = vand.u32 %v135, 4294901760
    %3497 = vmatpush1.msra.mxu0 %v3496
    %v3498 = vand.u32 %v86, 4294901760
    %3499 = vmatprep.subr.mxu0 %v3498
    %v3500 = vand.u32 %v85, 4294901760
    %3501 = vmatpush1.msra.mxu0 %v3500
    %v3502 = vand.u32 %v74, 4294901760
    %3503 = vmatprep.subr.mxu0 %v3502
    %v3504 = vand.u32 %v73, 4294901760
    %3505 = vmatpush1.msra.mxu0 %v3504
    %v3506 = vand.u32 %v62, 4294901760
    %3507 = vmatprep.subr.mxu0 %v3506
    %v3508 = vand.u32 %v61, 4294901760
    %3509 = vmatpush1.msra.mxu0 %v3508
    %v3510 = vand.u32 %v50, 4294901760
    %3511 = vmatprep.subr.mxu0 %v3510
    %v3512 = vand.u32 %v49, 4294901760
    %3513 = vmatpush1.msra.mxu0 %v3512
    %3514 = vmatprep.subr.mxu0 0.0
    %3515 = vmatpush2.msra.mxu0 0.0
    %3516 = vmatprep.subr.mxu0 0.0
    %3517 = vmatpush2.msra.mxu0 0.0
    %3518 = vmatprep.subr.mxu0 0.0
    %3519 = vmatpush2.msra.mxu0 0.0
    %3520 = vmatprep.subr.mxu0 0.0
    %3521 = vmatpush2.msra.mxu0 0.0
    %3522 = vmatprep.subr.mxu0 0.0
    %3523 = vmatpush2.msra.mxu0 0.0
    %3524 = vmatprep.subr.mxu0 0.0
    %3525 = vmatpush2.msra.mxu0 0.0
    %3526 = vmatprep.subr.mxu0 0.0
    %3527 = vmatpush2.msra.mxu0 0.0
    %3528 = vmatprep.subr.mxu0 0.0
    %3529 = vmatpush2.msra.mxu0 0.0
    %3530 = vmatprep.subr.mxu0 0.0
    %3531 = vmatpush2.msra.mxu0 0.0
    %3532 = vmatprep.subr.mxu0 0.0
    %3533 = vmatpush2.msra.mxu0 0.0
    %3534 = vmatprep.subr.mxu0 0.0
    %3535 = vmatpush2.msra.mxu0 0.0
    %3536 = vmatprep.subr.mxu0 0.0
    %3537 = vmatpush2.msra.mxu0 0.0
    %3538 = vmatprep.subr.mxu0 0.0
    %3539 = vmatpush2.msra.mxu0 0.0
    %3540 = vmatprep.subr.mxu0 0.0
    %3541 = vmatpush2.msra.mxu0 0.0
    %3542 = vmatprep.subr.mxu0 0.0
    %3543 = vmatpush2.msra.mxu0 0.0
    %3544 = vmatprep.subr.mxu0 0.0
    %3545 = vmatpush2.msra.mxu0 0.0
    %3546 = vmatprep.mubr.f32.mxu0 0.0
    %v3547 = vand.u32 %v101, 4294901760
    %3548 = vmatmul.mubr.f32.gmra.mxu0 %v3547
    %v3549 = vpop.f32.mrf.mxu0
    %v3550 = vadd.f32 %v3468, %v3549
    %v3551 = vpop.f32.mrf.mxu0
    %v3552 = vadd.f32 %v3470, %v3551
    %3553 = vdwg.mxu0
    %v3566 = vcombine.low %v705, %v707
    %v3567 = vcombine.low %v1274, %v1276
    %v3569 = vunpack.c.l.s4 1983009808
    %v3570 = vunpack.c.0.s8 %v3569
    %v3571 = vlaneseq
    %v3572 = vshrl.u32 %v3571, 7
    %v3573 = vsub.s32 %v3570, %v3572
    %v3574 = vrot.slane %v3566, %v3573
    %v3576 = vunpack.c.l.s4 1983009808
    %v3577 = vunpack.c.0.s8 %v3576
    %v3578 = vlaneseq
    %v3579 = vshrl.u32 %v3578, 7
    %v3580 = vsub.s32 %v3577, %v3579
    %v3581 = vrot.slane %v3567, %v3580
    %v3582 = vcombine.low %v3574, %v3581
    %v3583 = vcombine.low %v1843, %v1845
    %v3584 = vcombine.low %v2412, %v2414
    %v3586 = vunpack.c.l.s4 1983009808
    %v3587 = vunpack.c.0.s8 %v3586
    %v3588 = vlaneseq
    %v3589 = vshrl.u32 %v3588, 7
    %v3590 = vsub.s32 %v3587, %v3589
    %v3591 = vrot.slane %v3583, %v3590
    %v3593 = vunpack.c.l.s4 1983009808
    %v3594 = vunpack.c.0.s8 %v3593
    %v3595 = vlaneseq
    %v3596 = vshrl.u32 %v3595, 7
    %v3597 = vsub.s32 %v3594, %v3596
    %v3598 = vrot.slane %v3584, %v3597
    %v3599 = vcombine.low %v3591, %v3598
    %v3600 = vcombine.low %v2981, %v2983
    %v3601 = vcombine.low %v3550, %v3552
    %v3603 = vunpack.c.l.s4 1983009808
    %v3604 = vunpack.c.0.s8 %v3603
    %v3605 = vlaneseq
    %v3606 = vshrl.u32 %v3605, 7
    %v3607 = vsub.s32 %v3604, %v3606
    %v3608 = vrot.slane %v3600, %v3607
    %v3610 = vunpack.c.l.s4 1983009808
    %v3611 = vunpack.c.0.s8 %v3610
    %v3612 = vlaneseq
    %v3613 = vshrl.u32 %v3612, 7
    %v3614 = vsub.s32 %v3611, %v3613
    %v3615 = vrot.slane %v3601, %v3614
    %v3616 = vcombine.low %v3608, %v3615
    %3620 = vst [vmem:[#allocation7] sm:$0xff] %v3582
    %3621 = vst [vmem:[#allocation7 + $0x8] sm:$0xff] %v3599
    %vm3622 = vcmask 1041408
    %vm3623 = vcmask 1043458
    %vm3624 = vmor %vm3623, %vm3622
    %vm3625 = vcmask 1045508
    %vm3626 = vmor %vm3625, %vm3624
    %vm3627 = vcmask 924678
    %vm3628 = vmor %vm3627, %vm3626
    %3629 = vst.msk [vmem:[#allocation7 + $0x10] sm:$0xff] %vm3628, %v3616
    // Predicated region
    $region18: #{tpu_custom_call.1} parent=1 // pred_check
      _
    $region19: #{tpu_custom_call.1} parent=1 // pred_check_branch
      %3631 = sbr.rel (0) target = $region21
    $region20: #{tpu_custom_call.1} parent=1 // pred_region
      %s3633 = ssub.s32 384, 384
      %3634 = vsyncadd [#allocation4], %s3633
      %s3636 = sshll.u32 [#allocation7], 4
      %s3637 = int_to_ptr.vmem [resolvable:$true] %s3636
      %3639 = dma.vmem_to_hbm [thread:$0]  %s3637, 384, %s2, [#allocation4]
    $region21: #{tpu_custom_call.1} parent=1 // pred_fallthru
      _
    // Predicated region
    $region22: #{tpu_custom_call.1} parent=1 // pred_check
      _
    $region23: #{tpu_custom_call.1} parent=1 // pred_check_branch
      %3641 = sbr.rel (0) target = $region25
    $region24: #{tpu_custom_call.1} parent=1 // pred_region
      %3642 = dma.done [#allocation4], 384
    $region25: #{tpu_custom_call.1} parent=1 // pred_fallthru
      _
    %3643 = vsyncpa [#allocation3], 1
    %3644 = vsyncpa [#allocation6], 1
    %3645 = vsyncpa [#allocation4], 1

</llo_original>
